<compile_context>
chip_gen: v7x
topology: tpu7x:2x2x1
jax: 0.10.0
libtpu: 0.0.40
codegen_flags: <defaults>
</compile_context>

<pallas_src>
import jax
import jax.numpy as jnp
from jax.experimental import pallas as pl
from jax.experimental.pallas import tpu as pltpu


def _round_up(x, m):
    return ((x + m - 1) // m) * m


def _pick_block(n_pad, tok_blk):
    """Largest blk = m*128 that divides n_pad, is <= tok_blk, and keeps >= 2
    grid steps whenever n_pad allows it (so both v7x TensorCores get work)."""
    k = n_pad // 128
    cap = max(tok_blk // 128, 1)
    if k >= 2:
        cap = min(cap, k // 2)      # keep at least 2 parallel grid steps
    cap = max(min(cap, k), 1)
    for m in range(cap, 0, -1):
        if k % m == 0:
            return m * 128
    return 128


def _wembed_kernel(ids_ref, tbl_ref, out_ref):
    """One token block: fused word+pose gather via one-hot @ block-diagonal table.

    ids_ref : (2, T)      int32   row 0 = word id, row 1 = pose id + Vw (lane-dense)
    tbl_ref : (Vpad, D)   float32 block-diagonal fused embedding table (resident)
    out_ref : (T, D)      float32 concatenated (word | pose) rows
    """
    ids = ids_ref[...]                               # (2, T)
    T = ids.shape[1]
    V = tbl_ref.shape[0]

    wid = ids[0:1, :]                                # (1, T) word id in [0, Vw)
    pid = ids[1:2, :]                                # (1, T) pose id in [Vw, Vw+Vp)

    # (V, T) one-hot: token axis stays on lanes (dense vregs). Word/pose ids live
    # in disjoint ranges of the fused vocab, so OR gives exactly two hot rows
    # per token column.
    iota_v = jax.lax.broadcasted_iota(jnp.int32, (V, T), 0)
    onehot_vt = ((wid == iota_v) | (pid == iota_v)).astype(jnp.float32)   # (V, T)

    # Tile-aligned (16, T) -> (T, 16) XLU transpose, then a standard NN matmul.
    # Block-diagonal table => first Dw cols are the word row, next Dp cols are
    # the pose row. HIGHEST precision keeps rows bit-exact vs the f32 table.
    onehot = onehot_vt.T                                                  # (T, V)
    out_ref[...] = jnp.dot(onehot, tbl_ref[...],
                           preferred_element_type=jnp.float32,
                           precision=jax.lax.Precision.HIGHEST)


class WEmbed:
    """Pallas equivalent of the PyTorch WEmbed module's forward pass."""

    def __init__(self, word_table, pose_table):
        self.word_table = jnp.asarray(word_table, jnp.float32)
        self.pose_table = jnp.asarray(pose_table, jnp.float32)
        self.Vw, self.Dw = self.word_table.shape
        self.Vp, self.Dp = self.pose_table.shape
        self.Dout = self.Dw + self.Dp
        self.Vpad = _round_up(self.Vw + self.Vp, 8)     # sublane-clean fused vocab

        # Block-diagonal fused table, built ONCE at parameter-init time.
        fused = jnp.zeros((self.Vpad, self.Dout), jnp.float32)
        fused = fused.at[:self.Vw, :self.Dw].set(self.word_table)
        fused = fused.at[self.Vw:self.Vw + self.Vp, self.Dw:].set(self.pose_table)
        self.fused_table = fused

    def __call__(self, word_input, pose_input, *, tok_blk=1024, min_pallas_tokens=256):
        B, S = word_input.shape
        N = B * S
        Dout = self.Dout

        # Small-N fallback: Pallas launch + pipeline prologue dominates below a
        # few hundred tokens (the module's default B=2, S=8 case).
        if N < min_pallas_tokens:
            w = jnp.take(self.word_table, word_input.astype(jnp.int32), axis=0)
            p = jnp.take(self.pose_table, pose_input.astype(jnp.int32), axis=0)
            return jnp.concatenate([w, p], axis=-1)

        N_pad = _round_up(N, 128)
        blk = _pick_block(N_pad, tok_blk)

        # Lane-dense (2, N) id stream; pose ids offset into the fused vocab.
        ids = jnp.stack(
            [word_input.reshape(N).astype(jnp.int32),
             pose_input.reshape(N).astype(jnp.int32) + self.Vw],
            axis=0)                                                       # (2, N)
        if N_pad != N:
            # Padded columns gather word row 0 / nothing; sliced off below.
            ids = jnp.pad(ids, ((0, 0), (0, N_pad - N)))

        out_flat = pl.pallas_call(
            _wembed_kernel,
            out_shape=jax.ShapeDtypeStruct((N_pad, Dout), jnp.float32),
            grid_spec=pltpu.PrefetchScalarGridSpec(
                num_scalar_prefetch=0,
                grid=(N_pad // blk,),
                in_specs=[
                    pl.BlockSpec((2, blk), lambda i: (0, i)),              # lane-dense ids
                    pl.BlockSpec((self.Vpad, Dout), lambda i: (0, 0)),     # resident table
                ],
                out_specs=pl.BlockSpec((blk, Dout), lambda i: (i, 0)),
            ),
            compiler_params=pltpu.CompilerParams(
                dimension_semantics=("parallel",)),
        )(ids, self.fused_table)

        if N_pad != N:
            out_flat = out_flat[:N]
        # N_pad == N (the common tiled case) => this is a free metadata reshape.
        return out_flat.reshape(B, S, Dout)


if __name__ == "__main__":
    # Module defaults: w_dim=100, w_size=10, p_dim=20, p_size=4.
    w_size, w_dim = 10, 100
    p_size, p_dim = 4, 20

    key = jax.random.PRNGKey(0)
    keys = jax.random.split(key, 8)

    word_table = jax.random.normal(keys[0], (w_size, w_dim), dtype=jnp.float32)
    pose_table = jax.random.normal(keys[1], (p_size, p_dim), dtype=jnp.float32)

    embed = WEmbed(word_table, pose_table)

    def ref_fn(wi, pi):
        return jnp.concatenate([word_table[wi], pose_table[pi]], axis=-1)

    # --- small case matching the module's default-ish usage (XLA fallback path) ---
    B, S = 2, 8
    wi = jax.random.randint(keys[2], (B, S), 0, w_size, dtype=jnp.int32)
    pi = jax.random.randint(keys[3], (B, S), 0, p_size, dtype=jnp.int32)
    out = jax.block_until_ready(embed(wi, pi))
    assert out.shape == (B, S, w_dim + p_dim), out.shape
    assert out.dtype == jnp.float32
    assert jnp.array_equal(out, ref_fn(wi, pi)), "mismatch vs reference (small)"

    # --- tiled Pallas path: N=1024 -> blk=512, 2 parallel grid steps, no padding ---
    B2, S2 = 4, 256
    wi2 = jax.random.randint(keys[4], (B2, S2), 0, w_size, dtype=jnp.int32)
    pi2 = jax.random.randint(keys[5], (B2, S2), 0, p_size, dtype=jnp.int32)
    out2 = jax.block_until_ready(embed(wi2, pi2))
    assert out2.shape == (B2, S2, w_dim + p_dim), out2.shape
    assert out2.dtype == jnp.float32
    assert jnp.array_equal(out2, ref_fn(wi2, pi2)), "mismatch vs reference (tiled)"

    # --- ragged Pallas path: N=300 -> N_pad=384, blk=128, tail padding sliced off ---
    B3, S3 = 3, 100
    wi3 = jax.random.randint(keys[6], (B3, S3), 0, w_size, dtype=jnp.int32)
    pi3 = jax.random.randint(keys[7], (B3, S3), 0, p_size, dtype=jnp.int32)
    out3 = jax.block_until_ready(embed(wi3, pi3))
    assert out3.shape == (B3, S3, w_dim + p_dim), out3.shape
    assert jnp.array_equal(out3, ref_fn(wi3, pi3)), "mismatch vs reference (ragged)"

    print("KERNEL_OK")
</pallas_src>

<mosaic_0001>
module attributes {stable_mosaic.version = 11 : i64} {
  func.func @_wembed_kernel(%arg0: i32, %arg1: memref<2x512xi32, #tpu.memory_space<vmem>>, %arg2: memref<16x120xf32, #tpu.memory_space<vmem>>, %arg3: memref<512x120xf32, #tpu.memory_space<vmem>>) attributes {dimension_semantics = [#tpu.dimension_semantics<parallel>], iteration_bounds = array<i64: 2>, scalar_prefetch = 0 : i64, scratch_operands = 0 : i64, tpu.core_type = #tpu.core_type<tc>, window_params = [{transform_indices = @transform_0, window_bounds = array<i64: 2, 512>}, {pipeline_mode = #tpu.pipeline_mode<synchronous>, transform_indices = @transform_1, window_bounds = array<i64: 16, 120>}, {transform_indices = @transform_2, window_bounds = array<i64: 512, 120>}]} {
    %c0 = arith.constant 0 : index
    %c0_0 = arith.constant 0 : index
    %0 = vector.load %arg1[%c0, %c0_0] : memref<2x512xi32, #tpu.memory_space<vmem>>, vector<2x512xi32>
    %1 = vector.extract_strided_slice %0 {offsets = [0, 0], sizes = [1, 512], strides = [1, 1]} : vector<2x512xi32> to vector<1x512xi32>
    %2 = vector.extract_strided_slice %0 {offsets = [1, 0], sizes = [1, 512], strides = [1, 1]} : vector<2x512xi32> to vector<1x512xi32>
    %3 = tpu.iota {dimensions = array<i32: 0>} : vector<16x512xi32>
    %4 = vector.broadcast %1 : vector<1x512xi32> to vector<16x512xi32>
    %5 = arith.cmpi eq, %4, %3 : vector<16x512xi32>
    %6 = vector.broadcast %2 : vector<1x512xi32> to vector<16x512xi32>
    %7 = arith.cmpi eq, %6, %3 : vector<16x512xi32>
    %8 = arith.ori %5, %7 : vector<16x512xi1>
    %9 = arith.extui %8 : vector<16x512xi1> to vector<16x512xi32>
    %10 = arith.sitofp %9 : vector<16x512xi32> to vector<16x512xf32>
    %11 = tpu.transpose %10, [1, 0] : vector<16x512xf32> -> vector<512x16xf32>
    %c0_1 = arith.constant 0 : index
    %c0_2 = arith.constant 0 : index
    %12 = vector.load %arg2[%c0_1, %c0_2] : memref<16x120xf32, #tpu.memory_space<vmem>>, vector<16x120xf32>
    %cst = arith.constant dense<0.000000e+00> : vector<512x120xf32>
    %13 = tpu.matmul %11, %12, %cst {dimension_numbers = #tpu.dot_dimension_numbers<[1], [0], [0], [1], [0, 0, 1, 1], [], []>, precision = #tpu.contract_precision<fp32>} : vector<512x16xf32>, vector<16x120xf32>, vector<512x120xf32> -> vector<512x120xf32>
    %c0_3 = arith.constant 0 : index
    %c0_4 = arith.constant 0 : index
    %14 = vector.load %arg3[%c0_3, %c0_4] : memref<512x120xf32, #tpu.memory_space<vmem>>, vector<512x120xf32>
    tpu.vector_store %arg3[%c0_3, %c0_4], %13 {strides = array<i32>} : memref<512x120xf32, #tpu.memory_space<vmem>>, vector<512x120xf32>,
    return
  }
  func.func @transform_0(%arg0: i32) -> (i32, i32) {
    %c0_i32 = arith.constant 0 : i32
    %c0_i32_0 = arith.constant 0 : i32
    return %c0_i32, %arg0 : i32, i32
  }
  func.func @transform_1(%arg0: i32) -> (i32, i32) {
    %c0_i32 = arith.constant 0 : i32
    %c0_i32_0 = arith.constant 0 : i32
    %c0_i32_1 = arith.constant 0 : i32
    return %c0_i32, %c0_i32_0 : i32, i32
  }
  func.func @transform_2(%arg0: i32) -> (i32, i32) {
    %c0_i32 = arith.constant 0 : i32
    %c0_i32_0 = arith.constant 0 : i32
    return %arg0, %c0_i32 : i32, i32
  }
}

</mosaic_0001>

<llo_original>
// kernel: tpu_custom_call.1
$region0: #{tpu_custom_call.1}
  #allocation0 [shape = 'u32[]', space=smem, size = 0x4, offset = 0x4, fixed_abs, tag = 'smem constant byte address 0x4 - core index']
  #allocation1 [shape = 'u32[144,128]{1,0:T(1,128)}', space=vmem, size = 0x12000, scoped, tag = 'internal scratch']
  %s0 = inlined_call_operand.hbm [shape: s32[2,1024], index: 0, kind: input, shape index: {}]
  %s1 = inlined_call_operand.hbm [shape: f32[16,120], index: 1, kind: input, shape index: {}]
  %s2 = inlined_call_operand.vmem [shape: f32[1024,120], index: 2, kind: output, shape index: {}]
  %s3 = sld [smem:[#allocation0]]
  $region49: #{tpu_custom_call.1} parent=0
    _
  %s5 = ssub.s32 1, %s3
  %s6 = scalar_select 0, %s5, %s3
  $region1: #{tpu_custom_call.1} parent=0
    #allocation2 [shape = 'u8[8192]{0}', space=vmem, size = 0x2000, scoped, tag = 'input window, operand 0']
    #allocation3 [shape = 's32[2]{0}', space=sflag, size = 0x8, scoped, tag = 'scoped memory for tpu_custom_call.1']
    #allocation4 [shape = 'u8[8192]{0}', space=vmem, size = 0x2000, scoped, tag = 'input window, operand 1, single buffered']
    #allocation5 [shape = 's32[1]{0}', space=sflag, size = 0x4, scoped, tag = 'scoped memory for tpu_custom_call.1']
    %7 = vsyncpa [#allocation3], 0
    %s8 = scalar_lea.sflag [#allocation3], 1
    %9 = vsyncpa %s8, 0
    %10 = vsyncpa [#allocation5], 0
    loop: start=0, step=1, limit=4
    $region2: #{tpu_custom_call.1} parent=1 // loop_pre_header
      _
    $region3: #{tpu_custom_call.1} parent=1 // loop_header
      %s12 = sphi 0, %s16
      %p13 = scmp.ge.s32.totalorder %s12, 4
      %s22 = sphi 0, %s24
      %s25 = sphi 0, %s22
      %s26 = sphi 0, %s25
      %s42 = sphi 0, %s26
      %s46 = sphi 0, %s46
      %s48 = sphi 0, %s46
      %s49 = sphi 0, %s48
      %s63 = sphi 0, %s49
      %s69 = sphi 0, %s71
      %s72 = sphi 0, %s69
      %s73 = sphi 0, %s72
      %s89 = sphi 0, %s73
    $region4: #{tpu_custom_call.1} parent=1 // loop_header_branch
      %15 = sbr.rel (%p13) target = $region8
    $region5: #{tpu_custom_call.1} parent=1 // loop_body
      %s17 = ssub.s32 %s12, 1
      %s18 = ssub.s32 %s12, 2
      %s19 = sadd.s32 %s12, 1
      %s20 = ssub.s32 %s12, %s19
      %p21 = scmp.eq.s32.totalorder %s20, 0
      %s23 = sadd.s32 %s22, 1
      %s24 = scalar_select %p21, %s22, %s23
      %p27 = pneg %p21
      %p28 = scmp.eq.s32.totalorder %s12, 1
      %p29 = por %p27, %p28
      %p30 = scmp.ne.s32.totalorder %s22, %s25
      %p31 = scmp.eq.s32.totalorder %s12, 0
      %p32 = por %p30, %p31
      %p33 = scmp.ne.s32.totalorder %s22, %s25
      %p34 = scmp.eq.s32.totalorder %s17, 1
      %p35 = por %p33, %p34
      %p36 = scmp.ne.s32.totalorder %s25, %s26
      %p37 = scmp.eq.s32.totalorder %s17, 0
      %p38 = por %p36, %p37
      %p39 = scmp.ne.s32.totalorder %s25, %s26
      %p40 = scmp.eq.s32.totalorder %s18, 1
      %p41 = por %p39, %p40
      %p43 = scmp.ne.s32.totalorder %s26, %s42
      %p44 = scmp.eq.s32.totalorder %s18, 0
      %p45 = por %p43, %p44
      %s47 = sadd.s32 %s46, 1
      %p50 = scmp.eq.s32.totalorder %s12, 1
      %p51 = scmp.ne.s32.totalorder %s46, %s48
      %p52 = scmp.eq.s32.totalorder %s12, 0
      %p53 = por %p51, %p52
      %p54 = scmp.ne.s32.totalorder %s46, %s48
      %p55 = scmp.eq.s32.totalorder %s17, 1
      %p56 = por %p54, %p55
      %p57 = scmp.ne.s32.totalorder %s48, %s49
      %p58 = scmp.eq.s32.totalorder %s17, 0
      %p59 = por %p57, %p58
      %p60 = scmp.ne.s32.totalorder %s48, %s49
      %p61 = scmp.eq.s32.totalorder %s18, 1
      %p62 = por %p60, %p61
      %p64 = scmp.ne.s32.totalorder %s49, %s63
      %p65 = scmp.eq.s32.totalorder %s18, 0
      %p66 = por %p64, %p65
      %s67 = ssub.s32 %s12, %s19
      %p68 = scmp.eq.s32.totalorder %s67, 0
      %s70 = sadd.s32 %s69, 1
      %s71 = scalar_select %p68, %s69, %s70
      %p74 = pneg %p68
      %p75 = scmp.eq.s32.totalorder %s12, 1
      %p76 = por %p74, %p75
      %p77 = scmp.ne.s32.totalorder %s69, %s72
      %p78 = scmp.eq.s32.totalorder %s12, 0
      %p79 = por %p77, %p78
      %p80 = scmp.ne.s32.totalorder %s69, %s72
      %p81 = scmp.eq.s32.totalorder %s17, 1
      %p82 = por %p80, %p81
      %p83 = scmp.ne.s32.totalorder %s72, %s73
      %p84 = scmp.eq.s32.totalorder %s17, 0
      %p85 = por %p83, %p84
      %p86 = scmp.ne.s32.totalorder %s72, %s73
      %p87 = scmp.eq.s32.totalorder %s18, 1
      %p88 = por %p86, %p87
      %p90 = scmp.ne.s32.totalorder %s73, %s89
      %p91 = scmp.eq.s32.totalorder %s18, 0
      %p92 = por %p90, %p91
      %p93 = scmp.le.s32.totalorder 1, %s12
      %p94 = scmp.lt.s32.totalorder %s12, 3
      %p95 = pnand %p93, %p94
      %p96 = pneg %p95
      // Predicated region
      $region9: #{tpu_custom_call.1} parent=5 // pred_check
        _
      $region10: #{tpu_custom_call.1} parent=5 // pred_check_branch
        %98 = sbr.rel (%p95) target = $region12
      $region11: #{tpu_custom_call.1} parent=5 // pred_region
        %s99 = ssub.s32 %s12, 1
        // Predicated region
        $region13: #{tpu_custom_call.1} parent=11 // pred_check
          %p100 = pneg %p59
        $region14: #{tpu_custom_call.1} parent=11 // pred_check_branch
          %102 = sbr.rel (%p100) target = $region16
        $region15: #{tpu_custom_call.1} parent=11 // pred_region
          %s104 = ssub.s32 256, 256
          %105 = vsyncadd [#allocation5], %s104
          %s106 = sshll.u32 [#allocation4], 4
          %s107 = int_to_ptr.vmem [resolvable:$true] %s106
          %112 = dma.hbm_to_vmem [thread:$0]  %s1, 256, %s107, [#allocation5], 128, 128, 8
        $region16: #{tpu_custom_call.1} parent=11 // pred_fallthru
          _
      $region12: #{tpu_custom_call.1} parent=5 // pred_fallthru
        _
      %p113 = scmp.lt.s32.totalorder %s12, 2
      // Predicated region
      $region17: #{tpu_custom_call.1} parent=5 // pred_check
        %p114 = pneg %p113
      $region18: #{tpu_custom_call.1} parent=5 // pred_check_branch
        %116 = sbr.rel (%p114) target = $region20
      $region19: #{tpu_custom_call.1} parent=5 // pred_region
        // Predicated region
        $region21: #{tpu_custom_call.1} parent=19 // pred_check
          %p117 = pneg %p32
        $region22: #{tpu_custom_call.1} parent=19 // pred_check_branch
          %119 = sbr.rel (%p117) target = $region24
        $region23: #{tpu_custom_call.1} parent=19 // pred_region
          %s120 = sand.u32 %s22, 1
          %s121 = scalar_lea.sflag [#allocation3], %s120
          %s122 = sand.u32 %s22, 1
          %s123 = smul.addr %s122, 8
          %s124 = scalar_lea.vmem [#allocation2], %s123
          %s125 = smul.u32 4, %s12
          %s127 = ssub.s32 128, 128
          %128 = vsyncadd %s121, %s127
          %s129 = smul.addr %s125, 32
          %s130 = scalar_lea.hbm %s0, %s129
          %s132 = sshll.u32 %s124, 4
          %s133 = int_to_ptr.vmem [resolvable:$true] %s132
          %135 = dma.hbm_to_vmem [thread:$0]  %s130, 128, %s133, %s121
        $region24: #{tpu_custom_call.1} parent=19 // pred_fallthru
          _
      $region20: #{tpu_custom_call.1} parent=5 // pred_fallthru
        _
      %p136 = scmp.le.s32.totalorder 1, %s12
      %p137 = scmp.lt.s32.totalorder %s12, 3
      %p138 = pnand %p136, %p137
      %p139 = pneg %p138
      // Predicated region
      $region25: #{tpu_custom_call.1} parent=5 // pred_check
        _
      $region26: #{tpu_custom_call.1} parent=5 // pred_check_branch
        %141 = sbr.rel (%p138) target = $region28
      $region27: #{tpu_custom_call.1} parent=5 // pred_region
        %s142 = ssub.s32 %s12, 1
        %s143 = sand.u32 %s25, 1
        %s144 = scalar_lea.sflag [#allocation3], %s143
        %s145 = sand.u32 %s25, 1
        %s146 = smul.addr %s145, 8
        %s147 = scalar_lea.vmem [#allocation2], %s146
        // Predicated region
        $region29: #{tpu_custom_call.1} parent=27 // pred_check
          %p148 = pneg %p38
        $region30: #{tpu_custom_call.1} parent=27 // pred_check_branch
          %150 = sbr.rel (%p148) target = $region32
        $region31: #{tpu_custom_call.1} parent=27 // pred_region
          %151 = dma.done %s144, 128
        $region32: #{tpu_custom_call.1} parent=27 // pred_fallthru
          _
        // Predicated region
        $region33: #{tpu_custom_call.1} parent=27 // pred_check
          %p152 = pneg %p59
        $region34: #{tpu_custom_call.1} parent=27 // pred_check_branch
          %154 = sbr.rel (%p152) target = $region36
        $region35: #{tpu_custom_call.1} parent=27 // pred_region
          %155 = dma.done [#allocation5], 256
        $region36: #{tpu_custom_call.1} parent=27 // pred_fallthru
          _
        %s156 = sand.u32 %s25, 1
        %s157 = scalar_lea.sflag [#allocation3], %s156
        %s158 = sand.u32 %s25, 1
        %s159 = smul.addr %s158, 8
        %s160 = scalar_lea.vmem [#allocation2], %s159
        %p161 = pneg %p38
        %p162 = pneg %p35
        %p163 = pneg %p59
        %p164 = pneg %p56
        %p165 = pneg %p85
        %p166 = pneg %p82
        %s167 = smul.u32 64, %s17
        %p168 = scmp.lt.s32.totalorder %s167, 127
        %s169 = scalar_select %p168, %s167, 127
        %s170 = smul.addr %s169, 8
        %s171 = scalar_lea.vmem %s2, %s170
        %s172 = smul.u32 4, %s17
        %s173 = smul.u32 64, %s17
        %p174 = scmp.lt.s32.totalorder %s173, 127
        %s175 = scalar_select %p174, %s173, 127
        %s176 = smul.addr %s175, 8
        %s177 = scalar_lea.vmem %s2, %s176
        %s178 = smul.u32 64, %s17
        %v179 = vld [vmem:[%s147] sm:$0xff]
        %v180 = vlaneseq
        %v181 = vshrl.u32 %v180, 7
        %v182 = vadd.s32 %v181, 8
        %v183 = vlaneseq
        %v184 = vshrl.u32 %v183, 7
        %v185 = vsub.s32 0, %v184
        %v186 = vrot.slane %v179, %v185
        %v187 = vlaneseq
        %v188 = vshrl.u32 %v187, 7
        %v189 = vsub.s32 2, %v188
        %v190 = vrot.slane %v179, %v189
        %v191 = vlaneseq
        %v192 = vshrl.u32 %v191, 7
        %v193 = vsub.s32 4, %v192
        %v194 = vrot.slane %v179, %v193
        %v195 = vlaneseq
        %v196 = vshrl.u32 %v195, 7
        %v197 = vsub.s32 6, %v196
        %v198 = vrot.slane %v179, %v197
        %v199 = vlaneseq
        %v200 = vshrl.u32 %v199, 7
        %v201 = vsub.s32 0, %v200
        %v202 = vrot.slane %v186, %v201
        %v203 = vlaneseq
        %v204 = vshrl.u32 %v203, 7
        %v205 = vsub.s32 0, %v204
        %v206 = vrot.slane %v190, %v205
        %v207 = vlaneseq
        %v208 = vshrl.u32 %v207, 7
        %v209 = vsub.s32 0, %v208
        %v210 = vrot.slane %v194, %v209
        %v211 = vlaneseq
        %v212 = vshrl.u32 %v211, 7
        %v213 = vsub.s32 0, %v212
        %v214 = vrot.slane %v198, %v213
        %vm215 = vcmp.eq.s32.totalorder %v202, %v181
        %vm216 = vcmp.eq.s32.totalorder %v206, %v181
        %vm217 = vcmp.eq.s32.totalorder %v210, %v181
        %vm218 = vcmp.eq.s32.totalorder %v214, %v181
        %vm219 = vcmp.eq.s32.totalorder %v202, %v182
        %vm220 = vcmp.eq.s32.totalorder %v206, %v182
        %vm221 = vcmp.eq.s32.totalorder %v210, %v182
        %vm222 = vcmp.eq.s32.totalorder %v214, %v182
        %v223 = vlaneseq
        %v224 = vshrl.u32 %v223, 7
        %v225 = vsub.s32 1, %v224
        %v226 = vrot.slane %v179, %v225
        %v227 = vlaneseq
        %v228 = vshrl.u32 %v227, 7
        %v229 = vsub.s32 3, %v228
        %v230 = vrot.slane %v179, %v229
        %v231 = vlaneseq
        %v232 = vshrl.u32 %v231, 7
        %v233 = vsub.s32 5, %v232
        %v234 = vrot.slane %v179, %v233
        %v235 = vlaneseq
        %v236 = vshrl.u32 %v235, 7
        %v237 = vsub.s32 7, %v236
        %v238 = vrot.slane %v179, %v237
        %v239 = vlaneseq
        %v240 = vshrl.u32 %v239, 7
        %v241 = vsub.s32 1, %v240
        %v242 = vrot.slane %v226, %v241
        %v243 = vlaneseq
        %v244 = vshrl.u32 %v243, 7
        %v245 = vsub.s32 1, %v244
        %v246 = vrot.slane %v230, %v245
        %v247 = vlaneseq
        %v248 = vshrl.u32 %v247, 7
        %v249 = vsub.s32 1, %v248
        %v250 = vrot.slane %v234, %v249
        %v251 = vlaneseq
        %v252 = vshrl.u32 %v251, 7
        %v253 = vsub.s32 1, %v252
        %v254 = vrot.slane %v238, %v253
        %vm255 = vcmp.eq.s32.totalorder %v242, %v181
        %vm256 = vcmp.eq.s32.totalorder %v246, %v181
        %vm257 = vcmp.eq.s32.totalorder %v250, %v181
        %vm258 = vcmp.eq.s32.totalorder %v254, %v181
        %vm259 = vcmp.eq.s32.totalorder %v242, %v182
        %vm260 = vcmp.eq.s32.totalorder %v246, %v182
        %vm261 = vcmp.eq.s32.totalorder %v250, %v182
        %vm262 = vcmp.eq.s32.totalorder %v254, %v182
        %vm263 = vmor %vm215, %vm255
        %vm264 = vmor %vm216, %vm256
        %vm265 = vmor %vm217, %vm257
        %vm266 = vmor %vm218, %vm258
        %vm267 = vmor %vm219, %vm259
        %vm268 = vmor %vm220, %vm260
        %vm269 = vmor %vm221, %vm261
        %vm270 = vmor %vm222, %vm262
        %v271 = vsel %vm263, 1, 0
        %v272 = vsel %vm264, 1, 0
        %v273 = vsel %vm265, 1, 0
        %v274 = vsel %vm266, 1, 0
        %v275 = vsel %vm267, 1, 0
        %v276 = vsel %vm268, 1, 0
        %v277 = vsel %vm269, 1, 0
        %v278 = vsel %vm270, 1, 0
        %v279 = vcvt.s32.f32 %v271
        %v280 = vcvt.s32.f32 %v272
        %v281 = vcvt.s32.f32 %v273
        %v282 = vcvt.s32.f32 %v274
        %v283 = vcvt.s32.f32 %v275
        %v284 = vcvt.s32.f32 %v276
        %v285 = vcvt.s32.f32 %v277
        %v286 = vcvt.s32.f32 %v278
        %287 = vxpose.xlu0.b32.start [1/16] %v279, 128
        %288 = vxpose.xlu0.b32.cont [2/16] %v283, 128
        %289 = vxpose.xlu0.b32.cont [3/16] 0.0, 128
        %290 = vxpose.xlu0.b32.cont [4/16] 0.0, 128
        %291 = vxpose.xlu0.b32.cont [5/16] 0.0, 128
        %292 = vxpose.xlu0.b32.cont [6/16] 0.0, 128
        %293 = vxpose.xlu0.b32.cont [7/16] 0.0, 128
        %294 = vxpose.xlu0.b32.cont [8/16] 0.0, 128
        %295 = vxpose.xlu0.b32.cont [9/16] 0.0, 128
        %296 = vxpose.xlu0.b32.cont [10/16] 0.0, 128
        %297 = vxpose.xlu0.b32.cont [11/16] 0.0, 128
        %298 = vxpose.xlu0.b32.cont [12/16] 0.0, 128
        %299 = vxpose.xlu0.b32.cont [13/16] 0.0, 128
        %300 = vxpose.xlu0.b32.cont [14/16] 0.0, 128
        %301 = vxpose.xlu0.b32.cont [15/16] 0.0, 128
        %302 = vxpose.xlu0.b32.end [16/16] 0.0, 128
        %v303 = vpop.trf.xlu0
        %v304 = vpop.trf.xlu0
        %v305 = vpop.trf.xlu0
        %v306 = vpop.trf.xlu0
        %v307 = vpop.trf.xlu0
        %v308 = vpop.trf.xlu0
        %v309 = vpop.trf.xlu0
        %v310 = vpop.trf.xlu0
        %v311 = vpop.trf.xlu0
        %v312 = vpop.trf.xlu0
        %v313 = vpop.trf.xlu0
        %v314 = vpop.trf.xlu0
        %v315 = vpop.trf.xlu0
        %v316 = vpop.trf.xlu0
        %v317 = vpop.trf.xlu0
        %v318 = vpop.trf.xlu0
        %319 = vxpose.xlu0.b32.start [1/16] %v280, 128
        %320 = vxpose.xlu0.b32.cont [2/16] %v284, 128
        %321 = vxpose.xlu0.b32.cont [3/16] 0.0, 128
        %322 = vxpose.xlu0.b32.cont [4/16] 0.0, 128
        %323 = vxpose.xlu0.b32.cont [5/16] 0.0, 128
        %324 = vxpose.xlu0.b32.cont [6/16] 0.0, 128
        %325 = vxpose.xlu0.b32.cont [7/16] 0.0, 128
        %326 = vxpose.xlu0.b32.cont [8/16] 0.0, 128
        %327 = vxpose.xlu0.b32.cont [9/16] 0.0, 128
        %328 = vxpose.xlu0.b32.cont [10/16] 0.0, 128
        %329 = vxpose.xlu0.b32.cont [11/16] 0.0, 128
        %330 = vxpose.xlu0.b32.cont [12/16] 0.0, 128
        %331 = vxpose.xlu0.b32.cont [13/16] 0.0, 128
        %332 = vxpose.xlu0.b32.cont [14/16] 0.0, 128
        %333 = vxpose.xlu0.b32.cont [15/16] 0.0, 128
        %334 = vxpose.xlu0.b32.end [16/16] 0.0, 128
        %v335 = vpop.trf.xlu0
        %v336 = vpop.trf.xlu0
        %v337 = vpop.trf.xlu0
        %v338 = vpop.trf.xlu0
        %v339 = vpop.trf.xlu0
        %v340 = vpop.trf.xlu0
        %v341 = vpop.trf.xlu0
        %v342 = vpop.trf.xlu0
        %v343 = vpop.trf.xlu0
        %v344 = vpop.trf.xlu0
        %v345 = vpop.trf.xlu0
        %v346 = vpop.trf.xlu0
        %v347 = vpop.trf.xlu0
        %v348 = vpop.trf.xlu0
        %v349 = vpop.trf.xlu0
        %v350 = vpop.trf.xlu0
        %351 = vxpose.xlu0.b32.start [1/16] %v281, 128
        %352 = vxpose.xlu0.b32.cont [2/16] %v285, 128
        %353 = vxpose.xlu0.b32.cont [3/16] 0.0, 128
        %354 = vxpose.xlu0.b32.cont [4/16] 0.0, 128
        %355 = vxpose.xlu0.b32.cont [5/16] 0.0, 128
        %356 = vxpose.xlu0.b32.cont [6/16] 0.0, 128
        %357 = vxpose.xlu0.b32.cont [7/16] 0.0, 128
        %358 = vxpose.xlu0.b32.cont [8/16] 0.0, 128
        %359 = vxpose.xlu0.b32.cont [9/16] 0.0, 128
        %360 = vxpose.xlu0.b32.cont [10/16] 0.0, 128
        %361 = vxpose.xlu0.b32.cont [11/16] 0.0, 128
        %362 = vxpose.xlu0.b32.cont [12/16] 0.0, 128
        %363 = vxpose.xlu0.b32.cont [13/16] 0.0, 128
        %364 = vxpose.xlu0.b32.cont [14/16] 0.0, 128
        %365 = vxpose.xlu0.b32.cont [15/16] 0.0, 128
        %366 = vxpose.xlu0.b32.end [16/16] 0.0, 128
        %v367 = vpop.trf.xlu0
        %v368 = vpop.trf.xlu0
        %v369 = vpop.trf.xlu0
        %v370 = vpop.trf.xlu0
        %v371 = vpop.trf.xlu0
        %v372 = vpop.trf.xlu0
        %v373 = vpop.trf.xlu0
        %v374 = vpop.trf.xlu0
        %v375 = vpop.trf.xlu0
        %v376 = vpop.trf.xlu0
        %v377 = vpop.trf.xlu0
        %v378 = vpop.trf.xlu0
        %v379 = vpop.trf.xlu0
        %v380 = vpop.trf.xlu0
        %v381 = vpop.trf.xlu0
        %v382 = vpop.trf.xlu0
        %383 = vxpose.xlu0.b32.start [1/16] %v282, 128
        %384 = vxpose.xlu0.b32.cont [2/16] %v286, 128
        %385 = vxpose.xlu0.b32.cont [3/16] 0.0, 128
        %386 = vxpose.xlu0.b32.cont [4/16] 0.0, 128
        %387 = vxpose.xlu0.b32.cont [5/16] 0.0, 128
        %388 = vxpose.xlu0.b32.cont [6/16] 0.0, 128
        %389 = vxpose.xlu0.b32.cont [7/16] 0.0, 128
        %390 = vxpose.xlu0.b32.cont [8/16] 0.0, 128
        %391 = vxpose.xlu0.b32.cont [9/16] 0.0, 128
        %392 = vxpose.xlu0.b32.cont [10/16] 0.0, 128
        %393 = vxpose.xlu0.b32.cont [11/16] 0.0, 128
        %394 = vxpose.xlu0.b32.cont [12/16] 0.0, 128
        %395 = vxpose.xlu0.b32.cont [13/16] 0.0, 128
        %396 = vxpose.xlu0.b32.cont [14/16] 0.0, 128
        %397 = vxpose.xlu0.b32.cont [15/16] 0.0, 128
        %398 = vxpose.xlu0.b32.end [16/16] 0.0, 128
        %v399 = vpop.trf.xlu0
        %v400 = vpop.trf.xlu0
        %v401 = vpop.trf.xlu0
        %v402 = vpop.trf.xlu0
        %v403 = vpop.trf.xlu0
        %v404 = vpop.trf.xlu0
        %v405 = vpop.trf.xlu0
        %v406 = vpop.trf.xlu0
        %v407 = vpop.trf.xlu0
        %v408 = vpop.trf.xlu0
        %v409 = vpop.trf.xlu0
        %v410 = vpop.trf.xlu0
        %v411 = vpop.trf.xlu0
        %v412 = vpop.trf.xlu0
        %v413 = vpop.trf.xlu0
        %v414 = vpop.trf.xlu0
        %v415 = vld [vmem:[#allocation4] sm:$0xff]
        %v416 = vld [vmem:[#allocation4 + $0x8] sm:$0xff]
        %vm417 = vcmask 130048
        %v419 = vsel %vm417, %v303, 0
        %v422 = vsel %vm417, %v304, 0
        %v425 = vsel %vm417, %v305, 0
        %v428 = vsel %vm417, %v306, 0
        %v431 = vsel %vm417, %v307, 0
        %v434 = vsel %vm417, %v308, 0
        %v437 = vsel %vm417, %v309, 0
        %v440 = vsel %vm417, %v310, 0
        %v443 = vsel %vm417, %v311, 0
        %v446 = vsel %vm417, %v312, 0
        %v449 = vsel %vm417, %v313, 0
        %v452 = vsel %vm417, %v314, 0
        %v455 = vsel %vm417, %v315, 0
        %v458 = vsel %vm417, %v316, 0
        %v461 = vsel %vm417, %v317, 0
        %v464 = vsel %vm417, %v318, 0
        %v467 = vsel %vm417, %v335, 0
        %v470 = vsel %vm417, %v336, 0
        %v473 = vsel %vm417, %v337, 0
        %v476 = vsel %vm417, %v338, 0
        %v479 = vsel %vm417, %v339, 0
        %v482 = vsel %vm417, %v340, 0
        %v485 = vsel %vm417, %v341, 0
        %v488 = vsel %vm417, %v342, 0
        %v491 = vsel %vm417, %v343, 0
        %v494 = vsel %vm417, %v344, 0
        %v497 = vsel %vm417, %v345, 0
        %v500 = vsel %vm417, %v346, 0
        %v503 = vsel %vm417, %v347, 0
        %v506 = vsel %vm417, %v348, 0
        %v509 = vsel %vm417, %v349, 0
        %v512 = vsel %vm417, %v350, 0
        %v515 = vsel %vm417, %v367, 0
        %v518 = vsel %vm417, %v368, 0
        %v521 = vsel %vm417, %v369, 0
        %v524 = vsel %vm417, %v370, 0
        %v527 = vsel %vm417, %v371, 0
        %v530 = vsel %vm417, %v372, 0
        %v533 = vsel %vm417, %v373, 0
        %v536 = vsel %vm417, %v374, 0
        %v539 = vsel %vm417, %v375, 0
        %v542 = vsel %vm417, %v376, 0
        %v545 = vsel %vm417, %v377, 0
        %v548 = vsel %vm417, %v378, 0
        %v551 = vsel %vm417, %v379, 0
        %v554 = vsel %vm417, %v380, 0
        %v557 = vsel %vm417, %v381, 0
        %v560 = vsel %vm417, %v382, 0
        %v563 = vsel %vm417, %v399, 0
        %v566 = vsel %vm417, %v400, 0
        %v569 = vsel %vm417, %v401, 0
        %v572 = vsel %vm417, %v402, 0
        %v575 = vsel %vm417, %v403, 0
        %v578 = vsel %vm417, %v404, 0
        %v581 = vsel %vm417, %v405, 0
        %v584 = vsel %vm417, %v406, 0
        %v587 = vsel %vm417, %v407, 0
        %v590 = vsel %vm417, %v408, 0
        %v593 = vsel %vm417, %v409, 0
        %v596 = vsel %vm417, %v410, 0
        %v599 = vsel %vm417, %v411, 0
        %v602 = vsel %vm417, %v412, 0
        %v605 = vsel %vm417, %v413, 0
        %v608 = vsel %vm417, %v414, 0
        %610 = vmatprep.subr.mxu0 0.0
        %v611 = vand.u32 %v415, 4294901760
        %612 = vmatpush1.msra.mxu0 %v611
        %613 = vmatprep.subr.mxu0 0.0
        %v614 = vand.u32 %v416, 4294901760
        %615 = vmatpush1.msra.mxu0 %v614
        %616 = vmatprep.subr.mxu0 0.0
        %617 = vmatpush1.msra.mxu0 0.0
        %618 = vmatprep.subr.mxu0 0.0
        %619 = vmatpush1.msra.mxu0 0.0
        %620 = vmatprep.subr.mxu0 0.0
        %621 = vmatpush1.msra.mxu0 0.0
        %622 = vmatprep.subr.mxu0 0.0
        %623 = vmatpush1.msra.mxu0 0.0
        %624 = vmatprep.subr.mxu0 0.0
        %625 = vmatpush1.msra.mxu0 0.0
        %626 = vmatprep.subr.mxu0 0.0
        %627 = vmatpush1.msra.mxu0 0.0
        %628 = vmatprep.subr.mxu0 0.0
        %629 = vmatpush1.msra.mxu0 0.0
        %630 = vmatprep.subr.mxu0 0.0
        %631 = vmatpush1.msra.mxu0 0.0
        %632 = vmatprep.subr.mxu0 0.0
        %633 = vmatpush1.msra.mxu0 0.0
        %634 = vmatprep.subr.mxu0 0.0
        %635 = vmatpush1.msra.mxu0 0.0
        %636 = vmatprep.subr.mxu0 0.0
        %637 = vmatpush1.msra.mxu0 0.0
        %638 = vmatprep.subr.mxu0 0.0
        %639 = vmatpush1.msra.mxu0 0.0
        %640 = vmatprep.subr.mxu0 0.0
        %641 = vmatpush1.msra.mxu0 0.0
        %642 = vmatprep.subr.mxu0 0.0
        %643 = vmatpush1.msra.mxu0 0.0
        %644 = vmatprep.subr.mxu0 0.0
        %645 = vmatpush1.msra.mxu0 0.0
        %646 = vmatprep.subr.mxu0 0.0
        %647 = vmatpush1.msra.mxu0 0.0
        %648 = vmatprep.subr.mxu0 0.0
        %649 = vmatpush1.msra.mxu0 0.0
        %650 = vmatprep.subr.mxu0 0.0
        %651 = vmatpush1.msra.mxu0 0.0
        %652 = vmatprep.subr.mxu0 0.0
        %653 = vmatpush1.msra.mxu0 0.0
        %654 = vmatprep.subr.mxu0 0.0
        %655 = vmatpush1.msra.mxu0 0.0
        %656 = vmatprep.subr.mxu0 0.0
        %657 = vmatpush1.msra.mxu0 0.0
        %658 = vmatprep.subr.mxu0 0.0
        %659 = vmatpush1.msra.mxu0 0.0
        %660 = vmatprep.subr.mxu0 0.0
        %661 = vmatpush1.msra.mxu0 0.0
        %662 = vmatprep.subr.mxu0 0.0
        %663 = vmatpush1.msra.mxu0 0.0
        %664 = vmatprep.subr.mxu0 0.0
        %665 = vmatpush1.msra.mxu0 0.0
        %666 = vmatprep.subr.mxu0 0.0
        %667 = vmatpush1.msra.mxu0 0.0
        %668 = vmatprep.subr.mxu0 0.0
        %669 = vmatpush1.msra.mxu0 0.0
        %670 = vmatprep.subr.mxu0 0.0
        %671 = vmatpush1.msra.mxu0 0.0
        %672 = vmatprep.subr.mxu0 0.0
        %673 = vmatpush1.msra.mxu0 0.0
        %674 = vmatprep.subr.mxu0 0.0
        %675 = vmatpush1.msra.mxu0 0.0
        %676 = vmatprep.mubr.f32.mxu0 0.0
        %v677 = vand.u32 %v419, 4294901760
        %v678 = vsub.f32 %v419, %v677
        %v679 = vand.u32 %v678, 4294901760
        %v680 = vsub.f32 %v678, %v679
        %v681 = vand.u32 %v680, 4294901760
        %682 = vmatmul.mubr.f32.gmra.mrb[0].mxu0 %v681
        %v683 = vpop.f32.mrb[0].mxu0
        %v684 = vadd.f32 0.0, %v683
        %v685 = vpop.f32.mrb[0].mxu0
        %686 = vmatprep.mubr.f32.mxu0 0.0
        %v687 = vand.u32 %v422, 4294901760
        %v688 = vsub.f32 %v422, %v687
        %v689 = vand.u32 %v688, 4294901760
        %v690 = vsub.f32 %v688, %v689
        %v691 = vand.u32 %v690, 4294901760
        %692 = vmatmul.mubr.f32.gmra.mrb[0].mxu0 %v691
        %v693 = vpop.f32.mrb[0].mxu0
        %v694 = vadd.f32 0.0, %v693
        %v695 = vpop.f32.mrb[0].mxu0
        %696 = vmatprep.mubr.f32.mxu0 0.0
        %v697 = vand.u32 %v425, 4294901760
        %v698 = vsub.f32 %v425, %v697
        %v699 = vand.u32 %v698, 4294901760
        %v700 = vsub.f32 %v698, %v699
        %v701 = vand.u32 %v700, 4294901760
        %702 = vmatmul.mubr.f32.gmra.mrb[0].mxu0 %v701
        %v703 = vpop.f32.mrb[0].mxu0
        %v704 = vadd.f32 0.0, %v703
        %v705 = vpop.f32.mrb[0].mxu0
        %706 = vmatprep.mubr.f32.mxu0 0.0
        %v707 = vand.u32 %v428, 4294901760
        %v708 = vsub.f32 %v428, %v707
        %v709 = vand.u32 %v708, 4294901760
        %v710 = vsub.f32 %v708, %v709
        %v711 = vand.u32 %v710, 4294901760
        %712 = vmatmul.mubr.f32.gmra.mrb[0].mxu0 %v711
        %v713 = vpop.f32.mrb[0].mxu0
        %v714 = vadd.f32 0.0, %v713
        %v715 = vpop.f32.mrb[0].mxu0
        %716 = vmatprep.mubr.f32.mxu0 0.0
        %v717 = vand.u32 %v431, 4294901760
        %v718 = vsub.f32 %v431, %v717
        %v719 = vand.u32 %v718, 4294901760
        %v720 = vsub.f32 %v718, %v719
        %v721 = vand.u32 %v720, 4294901760
        %722 = vmatmul.mubr.f32.gmra.mrb[0].mxu0 %v721
        %v723 = vpop.f32.mrb[0].mxu0
        %v724 = vadd.f32 0.0, %v723
        %v725 = vpop.f32.mrb[0].mxu0
        %726 = vmatprep.mubr.f32.mxu0 0.0
        %v727 = vand.u32 %v434, 4294901760
        %v728 = vsub.f32 %v434, %v727
        %v729 = vand.u32 %v728, 4294901760
        %v730 = vsub.f32 %v728, %v729
        %v731 = vand.u32 %v730, 4294901760
        %732 = vmatmul.mubr.f32.gmra.mrb[0].mxu0 %v731
        %v733 = vpop.f32.mrb[0].mxu0
        %v734 = vadd.f32 0.0, %v733
        %v735 = vpop.f32.mrb[0].mxu0
        %736 = vmatprep.mubr.f32.mxu0 0.0
        %v737 = vand.u32 %v437, 4294901760
        %v738 = vsub.f32 %v437, %v737
        %v739 = vand.u32 %v738, 4294901760
        %v740 = vsub.f32 %v738, %v739
        %v741 = vand.u32 %v740, 4294901760
        %742 = vmatmul.mubr.f32.gmra.mrb[0].mxu0 %v741
        %v743 = vpop.f32.mrb[0].mxu0
        %v744 = vadd.f32 0.0, %v743
        %v745 = vpop.f32.mrb[0].mxu0
        %746 = vmatprep.mubr.f32.mxu0 0.0
        %v747 = vand.u32 %v440, 4294901760
        %v748 = vsub.f32 %v440, %v747
        %v749 = vand.u32 %v748, 4294901760
        %v750 = vsub.f32 %v748, %v749
        %v751 = vand.u32 %v750, 4294901760
        %752 = vmatmul.mubr.f32.gmra.mrb[0].mxu0 %v751
        %v753 = vpop.f32.mrb[0].mxu0
        %v754 = vadd.f32 0.0, %v753
        %v755 = vpop.f32.mrb[0].mxu0
        %756 = vmatprep.mubr.f32.mxu0 0.0
        %v757 = vand.u32 %v443, 4294901760
        %v758 = vsub.f32 %v443, %v757
        %v759 = vand.u32 %v758, 4294901760
        %v760 = vsub.f32 %v758, %v759
        %v761 = vand.u32 %v760, 4294901760
        %762 = vmatmul.mubr.f32.gmra.mrb[0].mxu0 %v761
        %v763 = vpop.f32.mrb[0].mxu0
        %v764 = vadd.f32 0.0, %v763
        %v765 = vpop.f32.mrb[0].mxu0
        %766 = vmatprep.mubr.f32.mxu0 0.0
        %v767 = vand.u32 %v446, 4294901760
        %v768 = vsub.f32 %v446, %v767
        %v769 = vand.u32 %v768, 4294901760
        %v770 = vsub.f32 %v768, %v769
        %v771 = vand.u32 %v770, 4294901760
        %772 = vmatmul.mubr.f32.gmra.mrb[0].mxu0 %v771
        %v773 = vpop.f32.mrb[0].mxu0
        %v774 = vadd.f32 0.0, %v773
        %v775 = vpop.f32.mrb[0].mxu0
        %776 = vmatprep.mubr.f32.mxu0 0.0
        %v777 = vand.u32 %v449, 4294901760
        %v778 = vsub.f32 %v449, %v777
        %v779 = vand.u32 %v778, 4294901760
        %v780 = vsub.f32 %v778, %v779
        %v781 = vand.u32 %v780, 4294901760
        %782 = vmatmul.mubr.f32.gmra.mrb[0].mxu0 %v781
        %v783 = vpop.f32.mrb[0].mxu0
        %v784 = vadd.f32 0.0, %v783
        %v785 = vpop.f32.mrb[0].mxu0
        %786 = vmatprep.mubr.f32.mxu0 0.0
        %v787 = vand.u32 %v452, 4294901760
        %v788 = vsub.f32 %v452, %v787
        %v789 = vand.u32 %v788, 4294901760
        %v790 = vsub.f32 %v788, %v789
        %v791 = vand.u32 %v790, 4294901760
        %792 = vmatmul.mubr.f32.gmra.mrb[0].mxu0 %v791
        %v793 = vpop.f32.mrb[0].mxu0
        %v794 = vadd.f32 0.0, %v793
        %v795 = vpop.f32.mrb[0].mxu0
        %796 = vmatprep.mubr.f32.mxu0 0.0
        %v797 = vand.u32 %v455, 4294901760
        %v798 = vsub.f32 %v455, %v797
        %v799 = vand.u32 %v798, 4294901760
        %v800 = vsub.f32 %v798, %v799
        %v801 = vand.u32 %v800, 4294901760
        %802 = vmatmul.mubr.f32.gmra.mrb[0].mxu0 %v801
        %v803 = vpop.f32.mrb[0].mxu0
        %v804 = vadd.f32 0.0, %v803
        %v805 = vpop.f32.mrb[0].mxu0
        %806 = vmatprep.mubr.f32.mxu0 0.0
        %v807 = vand.u32 %v458, 4294901760
        %v808 = vsub.f32 %v458, %v807
        %v809 = vand.u32 %v808, 4294901760
        %v810 = vsub.f32 %v808, %v809
        %v811 = vand.u32 %v810, 4294901760
        %812 = vmatmul.mubr.f32.gmra.mrb[0].mxu0 %v811
        %v813 = vpop.f32.mrb[0].mxu0
        %v814 = vadd.f32 0.0, %v813
        %v815 = vpop.f32.mrb[0].mxu0
        %816 = vmatprep.mubr.f32.mxu0 0.0
        %v817 = vand.u32 %v461, 4294901760
        %v818 = vsub.f32 %v461, %v817
        %v819 = vand.u32 %v818, 4294901760
        %v820 = vsub.f32 %v818, %v819
        %v821 = vand.u32 %v820, 4294901760
        %822 = vmatmul.mubr.f32.gmra.mrb[0].mxu0 %v821
        %v823 = vpop.f32.mrb[0].mxu0
        %v824 = vadd.f32 0.0, %v823
        %v825 = vpop.f32.mrb[0].mxu0
        %826 = vmatprep.mubr.f32.mxu0 0.0
        %v827 = vand.u32 %v464, 4294901760
        %v828 = vsub.f32 %v464, %v827
        %v829 = vand.u32 %v828, 4294901760
        %v830 = vsub.f32 %v828, %v829
        %v831 = vand.u32 %v830, 4294901760
        %832 = vmatmul.mubr.f32.gmra.mrb[0].mxu0 %v831
        %v833 = vpop.f32.mrb[0].mxu0
        %v834 = vadd.f32 0.0, %v833
        %v835 = vpop.f32.mrb[0].mxu0
        %836 = vmatprep.mubr.f32.mxu0 0.0
        %v837 = vand.u32 %v467, 4294901760
        %v838 = vsub.f32 %v467, %v837
        %v839 = vand.u32 %v838, 4294901760
        %v840 = vsub.f32 %v838, %v839
        %v841 = vand.u32 %v840, 4294901760
        %842 = vmatmul.mubr.f32.gmra.mrb[0].mxu0 %v841
        %v843 = vpop.f32.mrb[0].mxu0
        %v844 = vadd.f32 0.0, %v843
        %v845 = vpop.f32.mrb[0].mxu0
        %846 = vmatprep.mubr.f32.mxu0 0.0
        %v847 = vand.u32 %v470, 4294901760
        %v848 = vsub.f32 %v470, %v847
        %v849 = vand.u32 %v848, 4294901760
        %v850 = vsub.f32 %v848, %v849
        %v851 = vand.u32 %v850, 4294901760
        %852 = vmatmul.mubr.f32.gmra.mrb[0].mxu0 %v851
        %v853 = vpop.f32.mrb[0].mxu0
        %v854 = vadd.f32 0.0, %v853
        %v855 = vpop.f32.mrb[0].mxu0
        %856 = vmatprep.mubr.f32.mxu0 0.0
        %v857 = vand.u32 %v473, 4294901760
        %v858 = vsub.f32 %v473, %v857
        %v859 = vand.u32 %v858, 4294901760
        %v860 = vsub.f32 %v858, %v859
        %v861 = vand.u32 %v860, 4294901760
        %862 = vmatmul.mubr.f32.gmra.mrb[0].mxu0 %v861
        %v863 = vpop.f32.mrb[0].mxu0
        %v864 = vadd.f32 0.0, %v863
        %v865 = vpop.f32.mrb[0].mxu0
        %866 = vmatprep.mubr.f32.mxu0 0.0
        %v867 = vand.u32 %v476, 4294901760
        %v868 = vsub.f32 %v476, %v867
        %v869 = vand.u32 %v868, 4294901760
        %v870 = vsub.f32 %v868, %v869
        %v871 = vand.u32 %v870, 4294901760
        %872 = vmatmul.mubr.f32.gmra.mrb[0].mxu0 %v871
        %v873 = vpop.f32.mrb[0].mxu0
        %v874 = vadd.f32 0.0, %v873
        %v875 = vpop.f32.mrb[0].mxu0
        %876 = vmatprep.mubr.f32.mxu0 0.0
        %v877 = vand.u32 %v479, 4294901760
        %v878 = vsub.f32 %v479, %v877
        %v879 = vand.u32 %v878, 4294901760
        %v880 = vsub.f32 %v878, %v879
        %v881 = vand.u32 %v880, 4294901760
        %882 = vmatmul.mubr.f32.gmra.mrb[0].mxu0 %v881
        %v883 = vpop.f32.mrb[0].mxu0
        %v884 = vadd.f32 0.0, %v883
        %v885 = vpop.f32.mrb[0].mxu0
        %886 = vmatprep.mubr.f32.mxu0 0.0
        %v887 = vand.u32 %v482, 4294901760
        %v888 = vsub.f32 %v482, %v887
        %v889 = vand.u32 %v888, 4294901760
        %v890 = vsub.f32 %v888, %v889
        %v891 = vand.u32 %v890, 4294901760
        %892 = vmatmul.mubr.f32.gmra.mrb[0].mxu0 %v891
        %v893 = vpop.f32.mrb[0].mxu0
        %v894 = vadd.f32 0.0, %v893
        %v895 = vpop.f32.mrb[0].mxu0
        %896 = vmatprep.mubr.f32.mxu0 0.0
        %v897 = vand.u32 %v485, 4294901760
        %v898 = vsub.f32 %v485, %v897
        %v899 = vand.u32 %v898, 4294901760
        %v900 = vsub.f32 %v898, %v899
        %v901 = vand.u32 %v900, 4294901760
        %902 = vmatmul.mubr.f32.gmra.mrb[0].mxu0 %v901
        %v903 = vpop.f32.mrb[0].mxu0
        %v904 = vadd.f32 0.0, %v903
        %v905 = vpop.f32.mrb[0].mxu0
        %906 = vmatprep.mubr.f32.mxu0 0.0
        %v907 = vand.u32 %v488, 4294901760
        %v908 = vsub.f32 %v488, %v907
        %v909 = vand.u32 %v908, 4294901760
        %v910 = vsub.f32 %v908, %v909
        %v911 = vand.u32 %v910, 4294901760
        %912 = vmatmul.mubr.f32.gmra.mrb[0].mxu0 %v911
        %v913 = vpop.f32.mrb[0].mxu0
        %v914 = vadd.f32 0.0, %v913
        %v915 = vpop.f32.mrb[0].mxu0
        %916 = vmatprep.mubr.f32.mxu0 0.0
        %v917 = vand.u32 %v491, 4294901760
        %v918 = vsub.f32 %v491, %v917
        %v919 = vand.u32 %v918, 4294901760
        %v920 = vsub.f32 %v918, %v919
        %v921 = vand.u32 %v920, 4294901760
        %922 = vmatmul.mubr.f32.gmra.mrb[0].mxu0 %v921
        %v923 = vpop.f32.mrb[0].mxu0
        %v924 = vadd.f32 0.0, %v923
        %v925 = vpop.f32.mrb[0].mxu0
        %926 = vmatprep.mubr.f32.mxu0 0.0
        %v927 = vand.u32 %v494, 4294901760
        %v928 = vsub.f32 %v494, %v927
        %v929 = vand.u32 %v928, 4294901760
        %v930 = vsub.f32 %v928, %v929
        %v931 = vand.u32 %v930, 4294901760
        %932 = vmatmul.mubr.f32.gmra.mrb[0].mxu0 %v931
        %v933 = vpop.f32.mrb[0].mxu0
        %v934 = vadd.f32 0.0, %v933
        %v935 = vpop.f32.mrb[0].mxu0
        %936 = vmatprep.mubr.f32.mxu0 0.0
        %v937 = vand.u32 %v497, 4294901760
        %v938 = vsub.f32 %v497, %v937
        %v939 = vand.u32 %v938, 4294901760
        %v940 = vsub.f32 %v938, %v939
        %v941 = vand.u32 %v940, 4294901760
        %942 = vmatmul.mubr.f32.gmra.mrb[0].mxu0 %v941
        %v943 = vpop.f32.mrb[0].mxu0
        %v944 = vadd.f32 0.0, %v943
        %v945 = vpop.f32.mrb[0].mxu0
        %946 = vmatprep.mubr.f32.mxu0 0.0
        %v947 = vand.u32 %v500, 4294901760
        %v948 = vsub.f32 %v500, %v947
        %v949 = vand.u32 %v948, 4294901760
        %v950 = vsub.f32 %v948, %v949
        %v951 = vand.u32 %v950, 4294901760
        %952 = vmatmul.mubr.f32.gmra.mrb[0].mxu0 %v951
        %v953 = vpop.f32.mrb[0].mxu0
        %v954 = vadd.f32 0.0, %v953
        %v955 = vpop.f32.mrb[0].mxu0
        %956 = vmatprep.mubr.f32.mxu0 0.0
        %v957 = vand.u32 %v503, 4294901760
        %v958 = vsub.f32 %v503, %v957
        %v959 = vand.u32 %v958, 4294901760
        %v960 = vsub.f32 %v958, %v959
        %v961 = vand.u32 %v960, 4294901760
        %962 = vmatmul.mubr.f32.gmra.mrb[0].mxu0 %v961
        %v963 = vpop.f32.mrb[0].mxu0
        %v964 = vadd.f32 0.0, %v963
        %v965 = vpop.f32.mrb[0].mxu0
        %966 = vmatprep.mubr.f32.mxu0 0.0
        %v967 = vand.u32 %v506, 4294901760
        %v968 = vsub.f32 %v506, %v967
        %v969 = vand.u32 %v968, 4294901760
        %v970 = vsub.f32 %v968, %v969
        %v971 = vand.u32 %v970, 4294901760
        %972 = vmatmul.mubr.f32.gmra.mrb[0].mxu0 %v971
        %v973 = vpop.f32.mrb[0].mxu0
        %v974 = vadd.f32 0.0, %v973
        %v975 = vpop.f32.mrb[0].mxu0
        %976 = vmatprep.mubr.f32.mxu0 0.0
        %v977 = vand.u32 %v509, 4294901760
        %v978 = vsub.f32 %v509, %v977
        %v979 = vand.u32 %v978, 4294901760
        %v980 = vsub.f32 %v978, %v979
        %v981 = vand.u32 %v980, 4294901760
        %982 = vmatmul.mubr.f32.gmra.mrb[0].mxu0 %v981
        %v983 = vpop.f32.mrb[0].mxu0
        %v984 = vadd.f32 0.0, %v983
        %v985 = vpop.f32.mrb[0].mxu0
        %986 = vmatprep.mubr.f32.mxu0 0.0
        %v987 = vand.u32 %v512, 4294901760
        %v988 = vsub.f32 %v512, %v987
        %v989 = vand.u32 %v988, 4294901760
        %v990 = vsub.f32 %v988, %v989
        %v991 = vand.u32 %v990, 4294901760
        %992 = vmatmul.mubr.f32.gmra.mrb[0].mxu0 %v991
        %v993 = vpop.f32.mrb[0].mxu0
        %v994 = vadd.f32 0.0, %v993
        %v995 = vpop.f32.mrb[0].mxu0
        %996 = vmatprep.mubr.f32.mxu0 0.0
        %v997 = vand.u32 %v515, 4294901760
        %v998 = vsub.f32 %v515, %v997
        %v999 = vand.u32 %v998, 4294901760
        %v1000 = vsub.f32 %v998, %v999
        %v1001 = vand.u32 %v1000, 4294901760
        %1002 = vmatmul.mubr.f32.gmra.mrb[0].mxu0 %v1001
        %v1003 = vpop.f32.mrb[0].mxu0
        %v1004 = vadd.f32 0.0, %v1003
        %v1005 = vpop.f32.mrb[0].mxu0
        %1006 = vmatprep.mubr.f32.mxu0 0.0
        %v1007 = vand.u32 %v518, 4294901760
        %v1008 = vsub.f32 %v518, %v1007
        %v1009 = vand.u32 %v1008, 4294901760
        %v1010 = vsub.f32 %v1008, %v1009
        %v1011 = vand.u32 %v1010, 4294901760
        %1012 = vmatmul.mubr.f32.gmra.mrb[0].mxu0 %v1011
        %v1013 = vpop.f32.mrb[0].mxu0
        %v1014 = vadd.f32 0.0, %v1013
        %v1015 = vpop.f32.mrb[0].mxu0
        %1016 = vmatprep.mubr.f32.mxu0 0.0
        %v1017 = vand.u32 %v521, 4294901760
        %v1018 = vsub.f32 %v521, %v1017
        %v1019 = vand.u32 %v1018, 4294901760
        %v1020 = vsub.f32 %v1018, %v1019
        %v1021 = vand.u32 %v1020, 4294901760
        %1022 = vmatmul.mubr.f32.gmra.mrb[0].mxu0 %v1021
        %v1023 = vpop.f32.mrb[0].mxu0
        %v1024 = vadd.f32 0.0, %v1023
        %v1025 = vpop.f32.mrb[0].mxu0
        %1026 = vmatprep.mubr.f32.mxu0 0.0
        %v1027 = vand.u32 %v524, 4294901760
        %v1028 = vsub.f32 %v524, %v1027
        %v1029 = vand.u32 %v1028, 4294901760
        %v1030 = vsub.f32 %v1028, %v1029
        %v1031 = vand.u32 %v1030, 4294901760
        %1032 = vmatmul.mubr.f32.gmra.mrb[0].mxu0 %v1031
        %v1033 = vpop.f32.mrb[0].mxu0
        %v1034 = vadd.f32 0.0, %v1033
        %v1035 = vpop.f32.mrb[0].mxu0
        %1036 = vmatprep.mubr.f32.mxu0 0.0
        %v1037 = vand.u32 %v527, 4294901760
        %v1038 = vsub.f32 %v527, %v1037
        %v1039 = vand.u32 %v1038, 4294901760
        %v1040 = vsub.f32 %v1038, %v1039
        %v1041 = vand.u32 %v1040, 4294901760
        %1042 = vmatmul.mubr.f32.gmra.mrb[0].mxu0 %v1041
        %v1043 = vpop.f32.mrb[0].mxu0
        %v1044 = vadd.f32 0.0, %v1043
        %v1045 = vpop.f32.mrb[0].mxu0
        %1046 = vmatprep.mubr.f32.mxu0 0.0
        %v1047 = vand.u32 %v530, 4294901760
        %v1048 = vsub.f32 %v530, %v1047
        %v1049 = vand.u32 %v1048, 4294901760
        %v1050 = vsub.f32 %v1048, %v1049
        %v1051 = vand.u32 %v1050, 4294901760
        %1052 = vmatmul.mubr.f32.gmra.mrb[0].mxu0 %v1051
        %v1053 = vpop.f32.mrb[0].mxu0
        %v1054 = vadd.f32 0.0, %v1053
        %v1055 = vpop.f32.mrb[0].mxu0
        %1056 = vmatprep.mubr.f32.mxu0 0.0
        %v1057 = vand.u32 %v533, 4294901760
        %v1058 = vsub.f32 %v533, %v1057
        %v1059 = vand.u32 %v1058, 4294901760
        %v1060 = vsub.f32 %v1058, %v1059
        %v1061 = vand.u32 %v1060, 4294901760
        %1062 = vmatmul.mubr.f32.gmra.mrb[0].mxu0 %v1061
        %v1063 = vpop.f32.mrb[0].mxu0
        %v1064 = vadd.f32 0.0, %v1063
        %v1065 = vpop.f32.mrb[0].mxu0
        %1066 = vmatprep.mubr.f32.mxu0 0.0
        %v1067 = vand.u32 %v536, 4294901760
        %v1068 = vsub.f32 %v536, %v1067
        %v1069 = vand.u32 %v1068, 4294901760
        %v1070 = vsub.f32 %v1068, %v1069
        %v1071 = vand.u32 %v1070, 4294901760
        %1072 = vmatmul.mubr.f32.gmra.mrb[0].mxu0 %v1071
        %v1073 = vpop.f32.mrb[0].mxu0
        %v1074 = vadd.f32 0.0, %v1073
        %v1075 = vpop.f32.mrb[0].mxu0
        %1076 = vmatprep.mubr.f32.mxu0 0.0
        %v1077 = vand.u32 %v539, 4294901760
        %v1078 = vsub.f32 %v539, %v1077
        %v1079 = vand.u32 %v1078, 4294901760
        %v1080 = vsub.f32 %v1078, %v1079
        %v1081 = vand.u32 %v1080, 4294901760
        %1082 = vmatmul.mubr.f32.gmra.mrb[0].mxu0 %v1081
        %v1083 = vpop.f32.mrb[0].mxu0
        %v1084 = vadd.f32 0.0, %v1083
        %v1085 = vpop.f32.mrb[0].mxu0
        %1086 = vmatprep.mubr.f32.mxu0 0.0
        %v1087 = vand.u32 %v542, 4294901760
        %v1088 = vsub.f32 %v542, %v1087
        %v1089 = vand.u32 %v1088, 4294901760
        %v1090 = vsub.f32 %v1088, %v1089
        %v1091 = vand.u32 %v1090, 4294901760
        %1092 = vmatmul.mubr.f32.gmra.mrb[0].mxu0 %v1091
        %v1093 = vpop.f32.mrb[0].mxu0
        %v1094 = vadd.f32 0.0, %v1093
        %v1095 = vpop.f32.mrb[0].mxu0
        %1096 = vmatprep.mubr.f32.mxu0 0.0
        %v1097 = vand.u32 %v545, 4294901760
        %v1098 = vsub.f32 %v545, %v1097
        %v1099 = vand.u32 %v1098, 4294901760
        %v1100 = vsub.f32 %v1098, %v1099
        %v1101 = vand.u32 %v1100, 4294901760
        %1102 = vmatmul.mubr.f32.gmra.mrb[0].mxu0 %v1101
        %v1103 = vpop.f32.mrb[0].mxu0
        %v1104 = vadd.f32 0.0, %v1103
        %v1105 = vpop.f32.mrb[0].mxu0
        %1106 = vmatprep.mubr.f32.mxu0 0.0
        %v1107 = vand.u32 %v548, 4294901760
        %v1108 = vsub.f32 %v548, %v1107
        %v1109 = vand.u32 %v1108, 4294901760
        %v1110 = vsub.f32 %v1108, %v1109
        %v1111 = vand.u32 %v1110, 4294901760
        %1112 = vmatmul.mubr.f32.gmra.mrb[0].mxu0 %v1111
        %v1113 = vpop.f32.mrb[0].mxu0
        %v1114 = vadd.f32 0.0, %v1113
        %v1115 = vpop.f32.mrb[0].mxu0
        %1116 = vmatprep.mubr.f32.mxu0 0.0
        %v1117 = vand.u32 %v551, 4294901760
        %v1118 = vsub.f32 %v551, %v1117
        %v1119 = vand.u32 %v1118, 4294901760
        %v1120 = vsub.f32 %v1118, %v1119
        %v1121 = vand.u32 %v1120, 4294901760
        %1122 = vmatmul.mubr.f32.gmra.mrb[0].mxu0 %v1121
        %v1123 = vpop.f32.mrb[0].mxu0
        %v1124 = vadd.f32 0.0, %v1123
        %v1125 = vpop.f32.mrb[0].mxu0
        %1126 = vmatprep.mubr.f32.mxu0 0.0
        %v1127 = vand.u32 %v554, 4294901760
        %v1128 = vsub.f32 %v554, %v1127
        %v1129 = vand.u32 %v1128, 4294901760
        %v1130 = vsub.f32 %v1128, %v1129
        %v1131 = vand.u32 %v1130, 4294901760
        %1132 = vmatmul.mubr.f32.gmra.mrb[0].mxu0 %v1131
        %v1133 = vpop.f32.mrb[0].mxu0
        %v1134 = vadd.f32 0.0, %v1133
        %v1135 = vpop.f32.mrb[0].mxu0
        %1136 = vmatprep.mubr.f32.mxu0 0.0
        %v1137 = vand.u32 %v557, 4294901760
        %v1138 = vsub.f32 %v557, %v1137
        %v1139 = vand.u32 %v1138, 4294901760
        %v1140 = vsub.f32 %v1138, %v1139
        %v1141 = vand.u32 %v1140, 4294901760
        %1142 = vmatmul.mubr.f32.gmra.mrb[0].mxu0 %v1141
        %v1143 = vpop.f32.mrb[0].mxu0
        %v1144 = vadd.f32 0.0, %v1143
        %v1145 = vpop.f32.mrb[0].mxu0
        %1146 = vmatprep.mubr.f32.mxu0 0.0
        %v1147 = vand.u32 %v560, 4294901760
        %v1148 = vsub.f32 %v560, %v1147
        %v1149 = vand.u32 %v1148, 4294901760
        %v1150 = vsub.f32 %v1148, %v1149
        %v1151 = vand.u32 %v1150, 4294901760
        %1152 = vmatmul.mubr.f32.gmra.mrb[0].mxu0 %v1151
        %v1153 = vpop.f32.mrb[0].mxu0
        %v1154 = vadd.f32 0.0, %v1153
        %v1155 = vpop.f32.mrb[0].mxu0
        %1156 = vmatprep.mubr.f32.mxu0 0.0
        %v1157 = vand.u32 %v563, 4294901760
        %v1158 = vsub.f32 %v563, %v1157
        %v1159 = vand.u32 %v1158, 4294901760
        %v1160 = vsub.f32 %v1158, %v1159
        %v1161 = vand.u32 %v1160, 4294901760
        %1162 = vmatmul.mubr.f32.gmra.mrb[0].mxu0 %v1161
        %v1163 = vpop.f32.mrb[0].mxu0
        %v1164 = vadd.f32 0.0, %v1163
        %v1165 = vpop.f32.mrb[0].mxu0
        %1166 = vmatprep.mubr.f32.mxu0 0.0
        %v1167 = vand.u32 %v566, 4294901760
        %v1168 = vsub.f32 %v566, %v1167
        %v1169 = vand.u32 %v1168, 4294901760
        %v1170 = vsub.f32 %v1168, %v1169
        %v1171 = vand.u32 %v1170, 4294901760
        %1172 = vmatmul.mubr.f32.gmra.mrb[0].mxu0 %v1171
        %v1173 = vpop.f32.mrb[0].mxu0
        %v1174 = vadd.f32 0.0, %v1173
        %v1175 = vpop.f32.mrb[0].mxu0
        %1176 = vmatprep.mubr.f32.mxu0 0.0
        %v1177 = vand.u32 %v569, 4294901760
        %v1178 = vsub.f32 %v569, %v1177
        %v1179 = vand.u32 %v1178, 4294901760
        %v1180 = vsub.f32 %v1178, %v1179
        %v1181 = vand.u32 %v1180, 4294901760
        %1182 = vmatmul.mubr.f32.gmra.mrb[0].mxu0 %v1181
        %v1183 = vpop.f32.mrb[0].mxu0
        %v1184 = vadd.f32 0.0, %v1183
        %v1185 = vpop.f32.mrb[0].mxu0
        %1186 = vmatprep.mubr.f32.mxu0 0.0
        %v1187 = vand.u32 %v572, 4294901760
        %v1188 = vsub.f32 %v572, %v1187
        %v1189 = vand.u32 %v1188, 4294901760
        %v1190 = vsub.f32 %v1188, %v1189
        %v1191 = vand.u32 %v1190, 4294901760
        %1192 = vmatmul.mubr.f32.gmra.mrb[0].mxu0 %v1191
        %v1193 = vpop.f32.mrb[0].mxu0
        %v1194 = vadd.f32 0.0, %v1193
        %v1195 = vpop.f32.mrb[0].mxu0
        %1196 = vmatprep.mubr.f32.mxu0 0.0
        %v1197 = vand.u32 %v575, 4294901760
        %v1198 = vsub.f32 %v575, %v1197
        %v1199 = vand.u32 %v1198, 4294901760
        %v1200 = vsub.f32 %v1198, %v1199
        %v1201 = vand.u32 %v1200, 4294901760
        %1202 = vmatmul.mubr.f32.gmra.mrb[0].mxu0 %v1201
        %v1203 = vpop.f32.mrb[0].mxu0
        %v1204 = vadd.f32 0.0, %v1203
        %v1205 = vpop.f32.mrb[0].mxu0
        %1206 = vmatprep.mubr.f32.mxu0 0.0
        %v1207 = vand.u32 %v578, 4294901760
        %v1208 = vsub.f32 %v578, %v1207
        %v1209 = vand.u32 %v1208, 4294901760
        %v1210 = vsub.f32 %v1208, %v1209
        %v1211 = vand.u32 %v1210, 4294901760
        %1212 = vmatmul.mubr.f32.gmra.mrb[0].mxu0 %v1211
        %v1213 = vpop.f32.mrb[0].mxu0
        %v1214 = vadd.f32 0.0, %v1213
        %v1215 = vpop.f32.mrb[0].mxu0
        %1216 = vmatprep.mubr.f32.mxu0 0.0
        %v1217 = vand.u32 %v581, 4294901760
        %v1218 = vsub.f32 %v581, %v1217
        %v1219 = vand.u32 %v1218, 4294901760
        %v1220 = vsub.f32 %v1218, %v1219
        %v1221 = vand.u32 %v1220, 4294901760
        %1222 = vmatmul.mubr.f32.gmra.mrb[0].mxu0 %v1221
        %v1223 = vpop.f32.mrb[0].mxu0
        %v1224 = vadd.f32 0.0, %v1223
        %v1225 = vpop.f32.mrb[0].mxu0
        %1226 = vmatprep.mubr.f32.mxu0 0.0
        %v1227 = vand.u32 %v584, 4294901760
        %v1228 = vsub.f32 %v584, %v1227
        %v1229 = vand.u32 %v1228, 4294901760
        %v1230 = vsub.f32 %v1228, %v1229
        %v1231 = vand.u32 %v1230, 4294901760
        %1232 = vmatmul.mubr.f32.gmra.mrb[0].mxu0 %v1231
        %v1233 = vpop.f32.mrb[0].mxu0
        %v1234 = vadd.f32 0.0, %v1233
        %v1235 = vpop.f32.mrb[0].mxu0
        %1236 = vmatprep.mubr.f32.mxu0 0.0
        %v1237 = vand.u32 %v587, 4294901760
        %v1238 = vsub.f32 %v587, %v1237
        %v1239 = vand.u32 %v1238, 4294901760
        %v1240 = vsub.f32 %v1238, %v1239
        %v1241 = vand.u32 %v1240, 4294901760
        %1242 = vmatmul.mubr.f32.gmra.mrb[0].mxu0 %v1241
        %v1243 = vpop.f32.mrb[0].mxu0
        %v1244 = vadd.f32 0.0, %v1243
        %v1245 = vpop.f32.mrb[0].mxu0
        %1246 = vmatprep.mubr.f32.mxu0 0.0
        %v1247 = vand.u32 %v590, 4294901760
        %v1248 = vsub.f32 %v590, %v1247
        %v1249 = vand.u32 %v1248, 4294901760
        %v1250 = vsub.f32 %v1248, %v1249
        %v1251 = vand.u32 %v1250, 4294901760
        %1252 = vmatmul.mubr.f32.gmra.mrb[0].mxu0 %v1251
        %v1253 = vpop.f32.mrb[0].mxu0
        %v1254 = vadd.f32 0.0, %v1253
        %v1255 = vpop.f32.mrb[0].mxu0
        %1256 = vmatprep.mubr.f32.mxu0 0.0
        %v1257 = vand.u32 %v593, 4294901760
        %v1258 = vsub.f32 %v593, %v1257
        %v1259 = vand.u32 %v1258, 4294901760
        %v1260 = vsub.f32 %v1258, %v1259
        %v1261 = vand.u32 %v1260, 4294901760
        %1262 = vmatmul.mubr.f32.gmra.mrb[0].mxu0 %v1261
        %v1263 = vpop.f32.mrb[0].mxu0
        %v1264 = vadd.f32 0.0, %v1263
        %v1265 = vpop.f32.mrb[0].mxu0
        %1266 = vmatprep.mubr.f32.mxu0 0.0
        %v1267 = vand.u32 %v596, 4294901760
        %v1268 = vsub.f32 %v596, %v1267
        %v1269 = vand.u32 %v1268, 4294901760
        %v1270 = vsub.f32 %v1268, %v1269
        %v1271 = vand.u32 %v1270, 4294901760
        %1272 = vmatmul.mubr.f32.gmra.mrb[0].mxu0 %v1271
        %v1273 = vpop.f32.mrb[0].mxu0
        %v1274 = vadd.f32 0.0, %v1273
        %v1275 = vpop.f32.mrb[0].mxu0
        %1276 = vmatprep.mubr.f32.mxu0 0.0
        %v1277 = vand.u32 %v599, 4294901760
        %v1278 = vsub.f32 %v599, %v1277
        %v1279 = vand.u32 %v1278, 4294901760
        %v1280 = vsub.f32 %v1278, %v1279
        %v1281 = vand.u32 %v1280, 4294901760
        %1282 = vmatmul.mubr.f32.gmra.mrb[0].mxu0 %v1281
        %v1283 = vpop.f32.mrb[0].mxu0
        %v1284 = vadd.f32 0.0, %v1283
        %v1285 = vpop.f32.mrb[0].mxu0
        %1286 = vmatprep.mubr.f32.mxu0 0.0
        %v1287 = vand.u32 %v602, 4294901760
        %v1288 = vsub.f32 %v602, %v1287
        %v1289 = vand.u32 %v1288, 4294901760
        %v1290 = vsub.f32 %v1288, %v1289
        %v1291 = vand.u32 %v1290, 4294901760
        %1292 = vmatmul.mubr.f32.gmra.mrb[0].mxu0 %v1291
        %v1293 = vpop.f32.mrb[0].mxu0
        %v1294 = vadd.f32 0.0, %v1293
        %v1295 = vpop.f32.mrb[0].mxu0
        %1296 = vmatprep.mubr.f32.mxu0 0.0
        %v1297 = vand.u32 %v605, 4294901760
        %v1298 = vsub.f32 %v605, %v1297
        %v1299 = vand.u32 %v1298, 4294901760
        %v1300 = vsub.f32 %v1298, %v1299
        %v1301 = vand.u32 %v1300, 4294901760
        %1302 = vmatmul.mubr.f32.gmra.mrb[0].mxu0 %v1301
        %v1303 = vpop.f32.mrb[0].mxu0
        %v1304 = vadd.f32 0.0, %v1303
        %v1305 = vpop.f32.mrb[0].mxu0
        %1306 = vmatprep.mubr.f32.mxu0 0.0
        %v1307 = vand.u32 %v608, 4294901760
        %v1308 = vsub.f32 %v608, %v1307
        %v1309 = vand.u32 %v1308, 4294901760
        %v1310 = vsub.f32 %v1308, %v1309
        %v1311 = vand.u32 %v1310, 4294901760
        %1312 = vmatmul.mubr.f32.gmra.mrb[0].mxu0 %v1311
        %v1313 = vpop.f32.mrb[0].mxu0
        %v1314 = vadd.f32 0.0, %v1313
        %v1315 = vpop.f32.mrb[0].mxu0
        %1316 = vdwg.mxu0
        %1317 = vmatprep.subr.mxu0 0.0
        %v1318 = vand.u32 %v415, 4294901760
        %v1319 = vsub.f32 %v415, %v1318
        %v1320 = vand.u32 %v1319, 4294901760
        %v1321 = vsub.f32 %v1319, %v1320
        %v1322 = vand.u32 %v1321, 4294901760
        %1323 = vmatpush1.msra.mxu0 %v1322
        %1324 = vmatprep.subr.mxu0 0.0
        %v1325 = vand.u32 %v416, 4294901760
        %v1326 = vsub.f32 %v416, %v1325
        %v1327 = vand.u32 %v1326, 4294901760
        %v1328 = vsub.f32 %v1326, %v1327
        %v1329 = vand.u32 %v1328, 4294901760
        %1330 = vmatpush1.msra.mxu0 %v1329
        %1331 = vmatprep.subr.mxu0 0.0
        %1332 = vmatpush1.msra.mxu0 0.0
        %1333 = vmatprep.subr.mxu0 0.0
        %1334 = vmatpush1.msra.mxu0 0.0
        %1335 = vmatprep.subr.mxu0 0.0
        %1336 = vmatpush1.msra.mxu0 0.0
        %1337 = vmatprep.subr.mxu0 0.0
        %1338 = vmatpush1.msra.mxu0 0.0
        %1339 = vmatprep.subr.mxu0 0.0
        %1340 = vmatpush1.msra.mxu0 0.0
        %1341 = vmatprep.subr.mxu0 0.0
        %1342 = vmatpush1.msra.mxu0 0.0
        %1343 = vmatprep.subr.mxu0 0.0
        %1344 = vmatpush1.msra.mxu0 0.0
        %1345 = vmatprep.subr.mxu0 0.0
        %1346 = vmatpush1.msra.mxu0 0.0
        %1347 = vmatprep.subr.mxu0 0.0
        %1348 = vmatpush1.msra.mxu0 0.0
        %1349 = vmatprep.subr.mxu0 0.0
        %1350 = vmatpush1.msra.mxu0 0.0
        %1351 = vmatprep.subr.mxu0 0.0
        %1352 = vmatpush1.msra.mxu0 0.0
        %1353 = vmatprep.subr.mxu0 0.0
        %1354 = vmatpush1.msra.mxu0 0.0
        %1355 = vmatprep.subr.mxu0 0.0
        %1356 = vmatpush1.msra.mxu0 0.0
        %1357 = vmatprep.subr.mxu0 0.0
        %1358 = vmatpush1.msra.mxu0 0.0
        %1359 = vmatprep.subr.mxu0 0.0
        %1360 = vmatpush1.msra.mxu0 0.0
        %1361 = vmatprep.subr.mxu0 0.0
        %1362 = vmatpush1.msra.mxu0 0.0
        %1363 = vmatprep.subr.mxu0 0.0
        %1364 = vmatpush1.msra.mxu0 0.0
        %1365 = vmatprep.subr.mxu0 0.0
        %1366 = vmatpush1.msra.mxu0 0.0
        %1367 = vmatprep.subr.mxu0 0.0
        %1368 = vmatpush1.msra.mxu0 0.0
        %1369 = vmatprep.subr.mxu0 0.0
        %1370 = vmatpush1.msra.mxu0 0.0
        %1371 = vmatprep.subr.mxu0 0.0
        %1372 = vmatpush1.msra.mxu0 0.0
        %1373 = vmatprep.subr.mxu0 0.0
        %1374 = vmatpush1.msra.mxu0 0.0
        %1375 = vmatprep.subr.mxu0 0.0
        %1376 = vmatpush1.msra.mxu0 0.0
        %1377 = vmatprep.subr.mxu0 0.0
        %1378 = vmatpush1.msra.mxu0 0.0
        %1379 = vmatprep.subr.mxu0 0.0
        %1380 = vmatpush1.msra.mxu0 0.0
        %1381 = vmatprep.subr.mxu0 0.0
        %1382 = vmatpush1.msra.mxu0 0.0
        %1383 = vmatprep.subr.mxu0 0.0
        %1384 = vmatpush1.msra.mxu0 0.0
        %1385 = vmatprep.subr.mxu0 0.0
        %1386 = vmatpush1.msra.mxu0 0.0
        %1387 = vmatprep.subr.mxu0 0.0
        %1388 = vmatpush1.msra.mxu0 0.0
        %1389 = vmatprep.subr.mxu0 0.0
        %1390 = vmatpush1.msra.mxu0 0.0
        %1391 = vmatprep.mubr.f32.mxu0 0.0
        %v1392 = vand.u32 %v419, 4294901760
        %1393 = vmatmul.mubr.f32.gmra.mrb[0].mxu0 %v1392
        %v1394 = vpop.f32.mrb[0].mxu0
        %v1395 = vadd.f32 %v684, %v1394
        %v1396 = vpop.f32.mrb[0].mxu0
        %1397 = vmatprep.mubr.f32.mxu0 0.0
        %v1398 = vand.u32 %v422, 4294901760
        %1399 = vmatmul.mubr.f32.gmra.mrb[0].mxu0 %v1398
        %v1400 = vpop.f32.mrb[0].mxu0
        %v1401 = vadd.f32 %v694, %v1400
        %v1402 = vpop.f32.mrb[0].mxu0
        %1403 = vmatprep.mubr.f32.mxu0 0.0
        %v1404 = vand.u32 %v425, 4294901760
        %1405 = vmatmul.mubr.f32.gmra.mrb[0].mxu0 %v1404
        %v1406 = vpop.f32.mrb[0].mxu0
        %v1407 = vadd.f32 %v704, %v1406
        %v1408 = vpop.f32.mrb[0].mxu0
        %1409 = vmatprep.mubr.f32.mxu0 0.0
        %v1410 = vand.u32 %v428, 4294901760
        %1411 = vmatmul.mubr.f32.gmra.mrb[0].mxu0 %v1410
        %v1412 = vpop.f32.mrb[0].mxu0
        %v1413 = vadd.f32 %v714, %v1412
        %v1414 = vpop.f32.mrb[0].mxu0
        %1415 = vmatprep.mubr.f32.mxu0 0.0
        %v1416 = vand.u32 %v431, 4294901760
        %1417 = vmatmul.mubr.f32.gmra.mrb[0].mxu0 %v1416
        %v1418 = vpop.f32.mrb[0].mxu0
        %v1419 = vadd.f32 %v724, %v1418
        %v1420 = vpop.f32.mrb[0].mxu0
        %1421 = vmatprep.mubr.f32.mxu0 0.0
        %v1422 = vand.u32 %v434, 4294901760
        %1423 = vmatmul.mubr.f32.gmra.mrb[0].mxu0 %v1422
        %v1424 = vpop.f32.mrb[0].mxu0
        %v1425 = vadd.f32 %v734, %v1424
        %v1426 = vpop.f32.mrb[0].mxu0
        %1427 = vmatprep.mubr.f32.mxu0 0.0
        %v1428 = vand.u32 %v437, 4294901760
        %1429 = vmatmul.mubr.f32.gmra.mrb[0].mxu0 %v1428
        %v1430 = vpop.f32.mrb[0].mxu0
        %v1431 = vadd.f32 %v744, %v1430
        %v1432 = vpop.f32.mrb[0].mxu0
        %1433 = vmatprep.mubr.f32.mxu0 0.0
        %v1434 = vand.u32 %v440, 4294901760
        %1435 = vmatmul.mubr.f32.gmra.mrb[0].mxu0 %v1434
        %v1436 = vpop.f32.mrb[0].mxu0
        %v1437 = vadd.f32 %v754, %v1436
        %v1438 = vpop.f32.mrb[0].mxu0
        %1439 = vmatprep.mubr.f32.mxu0 0.0
        %v1440 = vand.u32 %v443, 4294901760
        %1441 = vmatmul.mubr.f32.gmra.mrb[0].mxu0 %v1440
        %v1442 = vpop.f32.mrb[0].mxu0
        %v1443 = vadd.f32 %v764, %v1442
        %v1444 = vpop.f32.mrb[0].mxu0
        %1445 = vmatprep.mubr.f32.mxu0 0.0
        %v1446 = vand.u32 %v446, 4294901760
        %1447 = vmatmul.mubr.f32.gmra.mrb[0].mxu0 %v1446
        %v1448 = vpop.f32.mrb[0].mxu0
        %v1449 = vadd.f32 %v774, %v1448
        %v1450 = vpop.f32.mrb[0].mxu0
        %1451 = vmatprep.mubr.f32.mxu0 0.0
        %v1452 = vand.u32 %v449, 4294901760
        %1453 = vmatmul.mubr.f32.gmra.mrb[0].mxu0 %v1452
        %v1454 = vpop.f32.mrb[0].mxu0
        %v1455 = vadd.f32 %v784, %v1454
        %v1456 = vpop.f32.mrb[0].mxu0
        %1457 = vmatprep.mubr.f32.mxu0 0.0
        %v1458 = vand.u32 %v452, 4294901760
        %1459 = vmatmul.mubr.f32.gmra.mrb[0].mxu0 %v1458
        %v1460 = vpop.f32.mrb[0].mxu0
        %v1461 = vadd.f32 %v794, %v1460
        %v1462 = vpop.f32.mrb[0].mxu0
        %1463 = vmatprep.mubr.f32.mxu0 0.0
        %v1464 = vand.u32 %v455, 4294901760
        %1465 = vmatmul.mubr.f32.gmra.mrb[0].mxu0 %v1464
        %v1466 = vpop.f32.mrb[0].mxu0
        %v1467 = vadd.f32 %v804, %v1466
        %v1468 = vpop.f32.mrb[0].mxu0
        %1469 = vmatprep.mubr.f32.mxu0 0.0
        %v1470 = vand.u32 %v458, 4294901760
        %1471 = vmatmul.mubr.f32.gmra.mrb[0].mxu0 %v1470
        %v1472 = vpop.f32.mrb[0].mxu0
        %v1473 = vadd.f32 %v814, %v1472
        %v1474 = vpop.f32.mrb[0].mxu0
        %1475 = vmatprep.mubr.f32.mxu0 0.0
        %v1476 = vand.u32 %v461, 4294901760
        %1477 = vmatmul.mubr.f32.gmra.mrb[0].mxu0 %v1476
        %v1478 = vpop.f32.mrb[0].mxu0
        %v1479 = vadd.f32 %v824, %v1478
        %v1480 = vpop.f32.mrb[0].mxu0
        %1481 = vmatprep.mubr.f32.mxu0 0.0
        %v1482 = vand.u32 %v464, 4294901760
        %1483 = vmatmul.mubr.f32.gmra.mrb[0].mxu0 %v1482
        %v1484 = vpop.f32.mrb[0].mxu0
        %v1485 = vadd.f32 %v834, %v1484
        %v1486 = vpop.f32.mrb[0].mxu0
        %1487 = vmatprep.mubr.f32.mxu0 0.0
        %v1488 = vand.u32 %v467, 4294901760
        %1489 = vmatmul.mubr.f32.gmra.mrb[0].mxu0 %v1488
        %v1490 = vpop.f32.mrb[0].mxu0
        %v1491 = vadd.f32 %v844, %v1490
        %v1492 = vpop.f32.mrb[0].mxu0
        %1493 = vmatprep.mubr.f32.mxu0 0.0
        %v1494 = vand.u32 %v470, 4294901760
        %1495 = vmatmul.mubr.f32.gmra.mrb[0].mxu0 %v1494
        %v1496 = vpop.f32.mrb[0].mxu0
        %v1497 = vadd.f32 %v854, %v1496
        %v1498 = vpop.f32.mrb[0].mxu0
        %1499 = vmatprep.mubr.f32.mxu0 0.0
        %v1500 = vand.u32 %v473, 4294901760
        %1501 = vmatmul.mubr.f32.gmra.mrb[0].mxu0 %v1500
        %v1502 = vpop.f32.mrb[0].mxu0
        %v1503 = vadd.f32 %v864, %v1502
        %v1504 = vpop.f32.mrb[0].mxu0
        %1505 = vmatprep.mubr.f32.mxu0 0.0
        %v1506 = vand.u32 %v476, 4294901760
        %1507 = vmatmul.mubr.f32.gmra.mrb[0].mxu0 %v1506
        %v1508 = vpop.f32.mrb[0].mxu0
        %v1509 = vadd.f32 %v874, %v1508
        %v1510 = vpop.f32.mrb[0].mxu0
        %1511 = vmatprep.mubr.f32.mxu0 0.0
        %v1512 = vand.u32 %v479, 4294901760
        %1513 = vmatmul.mubr.f32.gmra.mrb[0].mxu0 %v1512
        %v1514 = vpop.f32.mrb[0].mxu0
        %v1515 = vadd.f32 %v884, %v1514
        %v1516 = vpop.f32.mrb[0].mxu0
        %1517 = vmatprep.mubr.f32.mxu0 0.0
        %v1518 = vand.u32 %v482, 4294901760
        %1519 = vmatmul.mubr.f32.gmra.mrb[0].mxu0 %v1518
        %v1520 = vpop.f32.mrb[0].mxu0
        %v1521 = vadd.f32 %v894, %v1520
        %v1522 = vpop.f32.mrb[0].mxu0
        %1523 = vmatprep.mubr.f32.mxu0 0.0
        %v1524 = vand.u32 %v485, 4294901760
        %1525 = vmatmul.mubr.f32.gmra.mrb[0].mxu0 %v1524
        %v1526 = vpop.f32.mrb[0].mxu0
        %v1527 = vadd.f32 %v904, %v1526
        %v1528 = vpop.f32.mrb[0].mxu0
        %1529 = vmatprep.mubr.f32.mxu0 0.0
        %v1530 = vand.u32 %v488, 4294901760
        %1531 = vmatmul.mubr.f32.gmra.mrb[0].mxu0 %v1530
        %v1532 = vpop.f32.mrb[0].mxu0
        %v1533 = vadd.f32 %v914, %v1532
        %v1534 = vpop.f32.mrb[0].mxu0
        %1535 = vmatprep.mubr.f32.mxu0 0.0
        %v1536 = vand.u32 %v491, 4294901760
        %1537 = vmatmul.mubr.f32.gmra.mrb[0].mxu0 %v1536
        %v1538 = vpop.f32.mrb[0].mxu0
        %v1539 = vadd.f32 %v924, %v1538
        %v1540 = vpop.f32.mrb[0].mxu0
        %1541 = vmatprep.mubr.f32.mxu0 0.0
        %v1542 = vand.u32 %v494, 4294901760
        %1543 = vmatmul.mubr.f32.gmra.mrb[0].mxu0 %v1542
        %v1544 = vpop.f32.mrb[0].mxu0
        %v1545 = vadd.f32 %v934, %v1544
        %v1546 = vpop.f32.mrb[0].mxu0
        %1547 = vmatprep.mubr.f32.mxu0 0.0
        %v1548 = vand.u32 %v497, 4294901760
        %1549 = vmatmul.mubr.f32.gmra.mrb[0].mxu0 %v1548
        %v1550 = vpop.f32.mrb[0].mxu0
        %v1551 = vadd.f32 %v944, %v1550
        %v1552 = vpop.f32.mrb[0].mxu0
        %1553 = vmatprep.mubr.f32.mxu0 0.0
        %v1554 = vand.u32 %v500, 4294901760
        %1555 = vmatmul.mubr.f32.gmra.mrb[0].mxu0 %v1554
        %v1556 = vpop.f32.mrb[0].mxu0
        %v1557 = vadd.f32 %v954, %v1556
        %v1558 = vpop.f32.mrb[0].mxu0
        %1559 = vmatprep.mubr.f32.mxu0 0.0
        %v1560 = vand.u32 %v503, 4294901760
        %1561 = vmatmul.mubr.f32.gmra.mrb[0].mxu0 %v1560
        %v1562 = vpop.f32.mrb[0].mxu0
        %v1563 = vadd.f32 %v964, %v1562
        %v1564 = vpop.f32.mrb[0].mxu0
        %1565 = vmatprep.mubr.f32.mxu0 0.0
        %v1566 = vand.u32 %v506, 4294901760
        %1567 = vmatmul.mubr.f32.gmra.mrb[0].mxu0 %v1566
        %v1568 = vpop.f32.mrb[0].mxu0
        %v1569 = vadd.f32 %v974, %v1568
        %v1570 = vpop.f32.mrb[0].mxu0
        %1571 = vmatprep.mubr.f32.mxu0 0.0
        %v1572 = vand.u32 %v509, 4294901760
        %1573 = vmatmul.mubr.f32.gmra.mrb[0].mxu0 %v1572
        %v1574 = vpop.f32.mrb[0].mxu0
        %v1575 = vadd.f32 %v984, %v1574
        %v1576 = vpop.f32.mrb[0].mxu0
        %1577 = vmatprep.mubr.f32.mxu0 0.0
        %v1578 = vand.u32 %v512, 4294901760
        %1579 = vmatmul.mubr.f32.gmra.mrb[0].mxu0 %v1578
        %v1580 = vpop.f32.mrb[0].mxu0
        %v1581 = vadd.f32 %v994, %v1580
        %v1582 = vpop.f32.mrb[0].mxu0
        %1583 = vmatprep.mubr.f32.mxu0 0.0
        %v1584 = vand.u32 %v515, 4294901760
        %1585 = vmatmul.mubr.f32.gmra.mrb[0].mxu0 %v1584
        %v1586 = vpop.f32.mrb[0].mxu0
        %v1587 = vadd.f32 %v1004, %v1586
        %v1588 = vpop.f32.mrb[0].mxu0
        %1589 = vmatprep.mubr.f32.mxu0 0.0
        %v1590 = vand.u32 %v518, 4294901760
        %1591 = vmatmul.mubr.f32.gmra.mrb[0].mxu0 %v1590
        %v1592 = vpop.f32.mrb[0].mxu0
        %v1593 = vadd.f32 %v1014, %v1592
        %v1594 = vpop.f32.mrb[0].mxu0
        %1595 = vmatprep.mubr.f32.mxu0 0.0
        %v1596 = vand.u32 %v521, 4294901760
        %1597 = vmatmul.mubr.f32.gmra.mrb[0].mxu0 %v1596
        %v1598 = vpop.f32.mrb[0].mxu0
        %v1599 = vadd.f32 %v1024, %v1598
        %v1600 = vpop.f32.mrb[0].mxu0
        %1601 = vmatprep.mubr.f32.mxu0 0.0
        %v1602 = vand.u32 %v524, 4294901760
        %1603 = vmatmul.mubr.f32.gmra.mrb[0].mxu0 %v1602
        %v1604 = vpop.f32.mrb[0].mxu0
        %v1605 = vadd.f32 %v1034, %v1604
        %v1606 = vpop.f32.mrb[0].mxu0
        %1607 = vmatprep.mubr.f32.mxu0 0.0
        %v1608 = vand.u32 %v527, 4294901760
        %1609 = vmatmul.mubr.f32.gmra.mrb[0].mxu0 %v1608
        %v1610 = vpop.f32.mrb[0].mxu0
        %v1611 = vadd.f32 %v1044, %v1610
        %v1612 = vpop.f32.mrb[0].mxu0
        %1613 = vmatprep.mubr.f32.mxu0 0.0
        %v1614 = vand.u32 %v530, 4294901760
        %1615 = vmatmul.mubr.f32.gmra.mrb[0].mxu0 %v1614
        %v1616 = vpop.f32.mrb[0].mxu0
        %v1617 = vadd.f32 %v1054, %v1616
        %v1618 = vpop.f32.mrb[0].mxu0
        %1619 = vmatprep.mubr.f32.mxu0 0.0
        %v1620 = vand.u32 %v533, 4294901760
        %1621 = vmatmul.mubr.f32.gmra.mrb[0].mxu0 %v1620
        %v1622 = vpop.f32.mrb[0].mxu0
        %v1623 = vadd.f32 %v1064, %v1622
        %v1624 = vpop.f32.mrb[0].mxu0
        %1625 = vmatprep.mubr.f32.mxu0 0.0
        %v1626 = vand.u32 %v536, 4294901760
        %1627 = vmatmul.mubr.f32.gmra.mrb[0].mxu0 %v1626
        %v1628 = vpop.f32.mrb[0].mxu0
        %v1629 = vadd.f32 %v1074, %v1628
        %v1630 = vpop.f32.mrb[0].mxu0
        %1631 = vmatprep.mubr.f32.mxu0 0.0
        %v1632 = vand.u32 %v539, 4294901760
        %1633 = vmatmul.mubr.f32.gmra.mrb[0].mxu0 %v1632
        %v1634 = vpop.f32.mrb[0].mxu0
        %v1635 = vadd.f32 %v1084, %v1634
        %v1636 = vpop.f32.mrb[0].mxu0
        %1637 = vmatprep.mubr.f32.mxu0 0.0
        %v1638 = vand.u32 %v542, 4294901760
        %1639 = vmatmul.mubr.f32.gmra.mrb[0].mxu0 %v1638
        %v1640 = vpop.f32.mrb[0].mxu0
        %v1641 = vadd.f32 %v1094, %v1640
        %v1642 = vpop.f32.mrb[0].mxu0
        %1643 = vmatprep.mubr.f32.mxu0 0.0
        %v1644 = vand.u32 %v545, 4294901760
        %1645 = vmatmul.mubr.f32.gmra.mrb[0].mxu0 %v1644
        %v1646 = vpop.f32.mrb[0].mxu0
        %v1647 = vadd.f32 %v1104, %v1646
        %v1648 = vpop.f32.mrb[0].mxu0
        %1649 = vmatprep.mubr.f32.mxu0 0.0
        %v1650 = vand.u32 %v548, 4294901760
        %1651 = vmatmul.mubr.f32.gmra.mrb[0].mxu0 %v1650
        %v1652 = vpop.f32.mrb[0].mxu0
        %v1653 = vadd.f32 %v1114, %v1652
        %v1654 = vpop.f32.mrb[0].mxu0
        %1655 = vmatprep.mubr.f32.mxu0 0.0
        %v1656 = vand.u32 %v551, 4294901760
        %1657 = vmatmul.mubr.f32.gmra.mrb[0].mxu0 %v1656
        %v1658 = vpop.f32.mrb[0].mxu0
        %v1659 = vadd.f32 %v1124, %v1658
        %v1660 = vpop.f32.mrb[0].mxu0
        %1661 = vmatprep.mubr.f32.mxu0 0.0
        %v1662 = vand.u32 %v554, 4294901760
        %1663 = vmatmul.mubr.f32.gmra.mrb[0].mxu0 %v1662
        %v1664 = vpop.f32.mrb[0].mxu0
        %v1665 = vadd.f32 %v1134, %v1664
        %v1666 = vpop.f32.mrb[0].mxu0
        %1667 = vmatprep.mubr.f32.mxu0 0.0
        %v1668 = vand.u32 %v557, 4294901760
        %1669 = vmatmul.mubr.f32.gmra.mrb[0].mxu0 %v1668
        %v1670 = vpop.f32.mrb[0].mxu0
        %v1671 = vadd.f32 %v1144, %v1670
        %v1672 = vpop.f32.mrb[0].mxu0
        %1673 = vmatprep.mubr.f32.mxu0 0.0
        %v1674 = vand.u32 %v560, 4294901760
        %1675 = vmatmul.mubr.f32.gmra.mrb[0].mxu0 %v1674
        %v1676 = vpop.f32.mrb[0].mxu0
        %v1677 = vadd.f32 %v1154, %v1676
        %v1678 = vpop.f32.mrb[0].mxu0
        %1679 = vmatprep.mubr.f32.mxu0 0.0
        %v1680 = vand.u32 %v563, 4294901760
        %1681 = vmatmul.mubr.f32.gmra.mrb[0].mxu0 %v1680
        %v1682 = vpop.f32.mrb[0].mxu0
        %v1683 = vadd.f32 %v1164, %v1682
        %v1684 = vpop.f32.mrb[0].mxu0
        %1685 = vmatprep.mubr.f32.mxu0 0.0
        %v1686 = vand.u32 %v566, 4294901760
        %1687 = vmatmul.mubr.f32.gmra.mrb[0].mxu0 %v1686
        %v1688 = vpop.f32.mrb[0].mxu0
        %v1689 = vadd.f32 %v1174, %v1688
        %v1690 = vpop.f32.mrb[0].mxu0
        %1691 = vmatprep.mubr.f32.mxu0 0.0
        %v1692 = vand.u32 %v569, 4294901760
        %1693 = vmatmul.mubr.f32.gmra.mrb[0].mxu0 %v1692
        %v1694 = vpop.f32.mrb[0].mxu0
        %v1695 = vadd.f32 %v1184, %v1694
        %v1696 = vpop.f32.mrb[0].mxu0
        %1697 = vmatprep.mubr.f32.mxu0 0.0
        %v1698 = vand.u32 %v572, 4294901760
        %1699 = vmatmul.mubr.f32.gmra.mrb[0].mxu0 %v1698
        %v1700 = vpop.f32.mrb[0].mxu0
        %v1701 = vadd.f32 %v1194, %v1700
        %v1702 = vpop.f32.mrb[0].mxu0
        %1703 = vmatprep.mubr.f32.mxu0 0.0
        %v1704 = vand.u32 %v575, 4294901760
        %1705 = vmatmul.mubr.f32.gmra.mrb[0].mxu0 %v1704
        %v1706 = vpop.f32.mrb[0].mxu0
        %v1707 = vadd.f32 %v1204, %v1706
        %v1708 = vpop.f32.mrb[0].mxu0
        %1709 = vmatprep.mubr.f32.mxu0 0.0
        %v1710 = vand.u32 %v578, 4294901760
        %1711 = vmatmul.mubr.f32.gmra.mrb[0].mxu0 %v1710
        %v1712 = vpop.f32.mrb[0].mxu0
        %v1713 = vadd.f32 %v1214, %v1712
        %v1714 = vpop.f32.mrb[0].mxu0
        %1715 = vmatprep.mubr.f32.mxu0 0.0
        %v1716 = vand.u32 %v581, 4294901760
        %1717 = vmatmul.mubr.f32.gmra.mrb[0].mxu0 %v1716
        %v1718 = vpop.f32.mrb[0].mxu0
        %v1719 = vadd.f32 %v1224, %v1718
        %v1720 = vpop.f32.mrb[0].mxu0
        %1721 = vmatprep.mubr.f32.mxu0 0.0
        %v1722 = vand.u32 %v584, 4294901760
        %1723 = vmatmul.mubr.f32.gmra.mrb[0].mxu0 %v1722
        %v1724 = vpop.f32.mrb[0].mxu0
        %v1725 = vadd.f32 %v1234, %v1724
        %v1726 = vpop.f32.mrb[0].mxu0
        %1727 = vmatprep.mubr.f32.mxu0 0.0
        %v1728 = vand.u32 %v587, 4294901760
        %1729 = vmatmul.mubr.f32.gmra.mrb[0].mxu0 %v1728
        %v1730 = vpop.f32.mrb[0].mxu0
        %v1731 = vadd.f32 %v1244, %v1730
        %v1732 = vpop.f32.mrb[0].mxu0
        %1733 = vmatprep.mubr.f32.mxu0 0.0
        %v1734 = vand.u32 %v590, 4294901760
        %1735 = vmatmul.mubr.f32.gmra.mrb[0].mxu0 %v1734
        %v1736 = vpop.f32.mrb[0].mxu0
        %v1737 = vadd.f32 %v1254, %v1736
        %v1738 = vpop.f32.mrb[0].mxu0
        %1739 = vmatprep.mubr.f32.mxu0 0.0
        %v1740 = vand.u32 %v593, 4294901760
        %1741 = vmatmul.mubr.f32.gmra.mrb[0].mxu0 %v1740
        %v1742 = vpop.f32.mrb[0].mxu0
        %v1743 = vadd.f32 %v1264, %v1742
        %v1744 = vpop.f32.mrb[0].mxu0
        %1745 = vmatprep.mubr.f32.mxu0 0.0
        %v1746 = vand.u32 %v596, 4294901760
        %1747 = vmatmul.mubr.f32.gmra.mrb[0].mxu0 %v1746
        %v1748 = vpop.f32.mrb[0].mxu0
        %v1749 = vadd.f32 %v1274, %v1748
        %v1750 = vpop.f32.mrb[0].mxu0
        %1751 = vmatprep.mubr.f32.mxu0 0.0
        %v1752 = vand.u32 %v599, 4294901760
        %1753 = vmatmul.mubr.f32.gmra.mrb[0].mxu0 %v1752
        %v1754 = vpop.f32.mrb[0].mxu0
        %v1755 = vadd.f32 %v1284, %v1754
        %v1756 = vpop.f32.mrb[0].mxu0
        %1757 = vmatprep.mubr.f32.mxu0 0.0
        %v1758 = vand.u32 %v602, 4294901760
        %1759 = vmatmul.mubr.f32.gmra.mrb[0].mxu0 %v1758
        %v1760 = vpop.f32.mrb[0].mxu0
        %v1761 = vadd.f32 %v1294, %v1760
        %v1762 = vpop.f32.mrb[0].mxu0
        %1763 = vmatprep.mubr.f32.mxu0 0.0
        %v1764 = vand.u32 %v605, 4294901760
        %1765 = vmatmul.mubr.f32.gmra.mrb[0].mxu0 %v1764
        %v1766 = vpop.f32.mrb[0].mxu0
        %v1767 = vadd.f32 %v1304, %v1766
        %v1768 = vpop.f32.mrb[0].mxu0
        %1769 = vmatprep.mubr.f32.mxu0 0.0
        %v1770 = vand.u32 %v608, 4294901760
        %1771 = vmatmul.mubr.f32.gmra.mrb[0].mxu0 %v1770
        %v1772 = vpop.f32.mrb[0].mxu0
        %v1773 = vadd.f32 %v1314, %v1772
        %v1774 = vpop.f32.mrb[0].mxu0
        %1775 = vdwg.mxu0
        %1776 = vmatprep.subr.mxu0 0.0
        %v1777 = vand.u32 %v415, 4294901760
        %v1778 = vsub.f32 %v415, %v1777
        %1779 = vmatpush1.msra.mxu0 %v1778
        %1780 = vmatprep.subr.mxu0 0.0
        %v1781 = vand.u32 %v416, 4294901760
        %v1782 = vsub.f32 %v416, %v1781
        %1783 = vmatpush1.msra.mxu0 %v1782
        %1784 = vmatprep.subr.mxu0 0.0
        %1785 = vmatpush1.msra.mxu0 0.0
        %1786 = vmatprep.subr.mxu0 0.0
        %1787 = vmatpush1.msra.mxu0 0.0
        %1788 = vmatprep.subr.mxu0 0.0
        %1789 = vmatpush1.msra.mxu0 0.0
        %1790 = vmatprep.subr.mxu0 0.0
        %1791 = vmatpush1.msra.mxu0 0.0
        %1792 = vmatprep.subr.mxu0 0.0
        %1793 = vmatpush1.msra.mxu0 0.0
        %1794 = vmatprep.subr.mxu0 0.0
        %1795 = vmatpush1.msra.mxu0 0.0
        %1796 = vmatprep.subr.mxu0 0.0
        %1797 = vmatpush1.msra.mxu0 0.0
        %1798 = vmatprep.subr.mxu0 0.0
        %1799 = vmatpush1.msra.mxu0 0.0
        %1800 = vmatprep.subr.mxu0 0.0
        %1801 = vmatpush1.msra.mxu0 0.0
        %1802 = vmatprep.subr.mxu0 0.0
        %1803 = vmatpush1.msra.mxu0 0.0
        %1804 = vmatprep.subr.mxu0 0.0
        %1805 = vmatpush1.msra.mxu0 0.0
        %1806 = vmatprep.subr.mxu0 0.0
        %1807 = vmatpush1.msra.mxu0 0.0
        %1808 = vmatprep.subr.mxu0 0.0
        %1809 = vmatpush1.msra.mxu0 0.0
        %1810 = vmatprep.subr.mxu0 0.0
        %1811 = vmatpush1.msra.mxu0 0.0
        %1812 = vmatprep.subr.mxu0 0.0
        %1813 = vmatpush1.msra.mxu0 0.0
        %1814 = vmatprep.subr.mxu0 0.0
        %1815 = vmatpush1.msra.mxu0 0.0
        %1816 = vmatprep.subr.mxu0 0.0
        %1817 = vmatpush1.msra.mxu0 0.0
        %1818 = vmatprep.subr.mxu0 0.0
        %1819 = vmatpush1.msra.mxu0 0.0
        %1820 = vmatprep.subr.mxu0 0.0
        %1821 = vmatpush1.msra.mxu0 0.0
        %1822 = vmatprep.subr.mxu0 0.0
        %1823 = vmatpush1.msra.mxu0 0.0
        %1824 = vmatprep.subr.mxu0 0.0
        %1825 = vmatpush1.msra.mxu0 0.0
        %1826 = vmatprep.subr.mxu0 0.0
        %1827 = vmatpush1.msra.mxu0 0.0
        %1828 = vmatprep.subr.mxu0 0.0
        %1829 = vmatpush1.msra.mxu0 0.0
        %1830 = vmatprep.subr.mxu0 0.0
        %1831 = vmatpush1.msra.mxu0 0.0
        %1832 = vmatprep.subr.mxu0 0.0
        %1833 = vmatpush1.msra.mxu0 0.0
        %1834 = vmatprep.subr.mxu0 0.0
        %1835 = vmatpush1.msra.mxu0 0.0
        %1836 = vmatprep.subr.mxu0 0.0
        %1837 = vmatpush1.msra.mxu0 0.0
        %1838 = vmatprep.subr.mxu0 0.0
        %1839 = vmatpush1.msra.mxu0 0.0
        %1840 = vmatprep.subr.mxu0 0.0
        %1841 = vmatpush1.msra.mxu0 0.0
        %1842 = vmatprep.subr.mxu0 0.0
        %1843 = vmatpush1.msra.mxu0 0.0
        %1844 = vmatprep.mubr.f32.mxu0 0.0
        %v1845 = vand.u32 %v419, 4294901760
        %v1846 = vsub.f32 %v419, %v1845
        %1847 = vmatmul.mubr.f32.gmra.mrb[0].mxu0 %v1846
        %v1848 = vpop.f32.mrb[0].mxu0
        %v1849 = vadd.f32 %v1395, %v1848
        %v1850 = vpop.f32.mrb[0].mxu0
        %1851 = vmatprep.mubr.f32.mxu0 0.0
        %v1852 = vand.u32 %v422, 4294901760
        %v1853 = vsub.f32 %v422, %v1852
        %1854 = vmatmul.mubr.f32.gmra.mrb[0].mxu0 %v1853
        %v1855 = vpop.f32.mrb[0].mxu0
        %v1856 = vadd.f32 %v1401, %v1855
        %v1857 = vpop.f32.mrb[0].mxu0
        %1858 = vmatprep.mubr.f32.mxu0 0.0
        %v1859 = vand.u32 %v425, 4294901760
        %v1860 = vsub.f32 %v425, %v1859
        %1861 = vmatmul.mubr.f32.gmra.mrb[0].mxu0 %v1860
        %v1862 = vpop.f32.mrb[0].mxu0
        %v1863 = vadd.f32 %v1407, %v1862
        %v1864 = vpop.f32.mrb[0].mxu0
        %1865 = vmatprep.mubr.f32.mxu0 0.0
        %v1866 = vand.u32 %v428, 4294901760
        %v1867 = vsub.f32 %v428, %v1866
        %1868 = vmatmul.mubr.f32.gmra.mrb[0].mxu0 %v1867
        %v1869 = vpop.f32.mrb[0].mxu0
        %v1870 = vadd.f32 %v1413, %v1869
        %v1871 = vpop.f32.mrb[0].mxu0
        %1872 = vmatprep.mubr.f32.mxu0 0.0
        %v1873 = vand.u32 %v431, 4294901760
        %v1874 = vsub.f32 %v431, %v1873
        %1875 = vmatmul.mubr.f32.gmra.mrb[0].mxu0 %v1874
        %v1876 = vpop.f32.mrb[0].mxu0
        %v1877 = vadd.f32 %v1419, %v1876
        %v1878 = vpop.f32.mrb[0].mxu0
        %1879 = vmatprep.mubr.f32.mxu0 0.0
        %v1880 = vand.u32 %v434, 4294901760
        %v1881 = vsub.f32 %v434, %v1880
        %1882 = vmatmul.mubr.f32.gmra.mrb[0].mxu0 %v1881
        %v1883 = vpop.f32.mrb[0].mxu0
        %v1884 = vadd.f32 %v1425, %v1883
        %v1885 = vpop.f32.mrb[0].mxu0
        %1886 = vmatprep.mubr.f32.mxu0 0.0
        %v1887 = vand.u32 %v437, 4294901760
        %v1888 = vsub.f32 %v437, %v1887
        %1889 = vmatmul.mubr.f32.gmra.mrb[0].mxu0 %v1888
        %v1890 = vpop.f32.mrb[0].mxu0
        %v1891 = vadd.f32 %v1431, %v1890
        %v1892 = vpop.f32.mrb[0].mxu0
        %1893 = vmatprep.mubr.f32.mxu0 0.0
        %v1894 = vand.u32 %v440, 4294901760
        %v1895 = vsub.f32 %v440, %v1894
        %1896 = vmatmul.mubr.f32.gmra.mrb[0].mxu0 %v1895
        %v1897 = vpop.f32.mrb[0].mxu0
        %v1898 = vadd.f32 %v1437, %v1897
        %v1899 = vpop.f32.mrb[0].mxu0
        %1900 = vmatprep.mubr.f32.mxu0 0.0
        %v1901 = vand.u32 %v443, 4294901760
        %v1902 = vsub.f32 %v443, %v1901
        %1903 = vmatmul.mubr.f32.gmra.mrb[0].mxu0 %v1902
        %v1904 = vpop.f32.mrb[0].mxu0
        %v1905 = vadd.f32 %v1443, %v1904
        %v1906 = vpop.f32.mrb[0].mxu0
        %1907 = vmatprep.mubr.f32.mxu0 0.0
        %v1908 = vand.u32 %v446, 4294901760
        %v1909 = vsub.f32 %v446, %v1908
        %1910 = vmatmul.mubr.f32.gmra.mrb[0].mxu0 %v1909
        %v1911 = vpop.f32.mrb[0].mxu0
        %v1912 = vadd.f32 %v1449, %v1911
        %v1913 = vpop.f32.mrb[0].mxu0
        %1914 = vmatprep.mubr.f32.mxu0 0.0
        %v1915 = vand.u32 %v449, 4294901760
        %v1916 = vsub.f32 %v449, %v1915
        %1917 = vmatmul.mubr.f32.gmra.mrb[0].mxu0 %v1916
        %v1918 = vpop.f32.mrb[0].mxu0
        %v1919 = vadd.f32 %v1455, %v1918
        %v1920 = vpop.f32.mrb[0].mxu0
        %1921 = vmatprep.mubr.f32.mxu0 0.0
        %v1922 = vand.u32 %v452, 4294901760
        %v1923 = vsub.f32 %v452, %v1922
        %1924 = vmatmul.mubr.f32.gmra.mrb[0].mxu0 %v1923
        %v1925 = vpop.f32.mrb[0].mxu0
        %v1926 = vadd.f32 %v1461, %v1925
        %v1927 = vpop.f32.mrb[0].mxu0
        %1928 = vmatprep.mubr.f32.mxu0 0.0
        %v1929 = vand.u32 %v455, 4294901760
        %v1930 = vsub.f32 %v455, %v1929
        %1931 = vmatmul.mubr.f32.gmra.mrb[0].mxu0 %v1930
        %v1932 = vpop.f32.mrb[0].mxu0
        %v1933 = vadd.f32 %v1467, %v1932
        %v1934 = vpop.f32.mrb[0].mxu0
        %1935 = vmatprep.mubr.f32.mxu0 0.0
        %v1936 = vand.u32 %v458, 4294901760
        %v1937 = vsub.f32 %v458, %v1936
        %1938 = vmatmul.mubr.f32.gmra.mrb[0].mxu0 %v1937
        %v1939 = vpop.f32.mrb[0].mxu0
        %v1940 = vadd.f32 %v1473, %v1939
        %v1941 = vpop.f32.mrb[0].mxu0
        %1942 = vmatprep.mubr.f32.mxu0 0.0
        %v1943 = vand.u32 %v461, 4294901760
        %v1944 = vsub.f32 %v461, %v1943
        %1945 = vmatmul.mubr.f32.gmra.mrb[0].mxu0 %v1944
        %v1946 = vpop.f32.mrb[0].mxu0
        %v1947 = vadd.f32 %v1479, %v1946
        %v1948 = vpop.f32.mrb[0].mxu0
        %1949 = vmatprep.mubr.f32.mxu0 0.0
        %v1950 = vand.u32 %v464, 4294901760
        %v1951 = vsub.f32 %v464, %v1950
        %1952 = vmatmul.mubr.f32.gmra.mrb[0].mxu0 %v1951
        %v1953 = vpop.f32.mrb[0].mxu0
        %v1954 = vadd.f32 %v1485, %v1953
        %v1955 = vpop.f32.mrb[0].mxu0
        %1956 = vmatprep.mubr.f32.mxu0 0.0
        %v1957 = vand.u32 %v467, 4294901760
        %v1958 = vsub.f32 %v467, %v1957
        %1959 = vmatmul.mubr.f32.gmra.mrb[0].mxu0 %v1958
        %v1960 = vpop.f32.mrb[0].mxu0
        %v1961 = vadd.f32 %v1491, %v1960
        %v1962 = vpop.f32.mrb[0].mxu0
        %1963 = vmatprep.mubr.f32.mxu0 0.0
        %v1964 = vand.u32 %v470, 4294901760
        %v1965 = vsub.f32 %v470, %v1964
        %1966 = vmatmul.mubr.f32.gmra.mrb[0].mxu0 %v1965
        %v1967 = vpop.f32.mrb[0].mxu0
        %v1968 = vadd.f32 %v1497, %v1967
        %v1969 = vpop.f32.mrb[0].mxu0
        %1970 = vmatprep.mubr.f32.mxu0 0.0
        %v1971 = vand.u32 %v473, 4294901760
        %v1972 = vsub.f32 %v473, %v1971
        %1973 = vmatmul.mubr.f32.gmra.mrb[0].mxu0 %v1972
        %v1974 = vpop.f32.mrb[0].mxu0
        %v1975 = vadd.f32 %v1503, %v1974
        %v1976 = vpop.f32.mrb[0].mxu0
        %1977 = vmatprep.mubr.f32.mxu0 0.0
        %v1978 = vand.u32 %v476, 4294901760
        %v1979 = vsub.f32 %v476, %v1978
        %1980 = vmatmul.mubr.f32.gmra.mrb[0].mxu0 %v1979
        %v1981 = vpop.f32.mrb[0].mxu0
        %v1982 = vadd.f32 %v1509, %v1981
        %v1983 = vpop.f32.mrb[0].mxu0
        %1984 = vmatprep.mubr.f32.mxu0 0.0
        %v1985 = vand.u32 %v479, 4294901760
        %v1986 = vsub.f32 %v479, %v1985
        %1987 = vmatmul.mubr.f32.gmra.mrb[0].mxu0 %v1986
        %v1988 = vpop.f32.mrb[0].mxu0
        %v1989 = vadd.f32 %v1515, %v1988
        %v1990 = vpop.f32.mrb[0].mxu0
        %1991 = vmatprep.mubr.f32.mxu0 0.0
        %v1992 = vand.u32 %v482, 4294901760
        %v1993 = vsub.f32 %v482, %v1992
        %1994 = vmatmul.mubr.f32.gmra.mrb[0].mxu0 %v1993
        %v1995 = vpop.f32.mrb[0].mxu0
        %v1996 = vadd.f32 %v1521, %v1995
        %v1997 = vpop.f32.mrb[0].mxu0
        %1998 = vmatprep.mubr.f32.mxu0 0.0
        %v1999 = vand.u32 %v485, 4294901760
        %v2000 = vsub.f32 %v485, %v1999
        %2001 = vmatmul.mubr.f32.gmra.mrb[0].mxu0 %v2000
        %v2002 = vpop.f32.mrb[0].mxu0
        %v2003 = vadd.f32 %v1527, %v2002
        %v2004 = vpop.f32.mrb[0].mxu0
        %2005 = vmatprep.mubr.f32.mxu0 0.0
        %v2006 = vand.u32 %v488, 4294901760
        %v2007 = vsub.f32 %v488, %v2006
        %2008 = vmatmul.mubr.f32.gmra.mrb[0].mxu0 %v2007
        %v2009 = vpop.f32.mrb[0].mxu0
        %v2010 = vadd.f32 %v1533, %v2009
        %v2011 = vpop.f32.mrb[0].mxu0
        %2012 = vmatprep.mubr.f32.mxu0 0.0
        %v2013 = vand.u32 %v491, 4294901760
        %v2014 = vsub.f32 %v491, %v2013
        %2015 = vmatmul.mubr.f32.gmra.mrb[0].mxu0 %v2014
        %v2016 = vpop.f32.mrb[0].mxu0
        %v2017 = vadd.f32 %v1539, %v2016
        %v2018 = vpop.f32.mrb[0].mxu0
        %2019 = vmatprep.mubr.f32.mxu0 0.0
        %v2020 = vand.u32 %v494, 4294901760
        %v2021 = vsub.f32 %v494, %v2020
        %2022 = vmatmul.mubr.f32.gmra.mrb[0].mxu0 %v2021
        %v2023 = vpop.f32.mrb[0].mxu0
        %v2024 = vadd.f32 %v1545, %v2023
        %v2025 = vpop.f32.mrb[0].mxu0
        %2026 = vmatprep.mubr.f32.mxu0 0.0
        %v2027 = vand.u32 %v497, 4294901760
        %v2028 = vsub.f32 %v497, %v2027
        %2029 = vmatmul.mubr.f32.gmra.mrb[0].mxu0 %v2028
        %v2030 = vpop.f32.mrb[0].mxu0
        %v2031 = vadd.f32 %v1551, %v2030
        %v2032 = vpop.f32.mrb[0].mxu0
        %2033 = vmatprep.mubr.f32.mxu0 0.0
        %v2034 = vand.u32 %v500, 4294901760
        %v2035 = vsub.f32 %v500, %v2034
        %2036 = vmatmul.mubr.f32.gmra.mrb[0].mxu0 %v2035
        %v2037 = vpop.f32.mrb[0].mxu0
        %v2038 = vadd.f32 %v1557, %v2037
        %v2039 = vpop.f32.mrb[0].mxu0
        %2040 = vmatprep.mubr.f32.mxu0 0.0
        %v2041 = vand.u32 %v503, 4294901760
        %v2042 = vsub.f32 %v503, %v2041
        %2043 = vmatmul.mubr.f32.gmra.mrb[0].mxu0 %v2042
        %v2044 = vpop.f32.mrb[0].mxu0
        %v2045 = vadd.f32 %v1563, %v2044
        %v2046 = vpop.f32.mrb[0].mxu0
        %2047 = vmatprep.mubr.f32.mxu0 0.0
        %v2048 = vand.u32 %v506, 4294901760
        %v2049 = vsub.f32 %v506, %v2048
        %2050 = vmatmul.mubr.f32.gmra.mrb[0].mxu0 %v2049
        %v2051 = vpop.f32.mrb[0].mxu0
        %v2052 = vadd.f32 %v1569, %v2051
        %v2053 = vpop.f32.mrb[0].mxu0
        %2054 = vmatprep.mubr.f32.mxu0 0.0
        %v2055 = vand.u32 %v509, 4294901760
        %v2056 = vsub.f32 %v509, %v2055
        %2057 = vmatmul.mubr.f32.gmra.mrb[0].mxu0 %v2056
        %v2058 = vpop.f32.mrb[0].mxu0
        %v2059 = vadd.f32 %v1575, %v2058
        %v2060 = vpop.f32.mrb[0].mxu0
        %2061 = vmatprep.mubr.f32.mxu0 0.0
        %v2062 = vand.u32 %v512, 4294901760
        %v2063 = vsub.f32 %v512, %v2062
        %2064 = vmatmul.mubr.f32.gmra.mrb[0].mxu0 %v2063
        %v2065 = vpop.f32.mrb[0].mxu0
        %v2066 = vadd.f32 %v1581, %v2065
        %v2067 = vpop.f32.mrb[0].mxu0
        %2068 = vmatprep.mubr.f32.mxu0 0.0
        %v2069 = vand.u32 %v515, 4294901760
        %v2070 = vsub.f32 %v515, %v2069
        %2071 = vmatmul.mubr.f32.gmra.mrb[0].mxu0 %v2070
        %v2072 = vpop.f32.mrb[0].mxu0
        %v2073 = vadd.f32 %v1587, %v2072
        %v2074 = vpop.f32.mrb[0].mxu0
        %2075 = vmatprep.mubr.f32.mxu0 0.0
        %v2076 = vand.u32 %v518, 4294901760
        %v2077 = vsub.f32 %v518, %v2076
        %2078 = vmatmul.mubr.f32.gmra.mrb[0].mxu0 %v2077
        %v2079 = vpop.f32.mrb[0].mxu0
        %v2080 = vadd.f32 %v1593, %v2079
        %v2081 = vpop.f32.mrb[0].mxu0
        %2082 = vmatprep.mubr.f32.mxu0 0.0
        %v2083 = vand.u32 %v521, 4294901760
        %v2084 = vsub.f32 %v521, %v2083
        %2085 = vmatmul.mubr.f32.gmra.mrb[0].mxu0 %v2084
        %v2086 = vpop.f32.mrb[0].mxu0
        %v2087 = vadd.f32 %v1599, %v2086
        %v2088 = vpop.f32.mrb[0].mxu0
        %2089 = vmatprep.mubr.f32.mxu0 0.0
        %v2090 = vand.u32 %v524, 4294901760
        %v2091 = vsub.f32 %v524, %v2090
        %2092 = vmatmul.mubr.f32.gmra.mrb[0].mxu0 %v2091
        %v2093 = vpop.f32.mrb[0].mxu0
        %v2094 = vadd.f32 %v1605, %v2093
        %v2095 = vpop.f32.mrb[0].mxu0
        %2096 = vmatprep.mubr.f32.mxu0 0.0
        %v2097 = vand.u32 %v527, 4294901760
        %v2098 = vsub.f32 %v527, %v2097
        %2099 = vmatmul.mubr.f32.gmra.mrb[0].mxu0 %v2098
        %v2100 = vpop.f32.mrb[0].mxu0
        %v2101 = vadd.f32 %v1611, %v2100
        %v2102 = vpop.f32.mrb[0].mxu0
        %2103 = vmatprep.mubr.f32.mxu0 0.0
        %v2104 = vand.u32 %v530, 4294901760
        %v2105 = vsub.f32 %v530, %v2104
        %2106 = vmatmul.mubr.f32.gmra.mrb[0].mxu0 %v2105
        %v2107 = vpop.f32.mrb[0].mxu0
        %v2108 = vadd.f32 %v1617, %v2107
        %v2109 = vpop.f32.mrb[0].mxu0
        %2110 = vmatprep.mubr.f32.mxu0 0.0
        %v2111 = vand.u32 %v533, 4294901760
        %v2112 = vsub.f32 %v533, %v2111
        %2113 = vmatmul.mubr.f32.gmra.mrb[0].mxu0 %v2112
        %v2114 = vpop.f32.mrb[0].mxu0
        %v2115 = vadd.f32 %v1623, %v2114
        %v2116 = vpop.f32.mrb[0].mxu0
        %2117 = vmatprep.mubr.f32.mxu0 0.0
        %v2118 = vand.u32 %v536, 4294901760
        %v2119 = vsub.f32 %v536, %v2118
        %2120 = vmatmul.mubr.f32.gmra.mrb[0].mxu0 %v2119
        %v2121 = vpop.f32.mrb[0].mxu0
        %v2122 = vadd.f32 %v1629, %v2121
        %v2123 = vpop.f32.mrb[0].mxu0
        %2124 = vmatprep.mubr.f32.mxu0 0.0
        %v2125 = vand.u32 %v539, 4294901760
        %v2126 = vsub.f32 %v539, %v2125
        %2127 = vmatmul.mubr.f32.gmra.mrb[0].mxu0 %v2126
        %v2128 = vpop.f32.mrb[0].mxu0
        %v2129 = vadd.f32 %v1635, %v2128
        %v2130 = vpop.f32.mrb[0].mxu0
        %2131 = vmatprep.mubr.f32.mxu0 0.0
        %v2132 = vand.u32 %v542, 4294901760
        %v2133 = vsub.f32 %v542, %v2132
        %2134 = vmatmul.mubr.f32.gmra.mrb[0].mxu0 %v2133
        %v2135 = vpop.f32.mrb[0].mxu0
        %v2136 = vadd.f32 %v1641, %v2135
        %v2137 = vpop.f32.mrb[0].mxu0
        %2138 = vmatprep.mubr.f32.mxu0 0.0
        %v2139 = vand.u32 %v545, 4294901760
        %v2140 = vsub.f32 %v545, %v2139
        %2141 = vmatmul.mubr.f32.gmra.mrb[0].mxu0 %v2140
        %v2142 = vpop.f32.mrb[0].mxu0
        %v2143 = vadd.f32 %v1647, %v2142
        %v2144 = vpop.f32.mrb[0].mxu0
        %2145 = vmatprep.mubr.f32.mxu0 0.0
        %v2146 = vand.u32 %v548, 4294901760
        %v2147 = vsub.f32 %v548, %v2146
        %2148 = vmatmul.mubr.f32.gmra.mrb[0].mxu0 %v2147
        %v2149 = vpop.f32.mrb[0].mxu0
        %v2150 = vadd.f32 %v1653, %v2149
        %v2151 = vpop.f32.mrb[0].mxu0
        %2152 = vmatprep.mubr.f32.mxu0 0.0
        %v2153 = vand.u32 %v551, 4294901760
        %v2154 = vsub.f32 %v551, %v2153
        %2155 = vmatmul.mubr.f32.gmra.mrb[0].mxu0 %v2154
        %v2156 = vpop.f32.mrb[0].mxu0
        %v2157 = vadd.f32 %v1659, %v2156
        %v2158 = vpop.f32.mrb[0].mxu0
        %2159 = vmatprep.mubr.f32.mxu0 0.0
        %v2160 = vand.u32 %v554, 4294901760
        %v2161 = vsub.f32 %v554, %v2160
        %2162 = vmatmul.mubr.f32.gmra.mrb[0].mxu0 %v2161
        %v2163 = vpop.f32.mrb[0].mxu0
        %v2164 = vadd.f32 %v1665, %v2163
        %v2165 = vpop.f32.mrb[0].mxu0
        %2166 = vmatprep.mubr.f32.mxu0 0.0
        %v2167 = vand.u32 %v557, 4294901760
        %v2168 = vsub.f32 %v557, %v2167
        %2169 = vmatmul.mubr.f32.gmra.mrb[0].mxu0 %v2168
        %v2170 = vpop.f32.mrb[0].mxu0
        %v2171 = vadd.f32 %v1671, %v2170
        %v2172 = vpop.f32.mrb[0].mxu0
        %2173 = vmatprep.mubr.f32.mxu0 0.0
        %v2174 = vand.u32 %v560, 4294901760
        %v2175 = vsub.f32 %v560, %v2174
        %2176 = vmatmul.mubr.f32.gmra.mrb[0].mxu0 %v2175
        %v2177 = vpop.f32.mrb[0].mxu0
        %v2178 = vadd.f32 %v1677, %v2177
        %v2179 = vpop.f32.mrb[0].mxu0
        %2180 = vmatprep.mubr.f32.mxu0 0.0
        %v2181 = vand.u32 %v563, 4294901760
        %v2182 = vsub.f32 %v563, %v2181
        %2183 = vmatmul.mubr.f32.gmra.mrb[0].mxu0 %v2182
        %v2184 = vpop.f32.mrb[0].mxu0
        %v2185 = vadd.f32 %v1683, %v2184
        %v2186 = vpop.f32.mrb[0].mxu0
        %2187 = vmatprep.mubr.f32.mxu0 0.0
        %v2188 = vand.u32 %v566, 4294901760
        %v2189 = vsub.f32 %v566, %v2188
        %2190 = vmatmul.mubr.f32.gmra.mrb[0].mxu0 %v2189
        %v2191 = vpop.f32.mrb[0].mxu0
        %v2192 = vadd.f32 %v1689, %v2191
        %v2193 = vpop.f32.mrb[0].mxu0
        %2194 = vmatprep.mubr.f32.mxu0 0.0
        %v2195 = vand.u32 %v569, 4294901760
        %v2196 = vsub.f32 %v569, %v2195
        %2197 = vmatmul.mubr.f32.gmra.mrb[0].mxu0 %v2196
        %v2198 = vpop.f32.mrb[0].mxu0
        %v2199 = vadd.f32 %v1695, %v2198
        %v2200 = vpop.f32.mrb[0].mxu0
        %2201 = vmatprep.mubr.f32.mxu0 0.0
        %v2202 = vand.u32 %v572, 4294901760
        %v2203 = vsub.f32 %v572, %v2202
        %2204 = vmatmul.mubr.f32.gmra.mrb[0].mxu0 %v2203
        %v2205 = vpop.f32.mrb[0].mxu0
        %v2206 = vadd.f32 %v1701, %v2205
        %v2207 = vpop.f32.mrb[0].mxu0
        %2208 = vmatprep.mubr.f32.mxu0 0.0
        %v2209 = vand.u32 %v575, 4294901760
        %v2210 = vsub.f32 %v575, %v2209
        %2211 = vmatmul.mubr.f32.gmra.mrb[0].mxu0 %v2210
        %v2212 = vpop.f32.mrb[0].mxu0
        %v2213 = vadd.f32 %v1707, %v2212
        %v2214 = vpop.f32.mrb[0].mxu0
        %2215 = vmatprep.mubr.f32.mxu0 0.0
        %v2216 = vand.u32 %v578, 4294901760
        %v2217 = vsub.f32 %v578, %v2216
        %2218 = vmatmul.mubr.f32.gmra.mrb[0].mxu0 %v2217
        %v2219 = vpop.f32.mrb[0].mxu0
        %v2220 = vadd.f32 %v1713, %v2219
        %v2221 = vpop.f32.mrb[0].mxu0
        %2222 = vmatprep.mubr.f32.mxu0 0.0
        %v2223 = vand.u32 %v581, 4294901760
        %v2224 = vsub.f32 %v581, %v2223
        %2225 = vmatmul.mubr.f32.gmra.mrb[0].mxu0 %v2224
        %v2226 = vpop.f32.mrb[0].mxu0
        %v2227 = vadd.f32 %v1719, %v2226
        %v2228 = vpop.f32.mrb[0].mxu0
        %2229 = vmatprep.mubr.f32.mxu0 0.0
        %v2230 = vand.u32 %v584, 4294901760
        %v2231 = vsub.f32 %v584, %v2230
        %2232 = vmatmul.mubr.f32.gmra.mrb[0].mxu0 %v2231
        %v2233 = vpop.f32.mrb[0].mxu0
        %v2234 = vadd.f32 %v1725, %v2233
        %v2235 = vpop.f32.mrb[0].mxu0
        %2236 = vmatprep.mubr.f32.mxu0 0.0
        %v2237 = vand.u32 %v587, 4294901760
        %v2238 = vsub.f32 %v587, %v2237
        %2239 = vmatmul.mubr.f32.gmra.mrb[0].mxu0 %v2238
        %v2240 = vpop.f32.mrb[0].mxu0
        %v2241 = vadd.f32 %v1731, %v2240
        %v2242 = vpop.f32.mrb[0].mxu0
        %2243 = vmatprep.mubr.f32.mxu0 0.0
        %v2244 = vand.u32 %v590, 4294901760
        %v2245 = vsub.f32 %v590, %v2244
        %2246 = vmatmul.mubr.f32.gmra.mrb[0].mxu0 %v2245
        %v2247 = vpop.f32.mrb[0].mxu0
        %v2248 = vadd.f32 %v1737, %v2247
        %v2249 = vpop.f32.mrb[0].mxu0
        %2250 = vmatprep.mubr.f32.mxu0 0.0
        %v2251 = vand.u32 %v593, 4294901760
        %v2252 = vsub.f32 %v593, %v2251
        %2253 = vmatmul.mubr.f32.gmra.mrb[0].mxu0 %v2252
        %v2254 = vpop.f32.mrb[0].mxu0
        %v2255 = vadd.f32 %v1743, %v2254
        %v2256 = vpop.f32.mrb[0].mxu0
        %2257 = vmatprep.mubr.f32.mxu0 0.0
        %v2258 = vand.u32 %v596, 4294901760
        %v2259 = vsub.f32 %v596, %v2258
        %2260 = vmatmul.mubr.f32.gmra.mrb[0].mxu0 %v2259
        %v2261 = vpop.f32.mrb[0].mxu0
        %v2262 = vadd.f32 %v1749, %v2261
        %v2263 = vpop.f32.mrb[0].mxu0
        %2264 = vmatprep.mubr.f32.mxu0 0.0
        %v2265 = vand.u32 %v599, 4294901760
        %v2266 = vsub.f32 %v599, %v2265
        %2267 = vmatmul.mubr.f32.gmra.mrb[0].mxu0 %v2266
        %v2268 = vpop.f32.mrb[0].mxu0
        %v2269 = vadd.f32 %v1755, %v2268
        %v2270 = vpop.f32.mrb[0].mxu0
        %2271 = vmatprep.mubr.f32.mxu0 0.0
        %v2272 = vand.u32 %v602, 4294901760
        %v2273 = vsub.f32 %v602, %v2272
        %2274 = vmatmul.mubr.f32.gmra.mrb[0].mxu0 %v2273
        %v2275 = vpop.f32.mrb[0].mxu0
        %v2276 = vadd.f32 %v1761, %v2275
        %v2277 = vpop.f32.mrb[0].mxu0
        %2278 = vmatprep.mubr.f32.mxu0 0.0
        %v2279 = vand.u32 %v605, 4294901760
        %v2280 = vsub.f32 %v605, %v2279
        %2281 = vmatmul.mubr.f32.gmra.mrb[0].mxu0 %v2280
        %v2282 = vpop.f32.mrb[0].mxu0
        %v2283 = vadd.f32 %v1767, %v2282
        %v2284 = vpop.f32.mrb[0].mxu0
        %2285 = vmatprep.mubr.f32.mxu0 0.0
        %v2286 = vand.u32 %v608, 4294901760
        %v2287 = vsub.f32 %v608, %v2286
        %2288 = vmatmul.mubr.f32.gmra.mrb[0].mxu0 %v2287
        %v2289 = vpop.f32.mrb[0].mxu0
        %v2290 = vadd.f32 %v1773, %v2289
        %v2291 = vpop.f32.mrb[0].mxu0
        %2292 = vdwg.mxu0
        %2293 = vmatprep.subr.mxu0 0.0
        %v2294 = vand.u32 %v415, 4294901760
        %2295 = vmatpush1.msra.mxu0 %v2294
        %2296 = vmatprep.subr.mxu0 0.0
        %v2297 = vand.u32 %v416, 4294901760
        %2298 = vmatpush1.msra.mxu0 %v2297
        %2299 = vmatprep.subr.mxu0 0.0
        %2300 = vmatpush1.msra.mxu0 0.0
        %2301 = vmatprep.subr.mxu0 0.0
        %2302 = vmatpush1.msra.mxu0 0.0
        %2303 = vmatprep.subr.mxu0 0.0
        %2304 = vmatpush1.msra.mxu0 0.0
        %2305 = vmatprep.subr.mxu0 0.0
        %2306 = vmatpush1.msra.mxu0 0.0
        %2307 = vmatprep.subr.mxu0 0.0
        %2308 = vmatpush1.msra.mxu0 0.0
        %2309 = vmatprep.subr.mxu0 0.0
        %2310 = vmatpush1.msra.mxu0 0.0
        %2311 = vmatprep.subr.mxu0 0.0
        %2312 = vmatpush1.msra.mxu0 0.0
        %2313 = vmatprep.subr.mxu0 0.0
        %2314 = vmatpush1.msra.mxu0 0.0
        %2315 = vmatprep.subr.mxu0 0.0
        %2316 = vmatpush1.msra.mxu0 0.0
        %2317 = vmatprep.subr.mxu0 0.0
        %2318 = vmatpush1.msra.mxu0 0.0
        %2319 = vmatprep.subr.mxu0 0.0
        %2320 = vmatpush1.msra.mxu0 0.0
        %2321 = vmatprep.subr.mxu0 0.0
        %2322 = vmatpush1.msra.mxu0 0.0
        %2323 = vmatprep.subr.mxu0 0.0
        %2324 = vmatpush1.msra.mxu0 0.0
        %2325 = vmatprep.subr.mxu0 0.0
        %2326 = vmatpush1.msra.mxu0 0.0
        %2327 = vmatprep.subr.mxu0 0.0
        %2328 = vmatpush1.msra.mxu0 0.0
        %2329 = vmatprep.subr.mxu0 0.0
        %2330 = vmatpush1.msra.mxu0 0.0
        %2331 = vmatprep.subr.mxu0 0.0
        %2332 = vmatpush1.msra.mxu0 0.0
        %2333 = vmatprep.subr.mxu0 0.0
        %2334 = vmatpush1.msra.mxu0 0.0
        %2335 = vmatprep.subr.mxu0 0.0
        %2336 = vmatpush1.msra.mxu0 0.0
        %2337 = vmatprep.subr.mxu0 0.0
        %2338 = vmatpush1.msra.mxu0 0.0
        %2339 = vmatprep.subr.mxu0 0.0
        %2340 = vmatpush1.msra.mxu0 0.0
        %2341 = vmatprep.subr.mxu0 0.0
        %2342 = vmatpush1.msra.mxu0 0.0
        %2343 = vmatprep.subr.mxu0 0.0
        %2344 = vmatpush1.msra.mxu0 0.0
        %2345 = vmatprep.subr.mxu0 0.0
        %2346 = vmatpush1.msra.mxu0 0.0
        %2347 = vmatprep.subr.mxu0 0.0
        %2348 = vmatpush1.msra.mxu0 0.0
        %2349 = vmatprep.subr.mxu0 0.0
        %2350 = vmatpush1.msra.mxu0 0.0
        %2351 = vmatprep.subr.mxu0 0.0
        %2352 = vmatpush1.msra.mxu0 0.0
        %2353 = vmatprep.subr.mxu0 0.0
        %2354 = vmatpush1.msra.mxu0 0.0
        %2355 = vmatprep.subr.mxu0 0.0
        %2356 = vmatpush1.msra.mxu0 0.0
        %2357 = vmatprep.subr.mxu0 0.0
        %2358 = vmatpush1.msra.mxu0 0.0
        %2359 = vmatprep.mubr.f32.mxu0 0.0
        %v2360 = vand.u32 %v419, 4294901760
        %v2361 = vsub.f32 %v419, %v2360
        %v2362 = vand.u32 %v2361, 4294901760
        %2363 = vmatmul.mubr.f32.gmra.mrb[0].mxu0 %v2362
        %v2364 = vpop.f32.mrb[0].mxu0
        %v2365 = vadd.f32 %v1849, %v2364
        %v2366 = vpop.f32.mrb[0].mxu0
        %2367 = vmatprep.mubr.f32.mxu0 0.0
        %v2368 = vand.u32 %v422, 4294901760
        %v2369 = vsub.f32 %v422, %v2368
        %v2370 = vand.u32 %v2369, 4294901760
        %2371 = vmatmul.mubr.f32.gmra.mrb[0].mxu0 %v2370
        %v2372 = vpop.f32.mrb[0].mxu0
        %v2373 = vadd.f32 %v1856, %v2372
        %v2374 = vpop.f32.mrb[0].mxu0
        %2375 = vmatprep.mubr.f32.mxu0 0.0
        %v2376 = vand.u32 %v425, 4294901760
        %v2377 = vsub.f32 %v425, %v2376
        %v2378 = vand.u32 %v2377, 4294901760
        %2379 = vmatmul.mubr.f32.gmra.mrb[0].mxu0 %v2378
        %v2380 = vpop.f32.mrb[0].mxu0
        %v2381 = vadd.f32 %v1863, %v2380
        %v2382 = vpop.f32.mrb[0].mxu0
        %2383 = vmatprep.mubr.f32.mxu0 0.0
        %v2384 = vand.u32 %v428, 4294901760
        %v2385 = vsub.f32 %v428, %v2384
        %v2386 = vand.u32 %v2385, 4294901760
        %2387 = vmatmul.mubr.f32.gmra.mrb[0].mxu0 %v2386
        %v2388 = vpop.f32.mrb[0].mxu0
        %v2389 = vadd.f32 %v1870, %v2388
        %v2390 = vpop.f32.mrb[0].mxu0
        %2391 = vmatprep.mubr.f32.mxu0 0.0
        %v2392 = vand.u32 %v431, 4294901760
        %v2393 = vsub.f32 %v431, %v2392
        %v2394 = vand.u32 %v2393, 4294901760
        %2395 = vmatmul.mubr.f32.gmra.mrb[0].mxu0 %v2394
        %v2396 = vpop.f32.mrb[0].mxu0
        %v2397 = vadd.f32 %v1877, %v2396
        %v2398 = vpop.f32.mrb[0].mxu0
        %2399 = vmatprep.mubr.f32.mxu0 0.0
        %v2400 = vand.u32 %v434, 4294901760
        %v2401 = vsub.f32 %v434, %v2400
        %v2402 = vand.u32 %v2401, 4294901760
        %2403 = vmatmul.mubr.f32.gmra.mrb[0].mxu0 %v2402
        %v2404 = vpop.f32.mrb[0].mxu0
        %v2405 = vadd.f32 %v1884, %v2404
        %v2406 = vpop.f32.mrb[0].mxu0
        %2407 = vmatprep.mubr.f32.mxu0 0.0
        %v2408 = vand.u32 %v437, 4294901760
        %v2409 = vsub.f32 %v437, %v2408
        %v2410 = vand.u32 %v2409, 4294901760
        %2411 = vmatmul.mubr.f32.gmra.mrb[0].mxu0 %v2410
        %v2412 = vpop.f32.mrb[0].mxu0
        %v2413 = vadd.f32 %v1891, %v2412
        %v2414 = vpop.f32.mrb[0].mxu0
        %2415 = vmatprep.mubr.f32.mxu0 0.0
        %v2416 = vand.u32 %v440, 4294901760
        %v2417 = vsub.f32 %v440, %v2416
        %v2418 = vand.u32 %v2417, 4294901760
        %2419 = vmatmul.mubr.f32.gmra.mrb[0].mxu0 %v2418
        %v2420 = vpop.f32.mrb[0].mxu0
        %v2421 = vadd.f32 %v1898, %v2420
        %v2422 = vpop.f32.mrb[0].mxu0
        %2423 = vmatprep.mubr.f32.mxu0 0.0
        %v2424 = vand.u32 %v443, 4294901760
        %v2425 = vsub.f32 %v443, %v2424
        %v2426 = vand.u32 %v2425, 4294901760
        %2427 = vmatmul.mubr.f32.gmra.mrb[0].mxu0 %v2426
        %v2428 = vpop.f32.mrb[0].mxu0
        %v2429 = vadd.f32 %v1905, %v2428
        %v2430 = vpop.f32.mrb[0].mxu0
        %2431 = vmatprep.mubr.f32.mxu0 0.0
        %v2432 = vand.u32 %v446, 4294901760
        %v2433 = vsub.f32 %v446, %v2432
        %v2434 = vand.u32 %v2433, 4294901760
        %2435 = vmatmul.mubr.f32.gmra.mrb[0].mxu0 %v2434
        %v2436 = vpop.f32.mrb[0].mxu0
        %v2437 = vadd.f32 %v1912, %v2436
        %v2438 = vpop.f32.mrb[0].mxu0
        %2439 = vmatprep.mubr.f32.mxu0 0.0
        %v2440 = vand.u32 %v449, 4294901760
        %v2441 = vsub.f32 %v449, %v2440
        %v2442 = vand.u32 %v2441, 4294901760
        %2443 = vmatmul.mubr.f32.gmra.mrb[0].mxu0 %v2442
        %v2444 = vpop.f32.mrb[0].mxu0
        %v2445 = vadd.f32 %v1919, %v2444
        %v2446 = vpop.f32.mrb[0].mxu0
        %2447 = vmatprep.mubr.f32.mxu0 0.0
        %v2448 = vand.u32 %v452, 4294901760
        %v2449 = vsub.f32 %v452, %v2448
        %v2450 = vand.u32 %v2449, 4294901760
        %2451 = vmatmul.mubr.f32.gmra.mrb[0].mxu0 %v2450
        %v2452 = vpop.f32.mrb[0].mxu0
        %v2453 = vadd.f32 %v1926, %v2452
        %v2454 = vpop.f32.mrb[0].mxu0
        %2455 = vmatprep.mubr.f32.mxu0 0.0
        %v2456 = vand.u32 %v455, 4294901760
        %v2457 = vsub.f32 %v455, %v2456
        %v2458 = vand.u32 %v2457, 4294901760
        %2459 = vmatmul.mubr.f32.gmra.mrb[0].mxu0 %v2458
        %v2460 = vpop.f32.mrb[0].mxu0
        %v2461 = vadd.f32 %v1933, %v2460
        %v2462 = vpop.f32.mrb[0].mxu0
        %2463 = vmatprep.mubr.f32.mxu0 0.0
        %v2464 = vand.u32 %v458, 4294901760
        %v2465 = vsub.f32 %v458, %v2464
        %v2466 = vand.u32 %v2465, 4294901760
        %2467 = vmatmul.mubr.f32.gmra.mrb[0].mxu0 %v2466
        %v2468 = vpop.f32.mrb[0].mxu0
        %v2469 = vadd.f32 %v1940, %v2468
        %v2470 = vpop.f32.mrb[0].mxu0
        %2471 = vmatprep.mubr.f32.mxu0 0.0
        %v2472 = vand.u32 %v461, 4294901760
        %v2473 = vsub.f32 %v461, %v2472
        %v2474 = vand.u32 %v2473, 4294901760
        %2475 = vmatmul.mubr.f32.gmra.mrb[0].mxu0 %v2474
        %v2476 = vpop.f32.mrb[0].mxu0
        %v2477 = vadd.f32 %v1947, %v2476
        %v2478 = vpop.f32.mrb[0].mxu0
        %2479 = vmatprep.mubr.f32.mxu0 0.0
        %v2480 = vand.u32 %v464, 4294901760
        %v2481 = vsub.f32 %v464, %v2480
        %v2482 = vand.u32 %v2481, 4294901760
        %2483 = vmatmul.mubr.f32.gmra.mrb[0].mxu0 %v2482
        %v2484 = vpop.f32.mrb[0].mxu0
        %v2485 = vadd.f32 %v1954, %v2484
        %v2486 = vpop.f32.mrb[0].mxu0
        %2487 = vmatprep.mubr.f32.mxu0 0.0
        %v2488 = vand.u32 %v467, 4294901760
        %v2489 = vsub.f32 %v467, %v2488
        %v2490 = vand.u32 %v2489, 4294901760
        %2491 = vmatmul.mubr.f32.gmra.mrb[0].mxu0 %v2490
        %v2492 = vpop.f32.mrb[0].mxu0
        %v2493 = vadd.f32 %v1961, %v2492
        %v2494 = vpop.f32.mrb[0].mxu0
        %2495 = vmatprep.mubr.f32.mxu0 0.0
        %v2496 = vand.u32 %v470, 4294901760
        %v2497 = vsub.f32 %v470, %v2496
        %v2498 = vand.u32 %v2497, 4294901760
        %2499 = vmatmul.mubr.f32.gmra.mrb[0].mxu0 %v2498
        %v2500 = vpop.f32.mrb[0].mxu0
        %v2501 = vadd.f32 %v1968, %v2500
        %v2502 = vpop.f32.mrb[0].mxu0
        %2503 = vmatprep.mubr.f32.mxu0 0.0
        %v2504 = vand.u32 %v473, 4294901760
        %v2505 = vsub.f32 %v473, %v2504
        %v2506 = vand.u32 %v2505, 4294901760
        %2507 = vmatmul.mubr.f32.gmra.mrb[0].mxu0 %v2506
        %v2508 = vpop.f32.mrb[0].mxu0
        %v2509 = vadd.f32 %v1975, %v2508
        %v2510 = vpop.f32.mrb[0].mxu0
        %2511 = vmatprep.mubr.f32.mxu0 0.0
        %v2512 = vand.u32 %v476, 4294901760
        %v2513 = vsub.f32 %v476, %v2512
        %v2514 = vand.u32 %v2513, 4294901760
        %2515 = vmatmul.mubr.f32.gmra.mrb[0].mxu0 %v2514
        %v2516 = vpop.f32.mrb[0].mxu0
        %v2517 = vadd.f32 %v1982, %v2516
        %v2518 = vpop.f32.mrb[0].mxu0
        %2519 = vmatprep.mubr.f32.mxu0 0.0
        %v2520 = vand.u32 %v479, 4294901760
        %v2521 = vsub.f32 %v479, %v2520
        %v2522 = vand.u32 %v2521, 4294901760
        %2523 = vmatmul.mubr.f32.gmra.mrb[0].mxu0 %v2522
        %v2524 = vpop.f32.mrb[0].mxu0
        %v2525 = vadd.f32 %v1989, %v2524
        %v2526 = vpop.f32.mrb[0].mxu0
        %2527 = vmatprep.mubr.f32.mxu0 0.0
        %v2528 = vand.u32 %v482, 4294901760
        %v2529 = vsub.f32 %v482, %v2528
        %v2530 = vand.u32 %v2529, 4294901760
        %2531 = vmatmul.mubr.f32.gmra.mrb[0].mxu0 %v2530
        %v2532 = vpop.f32.mrb[0].mxu0
        %v2533 = vadd.f32 %v1996, %v2532
        %v2534 = vpop.f32.mrb[0].mxu0
        %2535 = vmatprep.mubr.f32.mxu0 0.0
        %v2536 = vand.u32 %v485, 4294901760
        %v2537 = vsub.f32 %v485, %v2536
        %v2538 = vand.u32 %v2537, 4294901760
        %2539 = vmatmul.mubr.f32.gmra.mrb[0].mxu0 %v2538
        %v2540 = vpop.f32.mrb[0].mxu0
        %v2541 = vadd.f32 %v2003, %v2540
        %v2542 = vpop.f32.mrb[0].mxu0
        %2543 = vmatprep.mubr.f32.mxu0 0.0
        %v2544 = vand.u32 %v488, 4294901760
        %v2545 = vsub.f32 %v488, %v2544
        %v2546 = vand.u32 %v2545, 4294901760
        %2547 = vmatmul.mubr.f32.gmra.mrb[0].mxu0 %v2546
        %v2548 = vpop.f32.mrb[0].mxu0
        %v2549 = vadd.f32 %v2010, %v2548
        %v2550 = vpop.f32.mrb[0].mxu0
        %2551 = vmatprep.mubr.f32.mxu0 0.0
        %v2552 = vand.u32 %v491, 4294901760
        %v2553 = vsub.f32 %v491, %v2552
        %v2554 = vand.u32 %v2553, 4294901760
        %2555 = vmatmul.mubr.f32.gmra.mrb[0].mxu0 %v2554
        %v2556 = vpop.f32.mrb[0].mxu0
        %v2557 = vadd.f32 %v2017, %v2556
        %v2558 = vpop.f32.mrb[0].mxu0
        %2559 = vmatprep.mubr.f32.mxu0 0.0
        %v2560 = vand.u32 %v494, 4294901760
        %v2561 = vsub.f32 %v494, %v2560
        %v2562 = vand.u32 %v2561, 4294901760
        %2563 = vmatmul.mubr.f32.gmra.mrb[0].mxu0 %v2562
        %v2564 = vpop.f32.mrb[0].mxu0
        %v2565 = vadd.f32 %v2024, %v2564
        %v2566 = vpop.f32.mrb[0].mxu0
        %2567 = vmatprep.mubr.f32.mxu0 0.0
        %v2568 = vand.u32 %v497, 4294901760
        %v2569 = vsub.f32 %v497, %v2568
        %v2570 = vand.u32 %v2569, 4294901760
        %2571 = vmatmul.mubr.f32.gmra.mrb[0].mxu0 %v2570
        %v2572 = vpop.f32.mrb[0].mxu0
        %v2573 = vadd.f32 %v2031, %v2572
        %v2574 = vpop.f32.mrb[0].mxu0
        %2575 = vmatprep.mubr.f32.mxu0 0.0
        %v2576 = vand.u32 %v500, 4294901760
        %v2577 = vsub.f32 %v500, %v2576
        %v2578 = vand.u32 %v2577, 4294901760
        %2579 = vmatmul.mubr.f32.gmra.mrb[0].mxu0 %v2578
        %v2580 = vpop.f32.mrb[0].mxu0
        %v2581 = vadd.f32 %v2038, %v2580
        %v2582 = vpop.f32.mrb[0].mxu0
        %2583 = vmatprep.mubr.f32.mxu0 0.0
        %v2584 = vand.u32 %v503, 4294901760
        %v2585 = vsub.f32 %v503, %v2584
        %v2586 = vand.u32 %v2585, 4294901760
        %2587 = vmatmul.mubr.f32.gmra.mrb[0].mxu0 %v2586
        %v2588 = vpop.f32.mrb[0].mxu0
        %v2589 = vadd.f32 %v2045, %v2588
        %v2590 = vpop.f32.mrb[0].mxu0
        %2591 = vmatprep.mubr.f32.mxu0 0.0
        %v2592 = vand.u32 %v506, 4294901760
        %v2593 = vsub.f32 %v506, %v2592
        %v2594 = vand.u32 %v2593, 4294901760
        %2595 = vmatmul.mubr.f32.gmra.mrb[0].mxu0 %v2594
        %v2596 = vpop.f32.mrb[0].mxu0
        %v2597 = vadd.f32 %v2052, %v2596
        %v2598 = vpop.f32.mrb[0].mxu0
        %2599 = vmatprep.mubr.f32.mxu0 0.0
        %v2600 = vand.u32 %v509, 4294901760
        %v2601 = vsub.f32 %v509, %v2600
        %v2602 = vand.u32 %v2601, 4294901760
        %2603 = vmatmul.mubr.f32.gmra.mrb[0].mxu0 %v2602
        %v2604 = vpop.f32.mrb[0].mxu0
        %v2605 = vadd.f32 %v2059, %v2604
        %v2606 = vpop.f32.mrb[0].mxu0
        %2607 = vmatprep.mubr.f32.mxu0 0.0
        %v2608 = vand.u32 %v512, 4294901760
        %v2609 = vsub.f32 %v512, %v2608
        %v2610 = vand.u32 %v2609, 4294901760
        %2611 = vmatmul.mubr.f32.gmra.mrb[0].mxu0 %v2610
        %v2612 = vpop.f32.mrb[0].mxu0
        %v2613 = vadd.f32 %v2066, %v2612
        %v2614 = vpop.f32.mrb[0].mxu0
        %2615 = vmatprep.mubr.f32.mxu0 0.0
        %v2616 = vand.u32 %v515, 4294901760
        %v2617 = vsub.f32 %v515, %v2616
        %v2618 = vand.u32 %v2617, 4294901760
        %2619 = vmatmul.mubr.f32.gmra.mrb[0].mxu0 %v2618
        %v2620 = vpop.f32.mrb[0].mxu0
        %v2621 = vadd.f32 %v2073, %v2620
        %v2622 = vpop.f32.mrb[0].mxu0
        %2623 = vmatprep.mubr.f32.mxu0 0.0
        %v2624 = vand.u32 %v518, 4294901760
        %v2625 = vsub.f32 %v518, %v2624
        %v2626 = vand.u32 %v2625, 4294901760
        %2627 = vmatmul.mubr.f32.gmra.mrb[0].mxu0 %v2626
        %v2628 = vpop.f32.mrb[0].mxu0
        %v2629 = vadd.f32 %v2080, %v2628
        %v2630 = vpop.f32.mrb[0].mxu0
        %2631 = vmatprep.mubr.f32.mxu0 0.0
        %v2632 = vand.u32 %v521, 4294901760
        %v2633 = vsub.f32 %v521, %v2632
        %v2634 = vand.u32 %v2633, 4294901760
        %2635 = vmatmul.mubr.f32.gmra.mrb[0].mxu0 %v2634
        %v2636 = vpop.f32.mrb[0].mxu0
        %v2637 = vadd.f32 %v2087, %v2636
        %v2638 = vpop.f32.mrb[0].mxu0
        %2639 = vmatprep.mubr.f32.mxu0 0.0
        %v2640 = vand.u32 %v524, 4294901760
        %v2641 = vsub.f32 %v524, %v2640
        %v2642 = vand.u32 %v2641, 4294901760
        %2643 = vmatmul.mubr.f32.gmra.mrb[0].mxu0 %v2642
        %v2644 = vpop.f32.mrb[0].mxu0
        %v2645 = vadd.f32 %v2094, %v2644
        %v2646 = vpop.f32.mrb[0].mxu0
        %2647 = vmatprep.mubr.f32.mxu0 0.0
        %v2648 = vand.u32 %v527, 4294901760
        %v2649 = vsub.f32 %v527, %v2648
        %v2650 = vand.u32 %v2649, 4294901760
        %2651 = vmatmul.mubr.f32.gmra.mrb[0].mxu0 %v2650
        %v2652 = vpop.f32.mrb[0].mxu0
        %v2653 = vadd.f32 %v2101, %v2652
        %v2654 = vpop.f32.mrb[0].mxu0
        %2655 = vmatprep.mubr.f32.mxu0 0.0
        %v2656 = vand.u32 %v530, 4294901760
        %v2657 = vsub.f32 %v530, %v2656
        %v2658 = vand.u32 %v2657, 4294901760
        %2659 = vmatmul.mubr.f32.gmra.mrb[0].mxu0 %v2658
        %v2660 = vpop.f32.mrb[0].mxu0
        %v2661 = vadd.f32 %v2108, %v2660
        %v2662 = vpop.f32.mrb[0].mxu0
        %2663 = vmatprep.mubr.f32.mxu0 0.0
        %v2664 = vand.u32 %v533, 4294901760
        %v2665 = vsub.f32 %v533, %v2664
        %v2666 = vand.u32 %v2665, 4294901760
        %2667 = vmatmul.mubr.f32.gmra.mrb[0].mxu0 %v2666
        %v2668 = vpop.f32.mrb[0].mxu0
        %v2669 = vadd.f32 %v2115, %v2668
        %v2670 = vpop.f32.mrb[0].mxu0
        %2671 = vmatprep.mubr.f32.mxu0 0.0
        %v2672 = vand.u32 %v536, 4294901760
        %v2673 = vsub.f32 %v536, %v2672
        %v2674 = vand.u32 %v2673, 4294901760
        %2675 = vmatmul.mubr.f32.gmra.mrb[0].mxu0 %v2674
        %v2676 = vpop.f32.mrb[0].mxu0
        %v2677 = vadd.f32 %v2122, %v2676
        %v2678 = vpop.f32.mrb[0].mxu0
        %2679 = vmatprep.mubr.f32.mxu0 0.0
        %v2680 = vand.u32 %v539, 4294901760
        %v2681 = vsub.f32 %v539, %v2680
        %v2682 = vand.u32 %v2681, 4294901760
        %2683 = vmatmul.mubr.f32.gmra.mrb[0].mxu0 %v2682
        %v2684 = vpop.f32.mrb[0].mxu0
        %v2685 = vadd.f32 %v2129, %v2684
        %v2686 = vpop.f32.mrb[0].mxu0
        %2687 = vmatprep.mubr.f32.mxu0 0.0
        %v2688 = vand.u32 %v542, 4294901760
        %v2689 = vsub.f32 %v542, %v2688
        %v2690 = vand.u32 %v2689, 4294901760
        %2691 = vmatmul.mubr.f32.gmra.mrb[0].mxu0 %v2690
        %v2692 = vpop.f32.mrb[0].mxu0
        %v2693 = vadd.f32 %v2136, %v2692
        %v2694 = vpop.f32.mrb[0].mxu0
        %2695 = vmatprep.mubr.f32.mxu0 0.0
        %v2696 = vand.u32 %v545, 4294901760
        %v2697 = vsub.f32 %v545, %v2696
        %v2698 = vand.u32 %v2697, 4294901760
        %2699 = vmatmul.mubr.f32.gmra.mrb[0].mxu0 %v2698
        %v2700 = vpop.f32.mrb[0].mxu0
        %v2701 = vadd.f32 %v2143, %v2700
        %v2702 = vpop.f32.mrb[0].mxu0
        %2703 = vmatprep.mubr.f32.mxu0 0.0
        %v2704 = vand.u32 %v548, 4294901760
        %v2705 = vsub.f32 %v548, %v2704
        %v2706 = vand.u32 %v2705, 4294901760
        %2707 = vmatmul.mubr.f32.gmra.mrb[0].mxu0 %v2706
        %v2708 = vpop.f32.mrb[0].mxu0
        %v2709 = vadd.f32 %v2150, %v2708
        %v2710 = vpop.f32.mrb[0].mxu0
        %2711 = vmatprep.mubr.f32.mxu0 0.0
        %v2712 = vand.u32 %v551, 4294901760
        %v2713 = vsub.f32 %v551, %v2712
        %v2714 = vand.u32 %v2713, 4294901760
        %2715 = vmatmul.mubr.f32.gmra.mrb[0].mxu0 %v2714
        %v2716 = vpop.f32.mrb[0].mxu0
        %v2717 = vadd.f32 %v2157, %v2716
        %v2718 = vpop.f32.mrb[0].mxu0
        %2719 = vmatprep.mubr.f32.mxu0 0.0
        %v2720 = vand.u32 %v554, 4294901760
        %v2721 = vsub.f32 %v554, %v2720
        %v2722 = vand.u32 %v2721, 4294901760
        %2723 = vmatmul.mubr.f32.gmra.mrb[0].mxu0 %v2722
        %v2724 = vpop.f32.mrb[0].mxu0
        %v2725 = vadd.f32 %v2164, %v2724
        %v2726 = vpop.f32.mrb[0].mxu0
        %2727 = vmatprep.mubr.f32.mxu0 0.0
        %v2728 = vand.u32 %v557, 4294901760
        %v2729 = vsub.f32 %v557, %v2728
        %v2730 = vand.u32 %v2729, 4294901760
        %2731 = vmatmul.mubr.f32.gmra.mrb[0].mxu0 %v2730
        %v2732 = vpop.f32.mrb[0].mxu0
        %v2733 = vadd.f32 %v2171, %v2732
        %v2734 = vpop.f32.mrb[0].mxu0
        %2735 = vmatprep.mubr.f32.mxu0 0.0
        %v2736 = vand.u32 %v560, 4294901760
        %v2737 = vsub.f32 %v560, %v2736
        %v2738 = vand.u32 %v2737, 4294901760
        %2739 = vmatmul.mubr.f32.gmra.mrb[0].mxu0 %v2738
        %v2740 = vpop.f32.mrb[0].mxu0
        %v2741 = vadd.f32 %v2178, %v2740
        %v2742 = vpop.f32.mrb[0].mxu0
        %2743 = vmatprep.mubr.f32.mxu0 0.0
        %v2744 = vand.u32 %v563, 4294901760
        %v2745 = vsub.f32 %v563, %v2744
        %v2746 = vand.u32 %v2745, 4294901760
        %2747 = vmatmul.mubr.f32.gmra.mrb[0].mxu0 %v2746
        %v2748 = vpop.f32.mrb[0].mxu0
        %v2749 = vadd.f32 %v2185, %v2748
        %v2750 = vpop.f32.mrb[0].mxu0
        %2751 = vmatprep.mubr.f32.mxu0 0.0
        %v2752 = vand.u32 %v566, 4294901760
        %v2753 = vsub.f32 %v566, %v2752
        %v2754 = vand.u32 %v2753, 4294901760
        %2755 = vmatmul.mubr.f32.gmra.mrb[0].mxu0 %v2754
        %v2756 = vpop.f32.mrb[0].mxu0
        %v2757 = vadd.f32 %v2192, %v2756
        %v2758 = vpop.f32.mrb[0].mxu0
        %2759 = vmatprep.mubr.f32.mxu0 0.0
        %v2760 = vand.u32 %v569, 4294901760
        %v2761 = vsub.f32 %v569, %v2760
        %v2762 = vand.u32 %v2761, 4294901760
        %2763 = vmatmul.mubr.f32.gmra.mrb[0].mxu0 %v2762
        %v2764 = vpop.f32.mrb[0].mxu0
        %v2765 = vadd.f32 %v2199, %v2764
        %v2766 = vpop.f32.mrb[0].mxu0
        %2767 = vmatprep.mubr.f32.mxu0 0.0
        %v2768 = vand.u32 %v572, 4294901760
        %v2769 = vsub.f32 %v572, %v2768
        %v2770 = vand.u32 %v2769, 4294901760
        %2771 = vmatmul.mubr.f32.gmra.mrb[0].mxu0 %v2770
        %v2772 = vpop.f32.mrb[0].mxu0
        %v2773 = vadd.f32 %v2206, %v2772
        %v2774 = vpop.f32.mrb[0].mxu0
        %2775 = vmatprep.mubr.f32.mxu0 0.0
        %v2776 = vand.u32 %v575, 4294901760
        %v2777 = vsub.f32 %v575, %v2776
        %v2778 = vand.u32 %v2777, 4294901760
        %2779 = vmatmul.mubr.f32.gmra.mrb[0].mxu0 %v2778
        %v2780 = vpop.f32.mrb[0].mxu0
        %v2781 = vadd.f32 %v2213, %v2780
        %v2782 = vpop.f32.mrb[0].mxu0
        %2783 = vmatprep.mubr.f32.mxu0 0.0
        %v2784 = vand.u32 %v578, 4294901760
        %v2785 = vsub.f32 %v578, %v2784
        %v2786 = vand.u32 %v2785, 4294901760
        %2787 = vmatmul.mubr.f32.gmra.mrb[0].mxu0 %v2786
        %v2788 = vpop.f32.mrb[0].mxu0
        %v2789 = vadd.f32 %v2220, %v2788
        %v2790 = vpop.f32.mrb[0].mxu0
        %2791 = vmatprep.mubr.f32.mxu0 0.0
        %v2792 = vand.u32 %v581, 4294901760
        %v2793 = vsub.f32 %v581, %v2792
        %v2794 = vand.u32 %v2793, 4294901760
        %2795 = vmatmul.mubr.f32.gmra.mrb[0].mxu0 %v2794
        %v2796 = vpop.f32.mrb[0].mxu0
        %v2797 = vadd.f32 %v2227, %v2796
        %v2798 = vpop.f32.mrb[0].mxu0
        %2799 = vmatprep.mubr.f32.mxu0 0.0
        %v2800 = vand.u32 %v584, 4294901760
        %v2801 = vsub.f32 %v584, %v2800
        %v2802 = vand.u32 %v2801, 4294901760
        %2803 = vmatmul.mubr.f32.gmra.mrb[0].mxu0 %v2802
        %v2804 = vpop.f32.mrb[0].mxu0
        %v2805 = vadd.f32 %v2234, %v2804
        %v2806 = vpop.f32.mrb[0].mxu0
        %2807 = vmatprep.mubr.f32.mxu0 0.0
        %v2808 = vand.u32 %v587, 4294901760
        %v2809 = vsub.f32 %v587, %v2808
        %v2810 = vand.u32 %v2809, 4294901760
        %2811 = vmatmul.mubr.f32.gmra.mrb[0].mxu0 %v2810
        %v2812 = vpop.f32.mrb[0].mxu0
        %v2813 = vadd.f32 %v2241, %v2812
        %v2814 = vpop.f32.mrb[0].mxu0
        %2815 = vmatprep.mubr.f32.mxu0 0.0
        %v2816 = vand.u32 %v590, 4294901760
        %v2817 = vsub.f32 %v590, %v2816
        %v2818 = vand.u32 %v2817, 4294901760
        %2819 = vmatmul.mubr.f32.gmra.mrb[0].mxu0 %v2818
        %v2820 = vpop.f32.mrb[0].mxu0
        %v2821 = vadd.f32 %v2248, %v2820
        %v2822 = vpop.f32.mrb[0].mxu0
        %2823 = vmatprep.mubr.f32.mxu0 0.0
        %v2824 = vand.u32 %v593, 4294901760
        %v2825 = vsub.f32 %v593, %v2824
        %v2826 = vand.u32 %v2825, 4294901760
        %2827 = vmatmul.mubr.f32.gmra.mrb[0].mxu0 %v2826
        %v2828 = vpop.f32.mrb[0].mxu0
        %v2829 = vadd.f32 %v2255, %v2828
        %v2830 = vpop.f32.mrb[0].mxu0
        %2831 = vmatprep.mubr.f32.mxu0 0.0
        %v2832 = vand.u32 %v596, 4294901760
        %v2833 = vsub.f32 %v596, %v2832
        %v2834 = vand.u32 %v2833, 4294901760
        %2835 = vmatmul.mubr.f32.gmra.mrb[0].mxu0 %v2834
        %v2836 = vpop.f32.mrb[0].mxu0
        %v2837 = vadd.f32 %v2262, %v2836
        %v2838 = vpop.f32.mrb[0].mxu0
        %2839 = vmatprep.mubr.f32.mxu0 0.0
        %v2840 = vand.u32 %v599, 4294901760
        %v2841 = vsub.f32 %v599, %v2840
        %v2842 = vand.u32 %v2841, 4294901760
        %2843 = vmatmul.mubr.f32.gmra.mrb[0].mxu0 %v2842
        %v2844 = vpop.f32.mrb[0].mxu0
        %v2845 = vadd.f32 %v2269, %v2844
        %v2846 = vpop.f32.mrb[0].mxu0
        %2847 = vmatprep.mubr.f32.mxu0 0.0
        %v2848 = vand.u32 %v602, 4294901760
        %v2849 = vsub.f32 %v602, %v2848
        %v2850 = vand.u32 %v2849, 4294901760
        %2851 = vmatmul.mubr.f32.gmra.mrb[0].mxu0 %v2850
        %v2852 = vpop.f32.mrb[0].mxu0
        %v2853 = vadd.f32 %v2276, %v2852
        %v2854 = vpop.f32.mrb[0].mxu0
        %2855 = vmatprep.mubr.f32.mxu0 0.0
        %v2856 = vand.u32 %v605, 4294901760
        %v2857 = vsub.f32 %v605, %v2856
        %v2858 = vand.u32 %v2857, 4294901760
        %2859 = vmatmul.mubr.f32.gmra.mrb[0].mxu0 %v2858
        %v2860 = vpop.f32.mrb[0].mxu0
        %v2861 = vadd.f32 %v2283, %v2860
        %v2862 = vpop.f32.mrb[0].mxu0
        %2863 = vmatprep.mubr.f32.mxu0 0.0
        %v2864 = vand.u32 %v608, 4294901760
        %v2865 = vsub.f32 %v608, %v2864
        %v2866 = vand.u32 %v2865, 4294901760
        %2867 = vmatmul.mubr.f32.gmra.mrb[0].mxu0 %v2866
        %v2868 = vpop.f32.mrb[0].mxu0
        %v2869 = vadd.f32 %v2290, %v2868
        %v2870 = vpop.f32.mrb[0].mxu0
        %2871 = vdwg.mxu0
        %2872 = vmatprep.subr.mxu0 0.0
        %v2873 = vand.u32 %v415, 4294901760
        %v2874 = vsub.f32 %v415, %v2873
        %v2875 = vand.u32 %v2874, 4294901760
        %2876 = vmatpush1.msra.mxu0 %v2875
        %2877 = vmatprep.subr.mxu0 0.0
        %v2878 = vand.u32 %v416, 4294901760
        %v2879 = vsub.f32 %v416, %v2878
        %v2880 = vand.u32 %v2879, 4294901760
        %2881 = vmatpush1.msra.mxu0 %v2880
        %2882 = vmatprep.subr.mxu0 0.0
        %2883 = vmatpush1.msra.mxu0 0.0
        %2884 = vmatprep.subr.mxu0 0.0
        %2885 = vmatpush1.msra.mxu0 0.0
        %2886 = vmatprep.subr.mxu0 0.0
        %2887 = vmatpush1.msra.mxu0 0.0
        %2888 = vmatprep.subr.mxu0 0.0
        %2889 = vmatpush1.msra.mxu0 0.0
        %2890 = vmatprep.subr.mxu0 0.0
        %2891 = vmatpush1.msra.mxu0 0.0
        %2892 = vmatprep.subr.mxu0 0.0
        %2893 = vmatpush1.msra.mxu0 0.0
        %2894 = vmatprep.subr.mxu0 0.0
        %2895 = vmatpush1.msra.mxu0 0.0
        %2896 = vmatprep.subr.mxu0 0.0
        %2897 = vmatpush1.msra.mxu0 0.0
        %2898 = vmatprep.subr.mxu0 0.0
        %2899 = vmatpush1.msra.mxu0 0.0
        %2900 = vmatprep.subr.mxu0 0.0
        %2901 = vmatpush1.msra.mxu0 0.0
        %2902 = vmatprep.subr.mxu0 0.0
        %2903 = vmatpush1.msra.mxu0 0.0
        %2904 = vmatprep.subr.mxu0 0.0
        %2905 = vmatpush1.msra.mxu0 0.0
        %2906 = vmatprep.subr.mxu0 0.0
        %2907 = vmatpush1.msra.mxu0 0.0
        %2908 = vmatprep.subr.mxu0 0.0
        %2909 = vmatpush1.msra.mxu0 0.0
        %2910 = vmatprep.subr.mxu0 0.0
        %2911 = vmatpush1.msra.mxu0 0.0
        %2912 = vmatprep.subr.mxu0 0.0
        %2913 = vmatpush1.msra.mxu0 0.0
        %2914 = vmatprep.subr.mxu0 0.0
        %2915 = vmatpush1.msra.mxu0 0.0
        %2916 = vmatprep.subr.mxu0 0.0
        %2917 = vmatpush1.msra.mxu0 0.0
        %2918 = vmatprep.subr.mxu0 0.0
        %2919 = vmatpush1.msra.mxu0 0.0
        %2920 = vmatprep.subr.mxu0 0.0
        %2921 = vmatpush1.msra.mxu0 0.0
        %2922 = vmatprep.subr.mxu0 0.0
        %2923 = vmatpush1.msra.mxu0 0.0
        %2924 = vmatprep.subr.mxu0 0.0
        %2925 = vmatpush1.msra.mxu0 0.0
        %2926 = vmatprep.subr.mxu0 0.0
        %2927 = vmatpush1.msra.mxu0 0.0
        %2928 = vmatprep.subr.mxu0 0.0
        %2929 = vmatpush1.msra.mxu0 0.0
        %2930 = vmatprep.subr.mxu0 0.0
        %2931 = vmatpush1.msra.mxu0 0.0
        %2932 = vmatprep.subr.mxu0 0.0
        %2933 = vmatpush1.msra.mxu0 0.0
        %2934 = vmatprep.subr.mxu0 0.0
        %2935 = vmatpush1.msra.mxu0 0.0
        %2936 = vmatprep.subr.mxu0 0.0
        %2937 = vmatpush1.msra.mxu0 0.0
        %2938 = vmatprep.subr.mxu0 0.0
        %2939 = vmatpush1.msra.mxu0 0.0
        %2940 = vmatprep.subr.mxu0 0.0
        %2941 = vmatpush1.msra.mxu0 0.0
        %2942 = vmatprep.mubr.f32.mxu0 0.0
        %v2943 = vand.u32 %v419, 4294901760
        %2944 = vmatmul.mubr.f32.gmra.mrb[0].mxu0 %v2943
        %v2945 = vpop.f32.mrb[0].mxu0
        %v2946 = vadd.f32 %v2365, %v2945
        %v2947 = vpop.f32.mrb[0].mxu0
        %2948 = vmatprep.mubr.f32.mxu0 0.0
        %v2949 = vand.u32 %v422, 4294901760
        %2950 = vmatmul.mubr.f32.gmra.mrb[0].mxu0 %v2949
        %v2951 = vpop.f32.mrb[0].mxu0
        %v2952 = vadd.f32 %v2373, %v2951
        %v2953 = vpop.f32.mrb[0].mxu0
        %2954 = vmatprep.mubr.f32.mxu0 0.0
        %v2955 = vand.u32 %v425, 4294901760
        %2956 = vmatmul.mubr.f32.gmra.mrb[0].mxu0 %v2955
        %v2957 = vpop.f32.mrb[0].mxu0
        %v2958 = vadd.f32 %v2381, %v2957
        %v2959 = vpop.f32.mrb[0].mxu0
        %2960 = vmatprep.mubr.f32.mxu0 0.0
        %v2961 = vand.u32 %v428, 4294901760
        %2962 = vmatmul.mubr.f32.gmra.mrb[0].mxu0 %v2961
        %v2963 = vpop.f32.mrb[0].mxu0
        %v2964 = vadd.f32 %v2389, %v2963
        %v2965 = vpop.f32.mrb[0].mxu0
        %2966 = vmatprep.mubr.f32.mxu0 0.0
        %v2967 = vand.u32 %v431, 4294901760
        %2968 = vmatmul.mubr.f32.gmra.mrb[0].mxu0 %v2967
        %v2969 = vpop.f32.mrb[0].mxu0
        %v2970 = vadd.f32 %v2397, %v2969
        %v2971 = vpop.f32.mrb[0].mxu0
        %2972 = vmatprep.mubr.f32.mxu0 0.0
        %v2973 = vand.u32 %v434, 4294901760
        %2974 = vmatmul.mubr.f32.gmra.mrb[0].mxu0 %v2973
        %v2975 = vpop.f32.mrb[0].mxu0
        %v2976 = vadd.f32 %v2405, %v2975
        %v2977 = vpop.f32.mrb[0].mxu0
        %2978 = vmatprep.mubr.f32.mxu0 0.0
        %v2979 = vand.u32 %v437, 4294901760
        %2980 = vmatmul.mubr.f32.gmra.mrb[0].mxu0 %v2979
        %v2981 = vpop.f32.mrb[0].mxu0
        %v2982 = vadd.f32 %v2413, %v2981
        %v2983 = vpop.f32.mrb[0].mxu0
        %2984 = vmatprep.mubr.f32.mxu0 0.0
        %v2985 = vand.u32 %v440, 4294901760
        %2986 = vmatmul.mubr.f32.gmra.mrb[0].mxu0 %v2985
        %v2987 = vpop.f32.mrb[0].mxu0
        %v2988 = vadd.f32 %v2421, %v2987
        %v2989 = vpop.f32.mrb[0].mxu0
        %2990 = vmatprep.mubr.f32.mxu0 0.0
        %v2991 = vand.u32 %v443, 4294901760
        %2992 = vmatmul.mubr.f32.gmra.mrb[0].mxu0 %v2991
        %v2993 = vpop.f32.mrb[0].mxu0
        %v2994 = vadd.f32 %v2429, %v2993
        %v2995 = vpop.f32.mrb[0].mxu0
        %2996 = vmatprep.mubr.f32.mxu0 0.0
        %v2997 = vand.u32 %v446, 4294901760
        %2998 = vmatmul.mubr.f32.gmra.mrb[0].mxu0 %v2997
        %v2999 = vpop.f32.mrb[0].mxu0
        %v3000 = vadd.f32 %v2437, %v2999
        %v3001 = vpop.f32.mrb[0].mxu0
        %3002 = vmatprep.mubr.f32.mxu0 0.0
        %v3003 = vand.u32 %v449, 4294901760
        %3004 = vmatmul.mubr.f32.gmra.mrb[0].mxu0 %v3003
        %v3005 = vpop.f32.mrb[0].mxu0
        %v3006 = vadd.f32 %v2445, %v3005
        %v3007 = vpop.f32.mrb[0].mxu0
        %3008 = vmatprep.mubr.f32.mxu0 0.0
        %v3009 = vand.u32 %v452, 4294901760
        %3010 = vmatmul.mubr.f32.gmra.mrb[0].mxu0 %v3009
        %v3011 = vpop.f32.mrb[0].mxu0
        %v3012 = vadd.f32 %v2453, %v3011
        %v3013 = vpop.f32.mrb[0].mxu0
        %3014 = vmatprep.mubr.f32.mxu0 0.0
        %v3015 = vand.u32 %v455, 4294901760
        %3016 = vmatmul.mubr.f32.gmra.mrb[0].mxu0 %v3015
        %v3017 = vpop.f32.mrb[0].mxu0
        %v3018 = vadd.f32 %v2461, %v3017
        %v3019 = vpop.f32.mrb[0].mxu0
        %3020 = vmatprep.mubr.f32.mxu0 0.0
        %v3021 = vand.u32 %v458, 4294901760
        %3022 = vmatmul.mubr.f32.gmra.mrb[0].mxu0 %v3021
        %v3023 = vpop.f32.mrb[0].mxu0
        %v3024 = vadd.f32 %v2469, %v3023
        %v3025 = vpop.f32.mrb[0].mxu0
        %3026 = vmatprep.mubr.f32.mxu0 0.0
        %v3027 = vand.u32 %v461, 4294901760
        %3028 = vmatmul.mubr.f32.gmra.mrb[0].mxu0 %v3027
        %v3029 = vpop.f32.mrb[0].mxu0
        %v3030 = vadd.f32 %v2477, %v3029
        %v3031 = vpop.f32.mrb[0].mxu0
        %3032 = vmatprep.mubr.f32.mxu0 0.0
        %v3033 = vand.u32 %v464, 4294901760
        %3034 = vmatmul.mubr.f32.gmra.mrb[0].mxu0 %v3033
        %v3035 = vpop.f32.mrb[0].mxu0
        %v3036 = vadd.f32 %v2485, %v3035
        %v3037 = vpop.f32.mrb[0].mxu0
        %3038 = vmatprep.mubr.f32.mxu0 0.0
        %v3039 = vand.u32 %v467, 4294901760
        %3040 = vmatmul.mubr.f32.gmra.mrb[0].mxu0 %v3039
        %v3041 = vpop.f32.mrb[0].mxu0
        %v3042 = vadd.f32 %v2493, %v3041
        %v3043 = vpop.f32.mrb[0].mxu0
        %3044 = vmatprep.mubr.f32.mxu0 0.0
        %v3045 = vand.u32 %v470, 4294901760
        %3046 = vmatmul.mubr.f32.gmra.mrb[0].mxu0 %v3045
        %v3047 = vpop.f32.mrb[0].mxu0
        %v3048 = vadd.f32 %v2501, %v3047
        %v3049 = vpop.f32.mrb[0].mxu0
        %3050 = vmatprep.mubr.f32.mxu0 0.0
        %v3051 = vand.u32 %v473, 4294901760
        %3052 = vmatmul.mubr.f32.gmra.mrb[0].mxu0 %v3051
        %v3053 = vpop.f32.mrb[0].mxu0
        %v3054 = vadd.f32 %v2509, %v3053
        %v3055 = vpop.f32.mrb[0].mxu0
        %3056 = vmatprep.mubr.f32.mxu0 0.0
        %v3057 = vand.u32 %v476, 4294901760
        %3058 = vmatmul.mubr.f32.gmra.mrb[0].mxu0 %v3057
        %v3059 = vpop.f32.mrb[0].mxu0
        %v3060 = vadd.f32 %v2517, %v3059
        %v3061 = vpop.f32.mrb[0].mxu0
        %3062 = vmatprep.mubr.f32.mxu0 0.0
        %v3063 = vand.u32 %v479, 4294901760
        %3064 = vmatmul.mubr.f32.gmra.mrb[0].mxu0 %v3063
        %v3065 = vpop.f32.mrb[0].mxu0
        %v3066 = vadd.f32 %v2525, %v3065
        %v3067 = vpop.f32.mrb[0].mxu0
        %3068 = vmatprep.mubr.f32.mxu0 0.0
        %v3069 = vand.u32 %v482, 4294901760
        %3070 = vmatmul.mubr.f32.gmra.mrb[0].mxu0 %v3069
        %v3071 = vpop.f32.mrb[0].mxu0
        %v3072 = vadd.f32 %v2533, %v3071
        %v3073 = vpop.f32.mrb[0].mxu0
        %3074 = vmatprep.mubr.f32.mxu0 0.0
        %v3075 = vand.u32 %v485, 4294901760
        %3076 = vmatmul.mubr.f32.gmra.mrb[0].mxu0 %v3075
        %v3077 = vpop.f32.mrb[0].mxu0
        %v3078 = vadd.f32 %v2541, %v3077
        %v3079 = vpop.f32.mrb[0].mxu0
        %3080 = vmatprep.mubr.f32.mxu0 0.0
        %v3081 = vand.u32 %v488, 4294901760
        %3082 = vmatmul.mubr.f32.gmra.mrb[0].mxu0 %v3081
        %v3083 = vpop.f32.mrb[0].mxu0
        %v3084 = vadd.f32 %v2549, %v3083
        %v3085 = vpop.f32.mrb[0].mxu0
        %3086 = vmatprep.mubr.f32.mxu0 0.0
        %v3087 = vand.u32 %v491, 4294901760
        %3088 = vmatmul.mubr.f32.gmra.mrb[0].mxu0 %v3087
        %v3089 = vpop.f32.mrb[0].mxu0
        %v3090 = vadd.f32 %v2557, %v3089
        %v3091 = vpop.f32.mrb[0].mxu0
        %3092 = vmatprep.mubr.f32.mxu0 0.0
        %v3093 = vand.u32 %v494, 4294901760
        %3094 = vmatmul.mubr.f32.gmra.mrb[0].mxu0 %v3093
        %v3095 = vpop.f32.mrb[0].mxu0
        %v3096 = vadd.f32 %v2565, %v3095
        %v3097 = vpop.f32.mrb[0].mxu0
        %3098 = vmatprep.mubr.f32.mxu0 0.0
        %v3099 = vand.u32 %v497, 4294901760
        %3100 = vmatmul.mubr.f32.gmra.mrb[0].mxu0 %v3099
        %v3101 = vpop.f32.mrb[0].mxu0
        %v3102 = vadd.f32 %v2573, %v3101
        %v3103 = vpop.f32.mrb[0].mxu0
        %3104 = vmatprep.mubr.f32.mxu0 0.0
        %v3105 = vand.u32 %v500, 4294901760
        %3106 = vmatmul.mubr.f32.gmra.mrb[0].mxu0 %v3105
        %v3107 = vpop.f32.mrb[0].mxu0
        %v3108 = vadd.f32 %v2581, %v3107
        %v3109 = vpop.f32.mrb[0].mxu0
        %3110 = vmatprep.mubr.f32.mxu0 0.0
        %v3111 = vand.u32 %v503, 4294901760
        %3112 = vmatmul.mubr.f32.gmra.mrb[0].mxu0 %v3111
        %v3113 = vpop.f32.mrb[0].mxu0
        %v3114 = vadd.f32 %v2589, %v3113
        %v3115 = vpop.f32.mrb[0].mxu0
        %3116 = vmatprep.mubr.f32.mxu0 0.0
        %v3117 = vand.u32 %v506, 4294901760
        %3118 = vmatmul.mubr.f32.gmra.mrb[0].mxu0 %v3117
        %v3119 = vpop.f32.mrb[0].mxu0
        %v3120 = vadd.f32 %v2597, %v3119
        %v3121 = vpop.f32.mrb[0].mxu0
        %3122 = vmatprep.mubr.f32.mxu0 0.0
        %v3123 = vand.u32 %v509, 4294901760
        %3124 = vmatmul.mubr.f32.gmra.mrb[0].mxu0 %v3123
        %v3125 = vpop.f32.mrb[0].mxu0
        %v3126 = vadd.f32 %v2605, %v3125
        %v3127 = vpop.f32.mrb[0].mxu0
        %3128 = vmatprep.mubr.f32.mxu0 0.0
        %v3129 = vand.u32 %v512, 4294901760
        %3130 = vmatmul.mubr.f32.gmra.mrb[0].mxu0 %v3129
        %v3131 = vpop.f32.mrb[0].mxu0
        %v3132 = vadd.f32 %v2613, %v3131
        %v3133 = vpop.f32.mrb[0].mxu0
        %3134 = vmatprep.mubr.f32.mxu0 0.0
        %v3135 = vand.u32 %v515, 4294901760
        %3136 = vmatmul.mubr.f32.gmra.mrb[0].mxu0 %v3135
        %v3137 = vpop.f32.mrb[0].mxu0
        %v3138 = vadd.f32 %v2621, %v3137
        %v3139 = vpop.f32.mrb[0].mxu0
        %3140 = vmatprep.mubr.f32.mxu0 0.0
        %v3141 = vand.u32 %v518, 4294901760
        %3142 = vmatmul.mubr.f32.gmra.mrb[0].mxu0 %v3141
        %v3143 = vpop.f32.mrb[0].mxu0
        %v3144 = vadd.f32 %v2629, %v3143
        %v3145 = vpop.f32.mrb[0].mxu0
        %3146 = vmatprep.mubr.f32.mxu0 0.0
        %v3147 = vand.u32 %v521, 4294901760
        %3148 = vmatmul.mubr.f32.gmra.mrb[0].mxu0 %v3147
        %v3149 = vpop.f32.mrb[0].mxu0
        %v3150 = vadd.f32 %v2637, %v3149
        %v3151 = vpop.f32.mrb[0].mxu0
        %3152 = vmatprep.mubr.f32.mxu0 0.0
        %v3153 = vand.u32 %v524, 4294901760
        %3154 = vmatmul.mubr.f32.gmra.mrb[0].mxu0 %v3153
        %v3155 = vpop.f32.mrb[0].mxu0
        %v3156 = vadd.f32 %v2645, %v3155
        %v3157 = vpop.f32.mrb[0].mxu0
        %3158 = vmatprep.mubr.f32.mxu0 0.0
        %v3159 = vand.u32 %v527, 4294901760
        %3160 = vmatmul.mubr.f32.gmra.mrb[0].mxu0 %v3159
        %v3161 = vpop.f32.mrb[0].mxu0
        %v3162 = vadd.f32 %v2653, %v3161
        %v3163 = vpop.f32.mrb[0].mxu0
        %3164 = vmatprep.mubr.f32.mxu0 0.0
        %v3165 = vand.u32 %v530, 4294901760
        %3166 = vmatmul.mubr.f32.gmra.mrb[0].mxu0 %v3165
        %v3167 = vpop.f32.mrb[0].mxu0
        %v3168 = vadd.f32 %v2661, %v3167
        %v3169 = vpop.f32.mrb[0].mxu0
        %3170 = vmatprep.mubr.f32.mxu0 0.0
        %v3171 = vand.u32 %v533, 4294901760
        %3172 = vmatmul.mubr.f32.gmra.mrb[0].mxu0 %v3171
        %v3173 = vpop.f32.mrb[0].mxu0
        %v3174 = vadd.f32 %v2669, %v3173
        %v3175 = vpop.f32.mrb[0].mxu0
        %3176 = vmatprep.mubr.f32.mxu0 0.0
        %v3177 = vand.u32 %v536, 4294901760
        %3178 = vmatmul.mubr.f32.gmra.mrb[0].mxu0 %v3177
        %v3179 = vpop.f32.mrb[0].mxu0
        %v3180 = vadd.f32 %v2677, %v3179
        %v3181 = vpop.f32.mrb[0].mxu0
        %3182 = vmatprep.mubr.f32.mxu0 0.0
        %v3183 = vand.u32 %v539, 4294901760
        %3184 = vmatmul.mubr.f32.gmra.mrb[0].mxu0 %v3183
        %v3185 = vpop.f32.mrb[0].mxu0
        %v3186 = vadd.f32 %v2685, %v3185
        %v3187 = vpop.f32.mrb[0].mxu0
        %3188 = vmatprep.mubr.f32.mxu0 0.0
        %v3189 = vand.u32 %v542, 4294901760
        %3190 = vmatmul.mubr.f32.gmra.mrb[0].mxu0 %v3189
        %v3191 = vpop.f32.mrb[0].mxu0
        %v3192 = vadd.f32 %v2693, %v3191
        %v3193 = vpop.f32.mrb[0].mxu0
        %3194 = vmatprep.mubr.f32.mxu0 0.0
        %v3195 = vand.u32 %v545, 4294901760
        %3196 = vmatmul.mubr.f32.gmra.mrb[0].mxu0 %v3195
        %v3197 = vpop.f32.mrb[0].mxu0
        %v3198 = vadd.f32 %v2701, %v3197
        %v3199 = vpop.f32.mrb[0].mxu0
        %3200 = vmatprep.mubr.f32.mxu0 0.0
        %v3201 = vand.u32 %v548, 4294901760
        %3202 = vmatmul.mubr.f32.gmra.mrb[0].mxu0 %v3201
        %v3203 = vpop.f32.mrb[0].mxu0
        %v3204 = vadd.f32 %v2709, %v3203
        %v3205 = vpop.f32.mrb[0].mxu0
        %3206 = vmatprep.mubr.f32.mxu0 0.0
        %v3207 = vand.u32 %v551, 4294901760
        %3208 = vmatmul.mubr.f32.gmra.mrb[0].mxu0 %v3207
        %v3209 = vpop.f32.mrb[0].mxu0
        %v3210 = vadd.f32 %v2717, %v3209
        %v3211 = vpop.f32.mrb[0].mxu0
        %3212 = vmatprep.mubr.f32.mxu0 0.0
        %v3213 = vand.u32 %v554, 4294901760
        %3214 = vmatmul.mubr.f32.gmra.mrb[0].mxu0 %v3213
        %v3215 = vpop.f32.mrb[0].mxu0
        %v3216 = vadd.f32 %v2725, %v3215
        %v3217 = vpop.f32.mrb[0].mxu0
        %3218 = vmatprep.mubr.f32.mxu0 0.0
        %v3219 = vand.u32 %v557, 4294901760
        %3220 = vmatmul.mubr.f32.gmra.mrb[0].mxu0 %v3219
        %v3221 = vpop.f32.mrb[0].mxu0
        %v3222 = vadd.f32 %v2733, %v3221
        %v3223 = vpop.f32.mrb[0].mxu0
        %3224 = vmatprep.mubr.f32.mxu0 0.0
        %v3225 = vand.u32 %v560, 4294901760
        %3226 = vmatmul.mubr.f32.gmra.mrb[0].mxu0 %v3225
        %v3227 = vpop.f32.mrb[0].mxu0
        %v3228 = vadd.f32 %v2741, %v3227
        %v3229 = vpop.f32.mrb[0].mxu0
        %3230 = vmatprep.mubr.f32.mxu0 0.0
        %v3231 = vand.u32 %v563, 4294901760
        %3232 = vmatmul.mubr.f32.gmra.mrb[0].mxu0 %v3231
        %v3233 = vpop.f32.mrb[0].mxu0
        %v3234 = vadd.f32 %v2749, %v3233
        %v3235 = vpop.f32.mrb[0].mxu0
        %3236 = vmatprep.mubr.f32.mxu0 0.0
        %v3237 = vand.u32 %v566, 4294901760
        %3238 = vmatmul.mubr.f32.gmra.mrb[0].mxu0 %v3237
        %v3239 = vpop.f32.mrb[0].mxu0
        %v3240 = vadd.f32 %v2757, %v3239
        %v3241 = vpop.f32.mrb[0].mxu0
        %3242 = vmatprep.mubr.f32.mxu0 0.0
        %v3243 = vand.u32 %v569, 4294901760
        %3244 = vmatmul.mubr.f32.gmra.mrb[0].mxu0 %v3243
        %v3245 = vpop.f32.mrb[0].mxu0
        %v3246 = vadd.f32 %v2765, %v3245
        %v3247 = vpop.f32.mrb[0].mxu0
        %3248 = vmatprep.mubr.f32.mxu0 0.0
        %v3249 = vand.u32 %v572, 4294901760
        %3250 = vmatmul.mubr.f32.gmra.mrb[0].mxu0 %v3249
        %v3251 = vpop.f32.mrb[0].mxu0
        %v3252 = vadd.f32 %v2773, %v3251
        %v3253 = vpop.f32.mrb[0].mxu0
        %3254 = vmatprep.mubr.f32.mxu0 0.0
        %v3255 = vand.u32 %v575, 4294901760
        %3256 = vmatmul.mubr.f32.gmra.mrb[0].mxu0 %v3255
        %v3257 = vpop.f32.mrb[0].mxu0
        %v3258 = vadd.f32 %v2781, %v3257
        %v3259 = vpop.f32.mrb[0].mxu0
        %3260 = vmatprep.mubr.f32.mxu0 0.0
        %v3261 = vand.u32 %v578, 4294901760
        %3262 = vmatmul.mubr.f32.gmra.mrb[0].mxu0 %v3261
        %v3263 = vpop.f32.mrb[0].mxu0
        %v3264 = vadd.f32 %v2789, %v3263
        %v3265 = vpop.f32.mrb[0].mxu0
        %3266 = vmatprep.mubr.f32.mxu0 0.0
        %v3267 = vand.u32 %v581, 4294901760
        %3268 = vmatmul.mubr.f32.gmra.mrb[0].mxu0 %v3267
        %v3269 = vpop.f32.mrb[0].mxu0
        %v3270 = vadd.f32 %v2797, %v3269
        %v3271 = vpop.f32.mrb[0].mxu0
        %3272 = vmatprep.mubr.f32.mxu0 0.0
        %v3273 = vand.u32 %v584, 4294901760
        %3274 = vmatmul.mubr.f32.gmra.mrb[0].mxu0 %v3273
        %v3275 = vpop.f32.mrb[0].mxu0
        %v3276 = vadd.f32 %v2805, %v3275
        %v3277 = vpop.f32.mrb[0].mxu0
        %3278 = vmatprep.mubr.f32.mxu0 0.0
        %v3279 = vand.u32 %v587, 4294901760
        %3280 = vmatmul.mubr.f32.gmra.mrb[0].mxu0 %v3279
        %v3281 = vpop.f32.mrb[0].mxu0
        %v3282 = vadd.f32 %v2813, %v3281
        %v3283 = vpop.f32.mrb[0].mxu0
        %3284 = vmatprep.mubr.f32.mxu0 0.0
        %v3285 = vand.u32 %v590, 4294901760
        %3286 = vmatmul.mubr.f32.gmra.mrb[0].mxu0 %v3285
        %v3287 = vpop.f32.mrb[0].mxu0
        %v3288 = vadd.f32 %v2821, %v3287
        %v3289 = vpop.f32.mrb[0].mxu0
        %3290 = vmatprep.mubr.f32.mxu0 0.0
        %v3291 = vand.u32 %v593, 4294901760
        %3292 = vmatmul.mubr.f32.gmra.mrb[0].mxu0 %v3291
        %v3293 = vpop.f32.mrb[0].mxu0
        %v3294 = vadd.f32 %v2829, %v3293
        %v3295 = vpop.f32.mrb[0].mxu0
        %3296 = vmatprep.mubr.f32.mxu0 0.0
        %v3297 = vand.u32 %v596, 4294901760
        %3298 = vmatmul.mubr.f32.gmra.mrb[0].mxu0 %v3297
        %v3299 = vpop.f32.mrb[0].mxu0
        %v3300 = vadd.f32 %v2837, %v3299
        %v3301 = vpop.f32.mrb[0].mxu0
        %3302 = vmatprep.mubr.f32.mxu0 0.0
        %v3303 = vand.u32 %v599, 4294901760
        %3304 = vmatmul.mubr.f32.gmra.mrb[0].mxu0 %v3303
        %v3305 = vpop.f32.mrb[0].mxu0
        %v3306 = vadd.f32 %v2845, %v3305
        %v3307 = vpop.f32.mrb[0].mxu0
        %3308 = vmatprep.mubr.f32.mxu0 0.0
        %v3309 = vand.u32 %v602, 4294901760
        %3310 = vmatmul.mubr.f32.gmra.mrb[0].mxu0 %v3309
        %v3311 = vpop.f32.mrb[0].mxu0
        %v3312 = vadd.f32 %v2853, %v3311
        %v3313 = vpop.f32.mrb[0].mxu0
        %3314 = vmatprep.mubr.f32.mxu0 0.0
        %v3315 = vand.u32 %v605, 4294901760
        %3316 = vmatmul.mubr.f32.gmra.mrb[0].mxu0 %v3315
        %v3317 = vpop.f32.mrb[0].mxu0
        %v3318 = vadd.f32 %v2861, %v3317
        %v3319 = vpop.f32.mrb[0].mxu0
        %3320 = vmatprep.mubr.f32.mxu0 0.0
        %v3321 = vand.u32 %v608, 4294901760
        %3322 = vmatmul.mubr.f32.gmra.mrb[0].mxu0 %v3321
        %v3323 = vpop.f32.mrb[0].mxu0
        %v3324 = vadd.f32 %v2869, %v3323
        %v3325 = vpop.f32.mrb[0].mxu0
        %3326 = vdwg.mxu0
        %3327 = vmatprep.subr.mxu0 0.0
        %v3328 = vand.u32 %v415, 4294901760
        %3329 = vmatpush1.msra.mxu0 %v3328
        %3330 = vmatprep.subr.mxu0 0.0
        %v3331 = vand.u32 %v416, 4294901760
        %3332 = vmatpush1.msra.mxu0 %v3331
        %3333 = vmatprep.subr.mxu0 0.0
        %3334 = vmatpush1.msra.mxu0 0.0
        %3335 = vmatprep.subr.mxu0 0.0
        %3336 = vmatpush1.msra.mxu0 0.0
        %3337 = vmatprep.subr.mxu0 0.0
        %3338 = vmatpush1.msra.mxu0 0.0
        %3339 = vmatprep.subr.mxu0 0.0
        %3340 = vmatpush1.msra.mxu0 0.0
        %3341 = vmatprep.subr.mxu0 0.0
        %3342 = vmatpush1.msra.mxu0 0.0
        %3343 = vmatprep.subr.mxu0 0.0
        %3344 = vmatpush1.msra.mxu0 0.0
        %3345 = vmatprep.subr.mxu0 0.0
        %3346 = vmatpush1.msra.mxu0 0.0
        %3347 = vmatprep.subr.mxu0 0.0
        %3348 = vmatpush1.msra.mxu0 0.0
        %3349 = vmatprep.subr.mxu0 0.0
        %3350 = vmatpush1.msra.mxu0 0.0
        %3351 = vmatprep.subr.mxu0 0.0
        %3352 = vmatpush1.msra.mxu0 0.0
        %3353 = vmatprep.subr.mxu0 0.0
        %3354 = vmatpush1.msra.mxu0 0.0
        %3355 = vmatprep.subr.mxu0 0.0
        %3356 = vmatpush1.msra.mxu0 0.0
        %3357 = vmatprep.subr.mxu0 0.0
        %3358 = vmatpush1.msra.mxu0 0.0
        %3359 = vmatprep.subr.mxu0 0.0
        %3360 = vmatpush1.msra.mxu0 0.0
        %3361 = vmatprep.subr.mxu0 0.0
        %3362 = vmatpush1.msra.mxu0 0.0
        %3363 = vmatprep.subr.mxu0 0.0
        %3364 = vmatpush1.msra.mxu0 0.0
        %3365 = vmatprep.subr.mxu0 0.0
        %3366 = vmatpush1.msra.mxu0 0.0
        %3367 = vmatprep.subr.mxu0 0.0
        %3368 = vmatpush1.msra.mxu0 0.0
        %3369 = vmatprep.subr.mxu0 0.0
        %3370 = vmatpush1.msra.mxu0 0.0
        %3371 = vmatprep.subr.mxu0 0.0
        %3372 = vmatpush1.msra.mxu0 0.0
        %3373 = vmatprep.subr.mxu0 0.0
        %3374 = vmatpush1.msra.mxu0 0.0
        %3375 = vmatprep.subr.mxu0 0.0
        %3376 = vmatpush1.msra.mxu0 0.0
        %3377 = vmatprep.subr.mxu0 0.0
        %3378 = vmatpush1.msra.mxu0 0.0
        %3379 = vmatprep.subr.mxu0 0.0
        %3380 = vmatpush1.msra.mxu0 0.0
        %3381 = vmatprep.subr.mxu0 0.0
        %3382 = vmatpush1.msra.mxu0 0.0
        %3383 = vmatprep.subr.mxu0 0.0
        %3384 = vmatpush1.msra.mxu0 0.0
        %3385 = vmatprep.subr.mxu0 0.0
        %3386 = vmatpush1.msra.mxu0 0.0
        %3387 = vmatprep.subr.mxu0 0.0
        %3388 = vmatpush1.msra.mxu0 0.0
        %3389 = vmatprep.subr.mxu0 0.0
        %3390 = vmatpush1.msra.mxu0 0.0
        %3391 = vmatprep.subr.mxu0 0.0
        %3392 = vmatpush1.msra.mxu0 0.0
        %3393 = vmatprep.mubr.f32.mxu0 0.0
        %v3394 = vand.u32 %v419, 4294901760
        %3395 = vmatmul.mubr.f32.gmra.mrb[0].mxu0 %v3394
        %v3396 = vpop.f32.mrb[0].mxu0
        %v3397 = vadd.f32 %v2946, %v3396
        %v3398 = vpop.f32.mrb[0].mxu0
        %3399 = vmatprep.mubr.f32.mxu0 0.0
        %v3400 = vand.u32 %v422, 4294901760
        %3401 = vmatmul.mubr.f32.gmra.mrb[0].mxu0 %v3400
        %v3402 = vpop.f32.mrb[0].mxu0
        %v3403 = vadd.f32 %v2952, %v3402
        %v3404 = vpop.f32.mrb[0].mxu0
        %3405 = vmatprep.mubr.f32.mxu0 0.0
        %v3406 = vand.u32 %v425, 4294901760
        %3407 = vmatmul.mubr.f32.gmra.mrb[0].mxu0 %v3406
        %v3408 = vpop.f32.mrb[0].mxu0
        %v3409 = vadd.f32 %v2958, %v3408
        %v3410 = vpop.f32.mrb[0].mxu0
        %3411 = vmatprep.mubr.f32.mxu0 0.0
        %v3412 = vand.u32 %v428, 4294901760
        %3413 = vmatmul.mubr.f32.gmra.mrb[0].mxu0 %v3412
        %v3414 = vpop.f32.mrb[0].mxu0
        %v3415 = vadd.f32 %v2964, %v3414
        %v3416 = vpop.f32.mrb[0].mxu0
        %3417 = vmatprep.mubr.f32.mxu0 0.0
        %v3418 = vand.u32 %v431, 4294901760
        %3419 = vmatmul.mubr.f32.gmra.mrb[0].mxu0 %v3418
        %v3420 = vpop.f32.mrb[0].mxu0
        %v3421 = vadd.f32 %v2970, %v3420
        %v3422 = vpop.f32.mrb[0].mxu0
        %3423 = vmatprep.mubr.f32.mxu0 0.0
        %v3424 = vand.u32 %v434, 4294901760
        %3425 = vmatmul.mubr.f32.gmra.mrb[0].mxu0 %v3424
        %v3426 = vpop.f32.mrb[0].mxu0
        %v3427 = vadd.f32 %v2976, %v3426
        %v3428 = vpop.f32.mrb[0].mxu0
        %3429 = vmatprep.mubr.f32.mxu0 0.0
        %v3430 = vand.u32 %v437, 4294901760
        %3431 = vmatmul.mubr.f32.gmra.mrb[0].mxu0 %v3430
        %v3432 = vpop.f32.mrb[0].mxu0
        %v3433 = vadd.f32 %v2982, %v3432
        %v3434 = vpop.f32.mrb[0].mxu0
        %3435 = vmatprep.mubr.f32.mxu0 0.0
        %v3436 = vand.u32 %v440, 4294901760
        %3437 = vmatmul.mubr.f32.gmra.mrb[0].mxu0 %v3436
        %v3438 = vpop.f32.mrb[0].mxu0
        %v3439 = vadd.f32 %v2988, %v3438
        %v3440 = vpop.f32.mrb[0].mxu0
        %3441 = vmatprep.mubr.f32.mxu0 0.0
        %v3442 = vand.u32 %v443, 4294901760
        %3443 = vmatmul.mubr.f32.gmra.mrb[0].mxu0 %v3442
        %v3444 = vpop.f32.mrb[0].mxu0
        %v3445 = vadd.f32 %v2994, %v3444
        %v3446 = vpop.f32.mrb[0].mxu0
        %3447 = vmatprep.mubr.f32.mxu0 0.0
        %v3448 = vand.u32 %v446, 4294901760
        %3449 = vmatmul.mubr.f32.gmra.mrb[0].mxu0 %v3448
        %v3450 = vpop.f32.mrb[0].mxu0
        %v3451 = vadd.f32 %v3000, %v3450
        %v3452 = vpop.f32.mrb[0].mxu0
        %3453 = vmatprep.mubr.f32.mxu0 0.0
        %v3454 = vand.u32 %v449, 4294901760
        %3455 = vmatmul.mubr.f32.gmra.mrb[0].mxu0 %v3454
        %v3456 = vpop.f32.mrb[0].mxu0
        %v3457 = vadd.f32 %v3006, %v3456
        %v3458 = vpop.f32.mrb[0].mxu0
        %3459 = vmatprep.mubr.f32.mxu0 0.0
        %v3460 = vand.u32 %v452, 4294901760
        %3461 = vmatmul.mubr.f32.gmra.mrb[0].mxu0 %v3460
        %v3462 = vpop.f32.mrb[0].mxu0
        %v3463 = vadd.f32 %v3012, %v3462
        %v3464 = vpop.f32.mrb[0].mxu0
        %3465 = vmatprep.mubr.f32.mxu0 0.0
        %v3466 = vand.u32 %v455, 4294901760
        %3467 = vmatmul.mubr.f32.gmra.mrb[0].mxu0 %v3466
        %v3468 = vpop.f32.mrb[0].mxu0
        %v3469 = vadd.f32 %v3018, %v3468
        %v3470 = vpop.f32.mrb[0].mxu0
        %3471 = vmatprep.mubr.f32.mxu0 0.0
        %v3472 = vand.u32 %v458, 4294901760
        %3473 = vmatmul.mubr.f32.gmra.mrb[0].mxu0 %v3472
        %v3474 = vpop.f32.mrb[0].mxu0
        %v3475 = vadd.f32 %v3024, %v3474
        %v3476 = vpop.f32.mrb[0].mxu0
        %3477 = vmatprep.mubr.f32.mxu0 0.0
        %v3478 = vand.u32 %v461, 4294901760
        %3479 = vmatmul.mubr.f32.gmra.mrb[0].mxu0 %v3478
        %v3480 = vpop.f32.mrb[0].mxu0
        %v3481 = vadd.f32 %v3030, %v3480
        %v3482 = vpop.f32.mrb[0].mxu0
        %3483 = vmatprep.mubr.f32.mxu0 0.0
        %v3484 = vand.u32 %v464, 4294901760
        %3485 = vmatmul.mubr.f32.gmra.mrb[0].mxu0 %v3484
        %v3486 = vpop.f32.mrb[0].mxu0
        %v3487 = vadd.f32 %v3036, %v3486
        %v3488 = vpop.f32.mrb[0].mxu0
        %3489 = vmatprep.mubr.f32.mxu0 0.0
        %v3490 = vand.u32 %v467, 4294901760
        %3491 = vmatmul.mubr.f32.gmra.mrb[0].mxu0 %v3490
        %v3492 = vpop.f32.mrb[0].mxu0
        %v3493 = vadd.f32 %v3042, %v3492
        %v3494 = vpop.f32.mrb[0].mxu0
        %3495 = vmatprep.mubr.f32.mxu0 0.0
        %v3496 = vand.u32 %v470, 4294901760
        %3497 = vmatmul.mubr.f32.gmra.mrb[0].mxu0 %v3496
        %v3498 = vpop.f32.mrb[0].mxu0
        %v3499 = vadd.f32 %v3048, %v3498
        %v3500 = vpop.f32.mrb[0].mxu0
        %3501 = vmatprep.mubr.f32.mxu0 0.0
        %v3502 = vand.u32 %v473, 4294901760
        %3503 = vmatmul.mubr.f32.gmra.mrb[0].mxu0 %v3502
        %v3504 = vpop.f32.mrb[0].mxu0
        %v3505 = vadd.f32 %v3054, %v3504
        %v3506 = vpop.f32.mrb[0].mxu0
        %3507 = vmatprep.mubr.f32.mxu0 0.0
        %v3508 = vand.u32 %v476, 4294901760
        %3509 = vmatmul.mubr.f32.gmra.mrb[0].mxu0 %v3508
        %v3510 = vpop.f32.mrb[0].mxu0
        %v3511 = vadd.f32 %v3060, %v3510
        %v3512 = vpop.f32.mrb[0].mxu0
        %3513 = vmatprep.mubr.f32.mxu0 0.0
        %v3514 = vand.u32 %v479, 4294901760
        %3515 = vmatmul.mubr.f32.gmra.mrb[0].mxu0 %v3514
        %v3516 = vpop.f32.mrb[0].mxu0
        %v3517 = vadd.f32 %v3066, %v3516
        %v3518 = vpop.f32.mrb[0].mxu0
        %3519 = vmatprep.mubr.f32.mxu0 0.0
        %v3520 = vand.u32 %v482, 4294901760
        %3521 = vmatmul.mubr.f32.gmra.mrb[0].mxu0 %v3520
        %v3522 = vpop.f32.mrb[0].mxu0
        %v3523 = vadd.f32 %v3072, %v3522
        %v3524 = vpop.f32.mrb[0].mxu0
        %3525 = vmatprep.mubr.f32.mxu0 0.0
        %v3526 = vand.u32 %v485, 4294901760
        %3527 = vmatmul.mubr.f32.gmra.mrb[0].mxu0 %v3526
        %v3528 = vpop.f32.mrb[0].mxu0
        %v3529 = vadd.f32 %v3078, %v3528
        %v3530 = vpop.f32.mrb[0].mxu0
        %3531 = vmatprep.mubr.f32.mxu0 0.0
        %v3532 = vand.u32 %v488, 4294901760
        %3533 = vmatmul.mubr.f32.gmra.mrb[0].mxu0 %v3532
        %v3534 = vpop.f32.mrb[0].mxu0
        %v3535 = vadd.f32 %v3084, %v3534
        %v3536 = vpop.f32.mrb[0].mxu0
        %3537 = vmatprep.mubr.f32.mxu0 0.0
        %v3538 = vand.u32 %v491, 4294901760
        %3539 = vmatmul.mubr.f32.gmra.mrb[0].mxu0 %v3538
        %v3540 = vpop.f32.mrb[0].mxu0
        %v3541 = vadd.f32 %v3090, %v3540
        %v3542 = vpop.f32.mrb[0].mxu0
        %3543 = vmatprep.mubr.f32.mxu0 0.0
        %v3544 = vand.u32 %v494, 4294901760
        %3545 = vmatmul.mubr.f32.gmra.mrb[0].mxu0 %v3544
        %v3546 = vpop.f32.mrb[0].mxu0
        %v3547 = vadd.f32 %v3096, %v3546
        %v3548 = vpop.f32.mrb[0].mxu0
        %3549 = vmatprep.mubr.f32.mxu0 0.0
        %v3550 = vand.u32 %v497, 4294901760
        %3551 = vmatmul.mubr.f32.gmra.mrb[0].mxu0 %v3550
        %v3552 = vpop.f32.mrb[0].mxu0
        %v3553 = vadd.f32 %v3102, %v3552
        %v3554 = vpop.f32.mrb[0].mxu0
        %3555 = vmatprep.mubr.f32.mxu0 0.0
        %v3556 = vand.u32 %v500, 4294901760
        %3557 = vmatmul.mubr.f32.gmra.mrb[0].mxu0 %v3556
        %v3558 = vpop.f32.mrb[0].mxu0
        %v3559 = vadd.f32 %v3108, %v3558
        %v3560 = vpop.f32.mrb[0].mxu0
        %3561 = vmatprep.mubr.f32.mxu0 0.0
        %v3562 = vand.u32 %v503, 4294901760
        %3563 = vmatmul.mubr.f32.gmra.mrb[0].mxu0 %v3562
        %v3564 = vpop.f32.mrb[0].mxu0
        %v3565 = vadd.f32 %v3114, %v3564
        %v3566 = vpop.f32.mrb[0].mxu0
        %3567 = vmatprep.mubr.f32.mxu0 0.0
        %v3568 = vand.u32 %v506, 4294901760
        %3569 = vmatmul.mubr.f32.gmra.mrb[0].mxu0 %v3568
        %v3570 = vpop.f32.mrb[0].mxu0
        %v3571 = vadd.f32 %v3120, %v3570
        %v3572 = vpop.f32.mrb[0].mxu0
        %3573 = vmatprep.mubr.f32.mxu0 0.0
        %v3574 = vand.u32 %v509, 4294901760
        %3575 = vmatmul.mubr.f32.gmra.mrb[0].mxu0 %v3574
        %v3576 = vpop.f32.mrb[0].mxu0
        %v3577 = vadd.f32 %v3126, %v3576
        %v3578 = vpop.f32.mrb[0].mxu0
        %3579 = vmatprep.mubr.f32.mxu0 0.0
        %v3580 = vand.u32 %v512, 4294901760
        %3581 = vmatmul.mubr.f32.gmra.mrb[0].mxu0 %v3580
        %v3582 = vpop.f32.mrb[0].mxu0
        %v3583 = vadd.f32 %v3132, %v3582
        %v3584 = vpop.f32.mrb[0].mxu0
        %3585 = vmatprep.mubr.f32.mxu0 0.0
        %v3586 = vand.u32 %v515, 4294901760
        %3587 = vmatmul.mubr.f32.gmra.mrb[0].mxu0 %v3586
        %v3588 = vpop.f32.mrb[0].mxu0
        %v3589 = vadd.f32 %v3138, %v3588
        %v3590 = vpop.f32.mrb[0].mxu0
        %3591 = vmatprep.mubr.f32.mxu0 0.0
        %v3592 = vand.u32 %v518, 4294901760
        %3593 = vmatmul.mubr.f32.gmra.mrb[0].mxu0 %v3592
        %v3594 = vpop.f32.mrb[0].mxu0
        %v3595 = vadd.f32 %v3144, %v3594
        %v3596 = vpop.f32.mrb[0].mxu0
        %3597 = vmatprep.mubr.f32.mxu0 0.0
        %v3598 = vand.u32 %v521, 4294901760
        %3599 = vmatmul.mubr.f32.gmra.mrb[0].mxu0 %v3598
        %v3600 = vpop.f32.mrb[0].mxu0
        %v3601 = vadd.f32 %v3150, %v3600
        %v3602 = vpop.f32.mrb[0].mxu0
        %3603 = vmatprep.mubr.f32.mxu0 0.0
        %v3604 = vand.u32 %v524, 4294901760
        %3605 = vmatmul.mubr.f32.gmra.mrb[0].mxu0 %v3604
        %v3606 = vpop.f32.mrb[0].mxu0
        %v3607 = vadd.f32 %v3156, %v3606
        %v3608 = vpop.f32.mrb[0].mxu0
        %3609 = vmatprep.mubr.f32.mxu0 0.0
        %v3610 = vand.u32 %v527, 4294901760
        %3611 = vmatmul.mubr.f32.gmra.mrb[0].mxu0 %v3610
        %v3612 = vpop.f32.mrb[0].mxu0
        %v3613 = vadd.f32 %v3162, %v3612
        %v3614 = vpop.f32.mrb[0].mxu0
        %3615 = vmatprep.mubr.f32.mxu0 0.0
        %v3616 = vand.u32 %v530, 4294901760
        %3617 = vmatmul.mubr.f32.gmra.mrb[0].mxu0 %v3616
        %v3618 = vpop.f32.mrb[0].mxu0
        %v3619 = vadd.f32 %v3168, %v3618
        %v3620 = vpop.f32.mrb[0].mxu0
        %3621 = vmatprep.mubr.f32.mxu0 0.0
        %v3622 = vand.u32 %v533, 4294901760
        %3623 = vmatmul.mubr.f32.gmra.mrb[0].mxu0 %v3622
        %v3624 = vpop.f32.mrb[0].mxu0
        %v3625 = vadd.f32 %v3174, %v3624
        %v3626 = vpop.f32.mrb[0].mxu0
        %3627 = vmatprep.mubr.f32.mxu0 0.0
        %v3628 = vand.u32 %v536, 4294901760
        %3629 = vmatmul.mubr.f32.gmra.mrb[0].mxu0 %v3628
        %v3630 = vpop.f32.mrb[0].mxu0
        %v3631 = vadd.f32 %v3180, %v3630
        %v3632 = vpop.f32.mrb[0].mxu0
        %3633 = vmatprep.mubr.f32.mxu0 0.0
        %v3634 = vand.u32 %v539, 4294901760
        %3635 = vmatmul.mubr.f32.gmra.mrb[0].mxu0 %v3634
        %v3636 = vpop.f32.mrb[0].mxu0
        %v3637 = vadd.f32 %v3186, %v3636
        %v3638 = vpop.f32.mrb[0].mxu0
        %3639 = vmatprep.mubr.f32.mxu0 0.0
        %v3640 = vand.u32 %v542, 4294901760
        %3641 = vmatmul.mubr.f32.gmra.mrb[0].mxu0 %v3640
        %v3642 = vpop.f32.mrb[0].mxu0
        %v3643 = vadd.f32 %v3192, %v3642
        %v3644 = vpop.f32.mrb[0].mxu0
        %3645 = vmatprep.mubr.f32.mxu0 0.0
        %v3646 = vand.u32 %v545, 4294901760
        %3647 = vmatmul.mubr.f32.gmra.mrb[0].mxu0 %v3646
        %v3648 = vpop.f32.mrb[0].mxu0
        %v3649 = vadd.f32 %v3198, %v3648
        %v3650 = vpop.f32.mrb[0].mxu0
        %3651 = vmatprep.mubr.f32.mxu0 0.0
        %v3652 = vand.u32 %v548, 4294901760
        %3653 = vmatmul.mubr.f32.gmra.mrb[0].mxu0 %v3652
        %v3654 = vpop.f32.mrb[0].mxu0
        %v3655 = vadd.f32 %v3204, %v3654
        %v3656 = vpop.f32.mrb[0].mxu0
        %3657 = vmatprep.mubr.f32.mxu0 0.0
        %v3658 = vand.u32 %v551, 4294901760
        %3659 = vmatmul.mubr.f32.gmra.mrb[0].mxu0 %v3658
        %v3660 = vpop.f32.mrb[0].mxu0
        %v3661 = vadd.f32 %v3210, %v3660
        %v3662 = vpop.f32.mrb[0].mxu0
        %3663 = vmatprep.mubr.f32.mxu0 0.0
        %v3664 = vand.u32 %v554, 4294901760
        %3665 = vmatmul.mubr.f32.gmra.mrb[0].mxu0 %v3664
        %v3666 = vpop.f32.mrb[0].mxu0
        %v3667 = vadd.f32 %v3216, %v3666
        %v3668 = vpop.f32.mrb[0].mxu0
        %3669 = vmatprep.mubr.f32.mxu0 0.0
        %v3670 = vand.u32 %v557, 4294901760
        %3671 = vmatmul.mubr.f32.gmra.mrb[0].mxu0 %v3670
        %v3672 = vpop.f32.mrb[0].mxu0
        %v3673 = vadd.f32 %v3222, %v3672
        %v3674 = vpop.f32.mrb[0].mxu0
        %3675 = vmatprep.mubr.f32.mxu0 0.0
        %v3676 = vand.u32 %v560, 4294901760
        %3677 = vmatmul.mubr.f32.gmra.mrb[0].mxu0 %v3676
        %v3678 = vpop.f32.mrb[0].mxu0
        %v3679 = vadd.f32 %v3228, %v3678
        %v3680 = vpop.f32.mrb[0].mxu0
        %3681 = vmatprep.mubr.f32.mxu0 0.0
        %v3682 = vand.u32 %v563, 4294901760
        %3683 = vmatmul.mubr.f32.gmra.mrb[0].mxu0 %v3682
        %v3684 = vpop.f32.mrb[0].mxu0
        %v3685 = vadd.f32 %v3234, %v3684
        %v3686 = vpop.f32.mrb[0].mxu0
        %3687 = vmatprep.mubr.f32.mxu0 0.0
        %v3688 = vand.u32 %v566, 4294901760
        %3689 = vmatmul.mubr.f32.gmra.mrb[0].mxu0 %v3688
        %v3690 = vpop.f32.mrb[0].mxu0
        %v3691 = vadd.f32 %v3240, %v3690
        %v3692 = vpop.f32.mrb[0].mxu0
        %3693 = vmatprep.mubr.f32.mxu0 0.0
        %v3694 = vand.u32 %v569, 4294901760
        %3695 = vmatmul.mubr.f32.gmra.mrb[0].mxu0 %v3694
        %v3696 = vpop.f32.mrb[0].mxu0
        %v3697 = vadd.f32 %v3246, %v3696
        %v3698 = vpop.f32.mrb[0].mxu0
        %3699 = vmatprep.mubr.f32.mxu0 0.0
        %v3700 = vand.u32 %v572, 4294901760
        %3701 = vmatmul.mubr.f32.gmra.mrb[0].mxu0 %v3700
        %v3702 = vpop.f32.mrb[0].mxu0
        %v3703 = vadd.f32 %v3252, %v3702
        %v3704 = vpop.f32.mrb[0].mxu0
        %3705 = vmatprep.mubr.f32.mxu0 0.0
        %v3706 = vand.u32 %v575, 4294901760
        %3707 = vmatmul.mubr.f32.gmra.mrb[0].mxu0 %v3706
        %v3708 = vpop.f32.mrb[0].mxu0
        %v3709 = vadd.f32 %v3258, %v3708
        %v3710 = vpop.f32.mrb[0].mxu0
        %3711 = vmatprep.mubr.f32.mxu0 0.0
        %v3712 = vand.u32 %v578, 4294901760
        %3713 = vmatmul.mubr.f32.gmra.mrb[0].mxu0 %v3712
        %v3714 = vpop.f32.mrb[0].mxu0
        %v3715 = vadd.f32 %v3264, %v3714
        %v3716 = vpop.f32.mrb[0].mxu0
        %3717 = vmatprep.mubr.f32.mxu0 0.0
        %v3718 = vand.u32 %v581, 4294901760
        %3719 = vmatmul.mubr.f32.gmra.mrb[0].mxu0 %v3718
        %v3720 = vpop.f32.mrb[0].mxu0
        %v3721 = vadd.f32 %v3270, %v3720
        %v3722 = vpop.f32.mrb[0].mxu0
        %3723 = vmatprep.mubr.f32.mxu0 0.0
        %v3724 = vand.u32 %v584, 4294901760
        %3725 = vmatmul.mubr.f32.gmra.mrb[0].mxu0 %v3724
        %v3726 = vpop.f32.mrb[0].mxu0
        %v3727 = vadd.f32 %v3276, %v3726
        %v3728 = vpop.f32.mrb[0].mxu0
        %3729 = vmatprep.mubr.f32.mxu0 0.0
        %v3730 = vand.u32 %v587, 4294901760
        %3731 = vmatmul.mubr.f32.gmra.mrb[0].mxu0 %v3730
        %v3732 = vpop.f32.mrb[0].mxu0
        %v3733 = vadd.f32 %v3282, %v3732
        %v3734 = vpop.f32.mrb[0].mxu0
        %3735 = vmatprep.mubr.f32.mxu0 0.0
        %v3736 = vand.u32 %v590, 4294901760
        %3737 = vmatmul.mubr.f32.gmra.mrb[0].mxu0 %v3736
        %v3738 = vpop.f32.mrb[0].mxu0
        %v3739 = vadd.f32 %v3288, %v3738
        %v3740 = vpop.f32.mrb[0].mxu0
        %3741 = vmatprep.mubr.f32.mxu0 0.0
        %v3742 = vand.u32 %v593, 4294901760
        %3743 = vmatmul.mubr.f32.gmra.mrb[0].mxu0 %v3742
        %v3744 = vpop.f32.mrb[0].mxu0
        %v3745 = vadd.f32 %v3294, %v3744
        %v3746 = vpop.f32.mrb[0].mxu0
        %3747 = vmatprep.mubr.f32.mxu0 0.0
        %v3748 = vand.u32 %v596, 4294901760
        %3749 = vmatmul.mubr.f32.gmra.mrb[0].mxu0 %v3748
        %v3750 = vpop.f32.mrb[0].mxu0
        %v3751 = vadd.f32 %v3300, %v3750
        %v3752 = vpop.f32.mrb[0].mxu0
        %3753 = vmatprep.mubr.f32.mxu0 0.0
        %v3754 = vand.u32 %v599, 4294901760
        %3755 = vmatmul.mubr.f32.gmra.mrb[0].mxu0 %v3754
        %v3756 = vpop.f32.mrb[0].mxu0
        %v3757 = vadd.f32 %v3306, %v3756
        %v3758 = vpop.f32.mrb[0].mxu0
        %3759 = vmatprep.mubr.f32.mxu0 0.0
        %v3760 = vand.u32 %v602, 4294901760
        %3761 = vmatmul.mubr.f32.gmra.mrb[0].mxu0 %v3760
        %v3762 = vpop.f32.mrb[0].mxu0
        %v3763 = vadd.f32 %v3312, %v3762
        %v3764 = vpop.f32.mrb[0].mxu0
        %3765 = vmatprep.mubr.f32.mxu0 0.0
        %v3766 = vand.u32 %v605, 4294901760
        %3767 = vmatmul.mubr.f32.gmra.mrb[0].mxu0 %v3766
        %v3768 = vpop.f32.mrb[0].mxu0
        %v3769 = vadd.f32 %v3318, %v3768
        %v3770 = vpop.f32.mrb[0].mxu0
        %3771 = vmatprep.mubr.f32.mxu0 0.0
        %v3772 = vand.u32 %v608, 4294901760
        %3773 = vmatmul.mubr.f32.gmra.mrb[0].mxu0 %v3772
        %v3774 = vpop.f32.mrb[0].mxu0
        %v3775 = vadd.f32 %v3324, %v3774
        %v3776 = vpop.f32.mrb[0].mxu0
        %3777 = vdwg.mxu0
        %vm3778 = vcmask 982016
        %3779 = vst.msk [vmem:[%s177] sm:$0xff] %vm3778, %v3397
        %3780 = vst.msk [vmem:[%s177 + $0x8] sm:$0xff] %vm3778, %v3403
        %3781 = vst.msk [vmem:[%s177 + $0x10] sm:$0xff] %vm3778, %v3409
        %3782 = vst.msk [vmem:[%s177 + $0x18] sm:$0xff] %vm3778, %v3415
        %3783 = vst.msk [vmem:[%s177 + $0x20] sm:$0xff] %vm3778, %v3421
        %3784 = vst.msk [vmem:[%s177 + $0x28] sm:$0xff] %vm3778, %v3427
        %3785 = vst.msk [vmem:[%s177 + $0x30] sm:$0xff] %vm3778, %v3433
        %3786 = vst.msk [vmem:[%s177 + $0x38] sm:$0xff] %vm3778, %v3439
        %3787 = vst.msk [vmem:[%s177 + $0x40] sm:$0xff] %vm3778, %v3445
        %3788 = vst.msk [vmem:[%s177 + $0x48] sm:$0xff] %vm3778, %v3451
        %3789 = vst.msk [vmem:[%s177 + $0x50] sm:$0xff] %vm3778, %v3457
        %3790 = vst.msk [vmem:[%s177 + $0x58] sm:$0xff] %vm3778, %v3463
        %3791 = vst.msk [vmem:[%s177 + $0x60] sm:$0xff] %vm3778, %v3469
        %3792 = vst.msk [vmem:[%s177 + $0x68] sm:$0xff] %vm3778, %v3475
        %3793 = vst.msk [vmem:[%s177 + $0x70] sm:$0xff] %vm3778, %v3481
        %3794 = vst.msk [vmem:[%s177 + $0x78] sm:$0xff] %vm3778, %v3487
        %3795 = vst.msk [vmem:[%s177 + $0x80] sm:$0xff] %vm3778, %v3493
        %3796 = vst.msk [vmem:[%s177 + $0x88] sm:$0xff] %vm3778, %v3499
        %3797 = vst.msk [vmem:[%s177 + $0x90] sm:$0xff] %vm3778, %v3505
        %3798 = vst.msk [vmem:[%s177 + $0x98] sm:$0xff] %vm3778, %v3511
        %3799 = vst.msk [vmem:[%s177 + $0xa0] sm:$0xff] %vm3778, %v3517
        %3800 = vst.msk [vmem:[%s177 + $0xa8] sm:$0xff] %vm3778, %v3523
        %3801 = vst.msk [vmem:[%s177 + $0xb0] sm:$0xff] %vm3778, %v3529
        %3802 = vst.msk [vmem:[%s177 + $0xb8] sm:$0xff] %vm3778, %v3535
        %3803 = vst.msk [vmem:[%s177 + $0xc0] sm:$0xff] %vm3778, %v3541
        %3804 = vst.msk [vmem:[%s177 + $0xc8] sm:$0xff] %vm3778, %v3547
        %3805 = vst.msk [vmem:[%s177 + $0xd0] sm:$0xff] %vm3778, %v3553
        %3806 = vst.msk [vmem:[%s177 + $0xd8] sm:$0xff] %vm3778, %v3559
        %3807 = vst.msk [vmem:[%s177 + $0xe0] sm:$0xff] %vm3778, %v3565
        %3808 = vst.msk [vmem:[%s177 + $0xe8] sm:$0xff] %vm3778, %v3571
        %3809 = vst.msk [vmem:[%s177 + $0xf0] sm:$0xff] %vm3778, %v3577
        %3810 = vst.msk [vmem:[%s177 + $0xf8] sm:$0xff] %vm3778, %v3583
        %3811 = vst.msk [vmem:[%s177 + $0x100] sm:$0xff] %vm3778, %v3589
        %3812 = vst.msk [vmem:[%s177 + $0x108] sm:$0xff] %vm3778, %v3595
        %3813 = vst.msk [vmem:[%s177 + $0x110] sm:$0xff] %vm3778, %v3601
        %3814 = vst.msk [vmem:[%s177 + $0x118] sm:$0xff] %vm3778, %v3607
        %3815 = vst.msk [vmem:[%s177 + $0x120] sm:$0xff] %vm3778, %v3613
        %3816 = vst.msk [vmem:[%s177 + $0x128] sm:$0xff] %vm3778, %v3619
        %3817 = vst.msk [vmem:[%s177 + $0x130] sm:$0xff] %vm3778, %v3625
        %3818 = vst.msk [vmem:[%s177 + $0x138] sm:$0xff] %vm3778, %v3631
        %3819 = vst.msk [vmem:[%s177 + $0x140] sm:$0xff] %vm3778, %v3637
        %3820 = vst.msk [vmem:[%s177 + $0x148] sm:$0xff] %vm3778, %v3643
        %3821 = vst.msk [vmem:[%s177 + $0x150] sm:$0xff] %vm3778, %v3649
        %3822 = vst.msk [vmem:[%s177 + $0x158] sm:$0xff] %vm3778, %v3655
        %3823 = vst.msk [vmem:[%s177 + $0x160] sm:$0xff] %vm3778, %v3661
        %3824 = vst.msk [vmem:[%s177 + $0x168] sm:$0xff] %vm3778, %v3667
        %3825 = vst.msk [vmem:[%s177 + $0x170] sm:$0xff] %vm3778, %v3673
        %3826 = vst.msk [vmem:[%s177 + $0x178] sm:$0xff] %vm3778, %v3679
        %3827 = vst.msk [vmem:[%s177 + $0x180] sm:$0xff] %vm3778, %v3685
        %3828 = vst.msk [vmem:[%s177 + $0x188] sm:$0xff] %vm3778, %v3691
        %3829 = vst.msk [vmem:[%s177 + $0x190] sm:$0xff] %vm3778, %v3697
        %3830 = vst.msk [vmem:[%s177 + $0x198] sm:$0xff] %vm3778, %v3703
        %3831 = vst.msk [vmem:[%s177 + $0x1a0] sm:$0xff] %vm3778, %v3709
        %3832 = vst.msk [vmem:[%s177 + $0x1a8] sm:$0xff] %vm3778, %v3715
        %3833 = vst.msk [vmem:[%s177 + $0x1b0] sm:$0xff] %vm3778, %v3721
        %3834 = vst.msk [vmem:[%s177 + $0x1b8] sm:$0xff] %vm3778, %v3727
        %3835 = vst.msk [vmem:[%s177 + $0x1c0] sm:$0xff] %vm3778, %v3733
        %3836 = vst.msk [vmem:[%s177 + $0x1c8] sm:$0xff] %vm3778, %v3739
        %3837 = vst.msk [vmem:[%s177 + $0x1d0] sm:$0xff] %vm3778, %v3745
        %3838 = vst.msk [vmem:[%s177 + $0x1d8] sm:$0xff] %vm3778, %v3751
        %3839 = vst.msk [vmem:[%s177 + $0x1e0] sm:$0xff] %vm3778, %v3757
        %3840 = vst.msk [vmem:[%s177 + $0x1e8] sm:$0xff] %vm3778, %v3763
        %3841 = vst.msk [vmem:[%s177 + $0x1f0] sm:$0xff] %vm3778, %v3769
        %3842 = vst.msk [vmem:[%s177 + $0x1f8] sm:$0xff] %vm3778, %v3775
        %s3843 = smul.u32 64, %s17
        %p3844 = scmp.lt.s32.totalorder %s3843, 127
        %s3845 = scalar_select %p3844, %s3843, 127
        %s3846 = smul.addr %s3845, 8
        %s3847 = scalar_lea.vmem %s2, %s3846
        // Predicated region
        $region37: #{tpu_custom_call.1} parent=27 // pred_check
          %p3848 = pneg %p82
        $region38: #{tpu_custom_call.1} parent=27 // pred_check_branch
          %3850 = sbr.rel (%p3848) target = $region40
        $region39: #{tpu_custom_call.1} parent=27 // pred_region
          %s3851 = smul.u32 64, %s17
        $region40: #{tpu_custom_call.1} parent=27 // pred_fallthru
          _
      $region28: #{tpu_custom_call.1} parent=5 // pred_fallthru
        _
      %p3852 = scmp.le.s32.totalorder 2, %s12
      // Predicated region
      $region41: #{tpu_custom_call.1} parent=5 // pred_check
        %p3853 = pneg %p3852
      $region42: #{tpu_custom_call.1} parent=5 // pred_check_branch
        %3855 = sbr.rel (%p3853) target = $region44
      $region43: #{tpu_custom_call.1} parent=5 // pred_region
        %s3856 = ssub.s32 %s12, 2
        // Predicated region
        $region45: #{tpu_custom_call.1} parent=43 // pred_check
          %p3857 = pneg %p88
        $region46: #{tpu_custom_call.1} parent=43 // pred_check_branch
          %3859 = sbr.rel (%p3857) target = $region48
        $region47: #{tpu_custom_call.1} parent=43 // pred_region
          %s3860 = smul.u32 64, %s18
          %p3861 = scmp.lt.s32.totalorder %s3860, 127
          %s3862 = scalar_select %p3861, %s3860, 127
          %s3863 = smul.addr %s3862, 8
          %s3864 = scalar_lea.vmem %s2, %s3863
        $region48: #{tpu_custom_call.1} parent=43 // pred_fallthru
          _
      $region44: #{tpu_custom_call.1} parent=5 // pred_fallthru
        _
    $region6: #{tpu_custom_call.1} parent=1 // loop_footer
      %s16 = sadd.s32 1, %s12
    $region7: #{tpu_custom_call.1} parent=1 // loop_footer_branch
      %11 = sbr.rel target = $region3
    $region8: #{tpu_custom_call.1} parent=1 // loop_exit
      _
    %3865 = vsyncpa [#allocation3], 1
    %s3866 = scalar_lea.sflag [#allocation3], 1
    %3867 = vsyncpa %s3866, 1
    %3868 = vsyncpa [#allocation5], 1

</llo_original>
